<compile_context>
chip_gen: v6e
topology: v6e:2x2x1
jax: 0.10.0
libtpu: 0.0.40
codegen_flags: <defaults>
</compile_context>

<pallas_src>
import functools

import jax
import jax.numpy as jnp
from jax.experimental import pallas as pl
from jax.experimental.pallas import tpu as pltpu


def _vmem_bytes(tt, B, D, H):
    """Rough per-core VMEM footprint for one grid step (double-buffered blocks)."""
    g4 = 4 * H
    return (2 * tt * B * D * 2        # x block (bf16), double buffered
            + 2 * tt * B * H * 4      # output block (f32), double buffered
            + 2 * D * g4 * 2          # W_ih (bf16), double buffered
            + 2 * H * g4 * 2          # W_hh (bf16), double buffered
            + 2 * 1 * g4 * 4          # bias
            + 2 * B * H * 4           # h/c carries
            + 4 * 2 * B * H * 4)      # final h/c output blocks


def _pick_time_block(T, B, D, H, vmem_budget_bytes, time_block=None):
    """Largest block of timesteps that divides T and fits the VMEM budget."""
    if time_block is not None:
        assert T % time_block == 0, (T, time_block)
        return time_block
    for tt in (128, 64, 32, 16, 8, 4, 2, 1):
        if T % tt != 0:
            continue
        if _vmem_bytes(tt, B, D, H) <= vmem_budget_bytes:
            return tt
    # TODO(synk): for awkward (e.g. prime) T consider padding T instead of TT=1.
    return 1


def _bilstm_kernel(x_ref, w_ih_ref, w_hh_ref, b_ref,
                   out_ref, h_out_ref, c_out_ref, h_scr, c_scr):
    """One grid step = one direction x one block of TT timesteps.

    x_ref    : (TT, B, D)  bf16  time-major input block
    w_ih_ref : (D, 4H)     bf16  input weights for this direction (resident)
    w_hh_ref : (H, 4H)     bf16  recurrent weights for this direction (resident)
    b_ref    : (1, 4H)     f32   fused bias (b_ih + b_hh)
    out_ref  : (TT, B, H)  f32   per-timestep hidden states
    h_out_ref: (B, H)      f32   final hidden state (written at last block only)
    c_out_ref: (B, H)      f32   final cell state   (written at last block only)
    h_scr/c_scr: (B, H) f32 VMEM carries across time blocks (per-core)
    """
    d = pl.program_id(0)            # direction: 0 = forward, 1 = backward
    t = pl.program_id(1)            # time-block index in grid order
    nt = pl.num_programs(1)
    TT = x_ref.shape[0]
    B = h_scr.shape[0]
    H = h_scr.shape[-1]

    @pl.when(t == 0)
    def _init():
        h_scr[...] = jnp.zeros_like(h_scr)
        c_scr[...] = jnp.zeros_like(c_scr)

    w_ih = w_ih_ref[...]            # (D, 4H) bf16
    w_hh = w_hh_ref[...]            # (H, 4H) bf16
    # Hoist the bias broadcast out of the unrolled loop (JAX does not CSE it).
    bias = jnp.broadcast_to(b_ref[...], (B, 4 * H))

    def run_block(reverse):
        # Static within-block order -> static, aligned load/store offsets.
        h = h_scr[...]
        c = c_scr[...]
        for s in range(TT):
            idx = TT - 1 - s if reverse else s
            x_t = x_ref[idx]                                      # (B, D) bf16
            # Fused input projection + recurrent matmul, f32 accumulation.
            gates = (jnp.dot(x_t, w_ih, preferred_element_type=jnp.float32)
                     + jnp.dot(h.astype(jnp.bfloat16), w_hh,
                               preferred_element_type=jnp.float32)
                     + bias)                                      # (B, 4H) f32
            # PyTorch gate order: i, f, g, o.
            # TODO(synk): on v6e/v7x these activations could run in bf16 on the
            # EUP for ~2x transcendental throughput (keep f32 here: v5e-safe).
            i_g = jax.nn.sigmoid(gates[:, 0 * H:1 * H])
            f_g = jax.nn.sigmoid(gates[:, 1 * H:2 * H])
            g_g = jnp.tanh(gates[:, 2 * H:3 * H])
            o_g = jax.nn.sigmoid(gates[:, 3 * H:4 * H])
            c = f_g * c + i_g * g_g
            h = o_g * jnp.tanh(c)
            out_ref[idx] = h.astype(out_ref.dtype)
        h_scr[...] = h
        c_scr[...] = c

    @pl.when(d == 0)
    def _fwd():
        run_block(reverse=False)

    @pl.when(d == 1)
    def _bwd():
        run_block(reverse=True)

    @pl.when(t == nt - 1)
    def _finalize():
        h_out_ref[...] = h_scr[...].astype(h_out_ref.dtype)
        c_out_ref[...] = c_scr[...].astype(c_out_ref.dtype)


def bidirectional_lstm(x, params, *, time_block=None,
                       vmem_budget_bytes=24 * 2**20):
    """Mirrors MyBidirectionalLSTM.forward with bidirectional=True.

    x      : (B, T, D) float32
    params : dict with
        'w_ih': (2, D, 4H) f32  stacked transposed input weights  [fwd, bwd]
        'w_hh': (2, H, 4H) f32  stacked transposed recurrent weights
        'b'   : (2, 4H)    f32  stacked (b_ih + b_hh)
    returns (output (B, T, 2H), (h (B, 2, H), c (B, 2, H)))
    """
    B, T, D = x.shape
    H = params["w_hh"].shape[1]
    G4 = 4 * H
    TT = _pick_time_block(T, B, D, H, vmem_budget_bytes, time_block)
    NB = T // TT

    # Time-major bf16 input for the kernel (one cheap pass over x, D-wide,
    # instead of the old 2*T*B*4H f32 G intermediate).
    xt = jnp.transpose(x, (1, 0, 2)).astype(jnp.bfloat16)       # (T, B, D)
    w_ih = params["w_ih"].astype(jnp.bfloat16)                   # (2, D, 4H)
    w_hh = params["w_hh"].astype(jnp.bfloat16)                   # (2, H, 4H)
    b = params["b"].reshape(2, 1, G4).astype(jnp.float32)        # (2, 1, 4H)

    # direction-aware time-block map: fwd walks blocks 0..NB-1, bwd NB-1..0
    def tmap(d, t):
        return t + d * (NB - 1 - 2 * t)

    in_specs = [
        pl.BlockSpec((TT, B, D), lambda d, t: (tmap(d, t), 0, 0)),
        # TODO(synk): pipeline_mode=pl.Buffered(1) on the weight specs would
        # reclaim one VMEM buffer each (they only change at the d boundary).
        pl.BlockSpec((None, D, G4), lambda d, t: (d, 0, 0)),
        pl.BlockSpec((None, H, G4), lambda d, t: (d, 0, 0)),
        pl.BlockSpec((None, 1, G4), lambda d, t: (d, 0, 0)),
    ]

    # Lane-dense direct output when the half-width H is 128-aligned: the kernel
    # writes fwd into lanes [0,H) and bwd into lanes [H,2H) of a (T,B,2H)
    # buffer -> unmasked lane-dense stores, no wrapper concat.
    direct = (H % 128 == 0)
    if direct:
        out_main_shape = jax.ShapeDtypeStruct((T, B, 2 * H), jnp.float32)
        out_main_spec = pl.BlockSpec((TT, B, H),
                                     lambda d, t: (tmap(d, t), 0, d))
    else:
        out_main_shape = jax.ShapeDtypeStruct((2, T, B, H), jnp.float32)
        out_main_spec = pl.BlockSpec((None, TT, B, H),
                                     lambda d, t: (d, tmap(d, t), 0, 0))

    out_specs = [
        out_main_spec,
        pl.BlockSpec((None, B, H), lambda d, t: (d, 0, 0)),
        pl.BlockSpec((None, B, H), lambda d, t: (d, 0, 0)),
    ]

    grid_spec = pltpu.PrefetchScalarGridSpec(
        num_scalar_prefetch=0,
        grid=(2, NB),
        in_specs=in_specs,
        out_specs=out_specs,
        scratch_shapes=[
            pltpu.VMEM((B, H), jnp.float32),   # h carry (per-core)
            pltpu.VMEM((B, H), jnp.float32),   # c carry (per-core)
        ],
    )

    # Advisory cost estimate so XLA schedules around the long serial kernel.
    flops = 2 * 2 * T * B * (D * G4 + H * G4)
    transcendentals = 2 * T * B * 5 * H
    bytes_accessed = (xt.size * 2 + w_ih.size * 2 + w_hh.size * 2 + b.size * 4
                      + 2 * T * B * H * 4 + 2 * 2 * B * H * 4)

    est_vmem = _vmem_bytes(TT, B, D, H)
    vmem_limit = None
    if est_vmem > 24 * 2**20:
        vmem_limit = min(int(est_vmem * 3 // 2), 100 * 2**20)

    out_main, h_fin, c_fin = pl.pallas_call(
        _bilstm_kernel,
        out_shape=(
            out_main_shape,
            jax.ShapeDtypeStruct((2, B, H), jnp.float32),
            jax.ShapeDtypeStruct((2, B, H), jnp.float32),
        ),
        grid_spec=grid_spec,
        compiler_params=pltpu.CompilerParams(
            # direction axis is independent (core-shards on multi-TC chips);
            # time axis is the serial recurrence.
            dimension_semantics=("parallel", "arbitrary"),
            vmem_limit_bytes=vmem_limit),
        cost_estimate=pl.CostEstimate(flops=flops,
                                      transcendentals=transcendentals,
                                      bytes_accessed=bytes_accessed),
    )(xt, w_ih, w_hh, b)

    if direct:
        output = jnp.transpose(out_main, (1, 0, 2))              # (B, T, 2H)
    else:
        output = jnp.transpose(
            jnp.concatenate([out_main[0], out_main[1]], axis=-1), (1, 0, 2))
    # TODO(synk): h/c returned as (B, 2, H) (stack along dim=1 like the module);
    # adjust if MyLSTM actually uses the PyTorch (num_directions, B, H) layout.
    h = jnp.transpose(h_fin, (1, 0, 2))
    c = jnp.transpose(c_fin, (1, 0, 2))
    return output, (h, c)


def init_bilstm_params(key, input_size, hidden_size):
    """PyTorch-style LSTM init U(-1/sqrt(H), 1/sqrt(H)), nn.LSTM weight shapes,
    converted to kernel layout (transposed, biases fused, fwd/bwd stacked)."""
    k = 1.0 / jnp.sqrt(hidden_size)

    def one(kd):
        k1, k2, k3, k4 = jax.random.split(kd, 4)
        w_ih = jax.random.uniform(k1, (4 * hidden_size, input_size), jnp.float32, -k, k)
        w_hh = jax.random.uniform(k2, (4 * hidden_size, hidden_size), jnp.float32, -k, k)
        b_ih = jax.random.uniform(k3, (4 * hidden_size,), jnp.float32, -k, k)
        b_hh = jax.random.uniform(k4, (4 * hidden_size,), jnp.float32, -k, k)
        return w_ih.T, w_hh.T, b_ih + b_hh

    kf, kb = jax.random.split(key)
    wf, wb = one(kf), one(kb)
    return {
        "w_ih": jnp.stack([wf[0], wb[0]]),
        "w_hh": jnp.stack([wf[1], wb[1]]),
        "b": jnp.stack([wf[2], wb[2]]),
    }


def reference_bilstm(x, params):
    """Pure-JAX mirror of the same math (bf16 MXU operands, f32 state)."""
    B, T, D = x.shape
    H = params["w_hh"].shape[1]
    xt = jnp.transpose(x, (1, 0, 2)).astype(jnp.bfloat16)       # (T, B, D)
    w_ih = params["w_ih"].astype(jnp.bfloat16)
    w_hh = params["w_hh"].astype(jnp.bfloat16)
    b = params["b"].astype(jnp.float32)

    def run(x_tb, wi, wh, bb):
        def step(carry, x_t):
            h, c = carry
            g = (jnp.dot(x_t, wi, preferred_element_type=jnp.float32)
                 + jnp.dot(h.astype(jnp.bfloat16), wh,
                           preferred_element_type=jnp.float32)
                 + bb)
            i = jax.nn.sigmoid(g[:, 0 * H:1 * H])
            f = jax.nn.sigmoid(g[:, 1 * H:2 * H])
            gg = jnp.tanh(g[:, 2 * H:3 * H])
            o = jax.nn.sigmoid(g[:, 3 * H:4 * H])
            c = f * c + i * gg
            h = o * jnp.tanh(c)
            return (h, c), h

        init = (jnp.zeros((B, H), jnp.float32), jnp.zeros((B, H), jnp.float32))
        (hf, cf), ys = jax.lax.scan(step, init, x_tb)
        return ys, hf, cf

    out_f, h_f, c_f = run(xt, w_ih[0], w_hh[0], b[0])
    out_b, h_b, c_b = run(xt[::-1], w_ih[1], w_hh[1], b[1])
    out_b = out_b[::-1]
    output = jnp.transpose(jnp.concatenate([out_f, out_b], axis=-1), (1, 0, 2))
    h = jnp.stack([h_f, h_b], axis=1)
    c = jnp.stack([c_f, c_b], axis=1)
    return output, (h, c)


def _check(B, T, D, H, time_block=None):
    key = jax.random.PRNGKey(0)
    kx, kp = jax.random.split(key)
    x = jax.random.normal(kx, (B, T, D), jnp.float32)
    params = init_bilstm_params(kp, D, H)

    fn = jax.jit(functools.partial(bidirectional_lstm, params=params,
                                   time_block=time_block))
    output, (h, c) = fn(x)
    jax.block_until_ready((output, h, c))

    assert output.shape == (B, T, 2 * H), output.shape
    assert h.shape == (B, 2, H), h.shape
    assert c.shape == (B, 2, H), c.shape

    ref_out, (ref_h, ref_c) = reference_bilstm(x, params)
    assert jnp.allclose(ref_out, output, atol=2e-3, rtol=2e-3), \
        float(jnp.max(jnp.abs(ref_out - output)))
    assert jnp.allclose(ref_h, h, atol=2e-3, rtol=2e-3), \
        float(jnp.max(jnp.abs(ref_h - h)))
    assert jnp.allclose(ref_c, c, atol=2e-3, rtol=2e-3), \
        float(jnp.max(jnp.abs(ref_c - c)))


if __name__ == "__main__":
    # Small shape from the module spec (H=32 -> fallback (2,T,B,H) output path).
    _check(B=2, T=8, D=16, H=32)
    # 128-aligned H -> lane-dense (T,B,2H) output path, plus multi-time-block
    # carries (TT=4, NB=2) to exercise the pl.when init/finalize logic.
    _check(B=2, T=8, D=16, H=128, time_block=4)
    print("KERNEL_OK")
</pallas_src>

<mosaic_0001>
module attributes {stable_mosaic.version = 11 : i64} {
  func.func @_bilstm_kernel(%arg0: i32, %arg1: i32, %arg2: memref<8x2x16xbf16, #tpu.memory_space<vmem>>, %arg3: memref<1x16x128xbf16, #tpu.memory_space<vmem>>, %arg4: memref<1x32x128xbf16, #tpu.memory_space<vmem>>, %arg5: memref<1x1x128xf32, #tpu.memory_space<vmem>>, %arg6: memref<1x8x2x32xf32, #tpu.memory_space<vmem>>, %arg7: memref<1x2x32xf32, #tpu.memory_space<vmem>>, %arg8: memref<1x2x32xf32, #tpu.memory_space<vmem>>, %arg9: memref<2x32xf32, #tpu.memory_space<vmem>>, %arg10: memref<2x32xf32, #tpu.memory_space<vmem>>) attributes {dimension_semantics = [#tpu.dimension_semantics<parallel>, #tpu.dimension_semantics<arbitrary>], iteration_bounds = array<i64: 2, 1>, scalar_prefetch = 0 : i64, scratch_operands = 2 : i64, tpu.core_type = #tpu.core_type<tc>, window_params = [{transform_indices = @transform_0, window_bounds = array<i64: 8, 2, 16>}, {transform_indices = @transform_1, window_bounds = array<i64: 1, 16, 128>}, {transform_indices = @transform_2, window_bounds = array<i64: 1, 32, 128>}, {transform_indices = @transform_3, window_bounds = array<i64: 1, 1, 128>}, {transform_indices = @transform_4, window_bounds = array<i64: 1, 8, 2, 32>}, {transform_indices = @transform_5, window_bounds = array<i64: 1, 2, 32>}, {transform_indices = @transform_6, window_bounds = array<i64: 1, 2, 32>}]} {
    %c0_i32 = arith.constant 0 : i32
    %0 = arith.cmpi eq, %arg1, %c0_i32 : i32
    %1 = arith.extui %0 : i1 to i32
    %c0_i32_0 = arith.constant 0 : i32
    %2 = arith.cmpi ne, %1, %c0_i32_0 : i32
    scf.if %2 {
      %cst = arith.constant 0.000000e+00 : f32
      %20 = vector.broadcast %cst : f32 to vector<2x32xf32>
      %c0_14 = arith.constant 0 : index
      %c0_15 = arith.constant 0 : index
      %21 = vector.load %arg9[%c0_14, %c0_15] : memref<2x32xf32, #tpu.memory_space<vmem>>, vector<2x32xf32>
      tpu.vector_store %arg9[%c0_14, %c0_15], %20 {strides = array<i32>} : memref<2x32xf32, #tpu.memory_space<vmem>>, vector<2x32xf32>,
      %cst_16 = arith.constant 0.000000e+00 : f32
      %22 = vector.broadcast %cst_16 : f32 to vector<2x32xf32>
      %c0_17 = arith.constant 0 : index
      %c0_18 = arith.constant 0 : index
      %23 = vector.load %arg10[%c0_17, %c0_18] : memref<2x32xf32, #tpu.memory_space<vmem>>, vector<2x32xf32>
      tpu.vector_store %arg10[%c0_17, %c0_18], %22 {strides = array<i32>} : memref<2x32xf32, #tpu.memory_space<vmem>>, vector<2x32xf32>,
    } else {
    }
    %c0 = arith.constant 0 : index
    %c0_1 = arith.constant 0 : index
    %c0_2 = arith.constant 0 : index
    %3 = vector.load %arg3[%c0, %c0_1, %c0_2] : memref<1x16x128xbf16, #tpu.memory_space<vmem>>, vector<1x16x128xbf16>
    %4 = vector.shape_cast %3 : vector<1x16x128xbf16> to vector<16x128xbf16>
    %c0_3 = arith.constant 0 : index
    %c0_4 = arith.constant 0 : index
    %c0_5 = arith.constant 0 : index
    %5 = vector.load %arg4[%c0_3, %c0_4, %c0_5] : memref<1x32x128xbf16, #tpu.memory_space<vmem>>, vector<1x32x128xbf16>
    %6 = vector.shape_cast %5 : vector<1x32x128xbf16> to vector<32x128xbf16>
    %c0_6 = arith.constant 0 : index
    %c0_7 = arith.constant 0 : index
    %c0_8 = arith.constant 0 : index
    %7 = vector.load %arg5[%c0_6, %c0_7, %c0_8] : memref<1x1x128xf32, #tpu.memory_space<vmem>>, vector<1x1x128xf32>
    %8 = vector.shape_cast %7 : vector<1x1x128xf32> to vector<1x128xf32>
    %9 = vector.shape_cast %8 : vector<1x128xf32> to vector<1x128xf32>
    %10 = vector.broadcast %9 : vector<1x128xf32> to vector<2x128xf32>
    %c0_i32_9 = arith.constant 0 : i32
    %11 = arith.cmpi eq, %arg0, %c0_i32_9 : i32
    %12 = arith.extui %11 : i1 to i32
    %c0_i32_10 = arith.constant 0 : i32
    %13 = arith.cmpi ne, %12, %c0_i32_10 : i32
    scf.if %13 {
      %c0_14 = arith.constant 0 : index
      %c0_15 = arith.constant 0 : index
      %20 = vector.load %arg9[%c0_14, %c0_15] : memref<2x32xf32, #tpu.memory_space<vmem>>, vector<2x32xf32>
      %c0_16 = arith.constant 0 : index
      %c0_17 = arith.constant 0 : index
      %21 = vector.load %arg10[%c0_16, %c0_17] : memref<2x32xf32, #tpu.memory_space<vmem>>, vector<2x32xf32>
      %c0_18 = arith.constant 0 : index
      %c0_19 = arith.constant 0 : index
      %c0_20 = arith.constant 0 : index
      %22 = vector.load %arg2[%c0_18, %c0_19, %c0_20] : memref<8x2x16xbf16, #tpu.memory_space<vmem>>, vector<1x2x16xbf16>
      %23 = vector.shape_cast %22 : vector<1x2x16xbf16> to vector<2x16xbf16>
      %cst = arith.constant dense<0.000000e+00> : vector<2x128xf32>
      %24 = tpu.matmul %23, %4, %cst {dimension_numbers = #tpu.dot_dimension_numbers<[1], [0], [0], [1], [0, 0, 1, 1], [], []>} : vector<2x16xbf16>, vector<16x128xbf16>, vector<2x128xf32> -> vector<2x128xf32>
      %25 = arith.truncf %20 : vector<2x32xf32> to vector<2x32xbf16>
      %cst_21 = arith.constant dense<0.000000e+00> : vector<2x128xf32>
      %26 = tpu.matmul %25, %6, %cst_21 {dimension_numbers = #tpu.dot_dimension_numbers<[1], [0], [0], [1], [0, 0, 1, 1], [], []>} : vector<2x32xbf16>, vector<32x128xbf16>, vector<2x128xf32> -> vector<2x128xf32>
      %27 = arith.addf %24, %26 : vector<2x128xf32>
      %28 = arith.addf %27, %10 : vector<2x128xf32>
      %29 = vector.extract_strided_slice %28 {offsets = [0, 0], sizes = [2, 32], strides = [1, 1]} : vector<2x128xf32> to vector<2x32xf32>
      %30 = arith.negf %29 : vector<2x32xf32>
      %31 = math.exp %30 : vector<2x32xf32>
      %cst_22 = arith.constant 1.000000e+00 : f32
      %32 = vector.broadcast %cst_22 : f32 to vector<2x32xf32>
      %33 = arith.addf %32, %31 : vector<2x32xf32>
      %34 = arith.divf %32, %33 : vector<2x32xf32>
      %35 = vector.extract_strided_slice %28 {offsets = [0, 32], sizes = [2, 32], strides = [1, 1]} : vector<2x128xf32> to vector<2x32xf32>
      %36 = arith.negf %35 : vector<2x32xf32>
      %37 = math.exp %36 : vector<2x32xf32>
      %cst_23 = arith.constant 1.000000e+00 : f32
      %38 = vector.broadcast %cst_23 : f32 to vector<2x32xf32>
      %39 = arith.addf %38, %37 : vector<2x32xf32>
      %40 = arith.divf %38, %39 : vector<2x32xf32>
      %41 = vector.extract_strided_slice %28 {offsets = [0, 64], sizes = [2, 32], strides = [1, 1]} : vector<2x128xf32> to vector<2x32xf32>
      %42 = math.tanh %41 : vector<2x32xf32>
      %43 = vector.extract_strided_slice %28 {offsets = [0, 96], sizes = [2, 32], strides = [1, 1]} : vector<2x128xf32> to vector<2x32xf32>
      %44 = arith.negf %43 : vector<2x32xf32>
      %45 = math.exp %44 : vector<2x32xf32>
      %cst_24 = arith.constant 1.000000e+00 : f32
      %46 = vector.broadcast %cst_24 : f32 to vector<2x32xf32>
      %47 = arith.addf %46, %45 : vector<2x32xf32>
      %48 = arith.divf %46, %47 : vector<2x32xf32>
      %49 = arith.mulf %40, %21 : vector<2x32xf32>
      %50 = arith.mulf %34, %42 : vector<2x32xf32>
      %51 = arith.addf %49, %50 : vector<2x32xf32>
      %52 = math.tanh %51 : vector<2x32xf32>
      %53 = arith.mulf %48, %52 : vector<2x32xf32>
      %c0_25 = arith.constant 0 : index
      %c0_26 = arith.constant 0 : index
      %c0_27 = arith.constant 0 : index
      %c0_28 = arith.constant 0 : index
      %54 = vector.load %arg6[%c0_25, %c0_26, %c0_27, %c0_28] : memref<1x8x2x32xf32, #tpu.memory_space<vmem>>, vector<1x1x2x32xf32>
      %55 = vector.shape_cast %54 : vector<1x1x2x32xf32> to vector<2x32xf32>
      %56 = vector.shape_cast %53 : vector<2x32xf32> to vector<1x1x2x32xf32>
      tpu.vector_store %arg6[%c0_25, %c0_26, %c0_27, %c0_28], %56 {strides = array<i32>} : memref<1x8x2x32xf32, #tpu.memory_space<vmem>>, vector<1x1x2x32xf32>,
      %c1 = arith.constant 1 : index
      %c0_29 = arith.constant 0 : index
      %c0_30 = arith.constant 0 : index
      %57 = vector.load %arg2[%c1, %c0_29, %c0_30] : memref<8x2x16xbf16, #tpu.memory_space<vmem>>, vector<1x2x16xbf16>
      %58 = vector.shape_cast %57 : vector<1x2x16xbf16> to vector<2x16xbf16>
      %cst_31 = arith.constant dense<0.000000e+00> : vector<2x128xf32>
      %59 = tpu.matmul %58, %4, %cst_31 {dimension_numbers = #tpu.dot_dimension_numbers<[1], [0], [0], [1], [0, 0, 1, 1], [], []>} : vector<2x16xbf16>, vector<16x128xbf16>, vector<2x128xf32> -> vector<2x128xf32>
      %60 = arith.truncf %53 : vector<2x32xf32> to vector<2x32xbf16>
      %cst_32 = arith.constant dense<0.000000e+00> : vector<2x128xf32>
      %61 = tpu.matmul %60, %6, %cst_32 {dimension_numbers = #tpu.dot_dimension_numbers<[1], [0], [0], [1], [0, 0, 1, 1], [], []>} : vector<2x32xbf16>, vector<32x128xbf16>, vector<2x128xf32> -> vector<2x128xf32>
      %62 = arith.addf %59, %61 : vector<2x128xf32>
      %63 = arith.addf %62, %10 : vector<2x128xf32>
      %64 = vector.extract_strided_slice %63 {offsets = [0, 0], sizes = [2, 32], strides = [1, 1]} : vector<2x128xf32> to vector<2x32xf32>
      %65 = arith.negf %64 : vector<2x32xf32>
      %66 = math.exp %65 : vector<2x32xf32>
      %cst_33 = arith.constant 1.000000e+00 : f32
      %67 = vector.broadcast %cst_33 : f32 to vector<2x32xf32>
      %68 = arith.addf %67, %66 : vector<2x32xf32>
      %69 = arith.divf %67, %68 : vector<2x32xf32>
      %70 = vector.extract_strided_slice %63 {offsets = [0, 32], sizes = [2, 32], strides = [1, 1]} : vector<2x128xf32> to vector<2x32xf32>
      %71 = arith.negf %70 : vector<2x32xf32>
      %72 = math.exp %71 : vector<2x32xf32>
      %cst_34 = arith.constant 1.000000e+00 : f32
      %73 = vector.broadcast %cst_34 : f32 to vector<2x32xf32>
      %74 = arith.addf %73, %72 : vector<2x32xf32>
      %75 = arith.divf %73, %74 : vector<2x32xf32>
      %76 = vector.extract_strided_slice %63 {offsets = [0, 64], sizes = [2, 32], strides = [1, 1]} : vector<2x128xf32> to vector<2x32xf32>
      %77 = math.tanh %76 : vector<2x32xf32>
      %78 = vector.extract_strided_slice %63 {offsets = [0, 96], sizes = [2, 32], strides = [1, 1]} : vector<2x128xf32> to vector<2x32xf32>
      %79 = arith.negf %78 : vector<2x32xf32>
      %80 = math.exp %79 : vector<2x32xf32>
      %cst_35 = arith.constant 1.000000e+00 : f32
      %81 = vector.broadcast %cst_35 : f32 to vector<2x32xf32>
      %82 = arith.addf %81, %80 : vector<2x32xf32>
      %83 = arith.divf %81, %82 : vector<2x32xf32>
      %84 = arith.mulf %75, %51 : vector<2x32xf32>
      %85 = arith.mulf %69, %77 : vector<2x32xf32>
      %86 = arith.addf %84, %85 : vector<2x32xf32>
      %87 = math.tanh %86 : vector<2x32xf32>
      %88 = arith.mulf %83, %87 : vector<2x32xf32>
      %c0_36 = arith.constant 0 : index
      %c1_37 = arith.constant 1 : index
      %c0_38 = arith.constant 0 : index
      %c0_39 = arith.constant 0 : index
      %89 = vector.load %arg6[%c0_36, %c1_37, %c0_38, %c0_39] : memref<1x8x2x32xf32, #tpu.memory_space<vmem>>, vector<1x1x2x32xf32>
      %90 = vector.shape_cast %89 : vector<1x1x2x32xf32> to vector<2x32xf32>
      %91 = vector.shape_cast %88 : vector<2x32xf32> to vector<1x1x2x32xf32>
      tpu.vector_store %arg6[%c0_36, %c1_37, %c0_38, %c0_39], %91 {strides = array<i32>} : memref<1x8x2x32xf32, #tpu.memory_space<vmem>>, vector<1x1x2x32xf32>,
      %c2 = arith.constant 2 : index
      %c0_40 = arith.constant 0 : index
      %c0_41 = arith.constant 0 : index
      %92 = vector.load %arg2[%c2, %c0_40, %c0_41] : memref<8x2x16xbf16, #tpu.memory_space<vmem>>, vector<1x2x16xbf16>
      %93 = vector.shape_cast %92 : vector<1x2x16xbf16> to vector<2x16xbf16>
      %cst_42 = arith.constant dense<0.000000e+00> : vector<2x128xf32>
      %94 = tpu.matmul %93, %4, %cst_42 {dimension_numbers = #tpu.dot_dimension_numbers<[1], [0], [0], [1], [0, 0, 1, 1], [], []>} : vector<2x16xbf16>, vector<16x128xbf16>, vector<2x128xf32> -> vector<2x128xf32>
      %95 = arith.truncf %88 : vector<2x32xf32> to vector<2x32xbf16>
      %cst_43 = arith.constant dense<0.000000e+00> : vector<2x128xf32>
      %96 = tpu.matmul %95, %6, %cst_43 {dimension_numbers = #tpu.dot_dimension_numbers<[1], [0], [0], [1], [0, 0, 1, 1], [], []>} : vector<2x32xbf16>, vector<32x128xbf16>, vector<2x128xf32> -> vector<2x128xf32>
      %97 = arith.addf %94, %96 : vector<2x128xf32>
      %98 = arith.addf %97, %10 : vector<2x128xf32>
      %99 = vector.extract_strided_slice %98 {offsets = [0, 0], sizes = [2, 32], strides = [1, 1]} : vector<2x128xf32> to vector<2x32xf32>
      %100 = arith.negf %99 : vector<2x32xf32>
      %101 = math.exp %100 : vector<2x32xf32>
      %cst_44 = arith.constant 1.000000e+00 : f32
      %102 = vector.broadcast %cst_44 : f32 to vector<2x32xf32>
      %103 = arith.addf %102, %101 : vector<2x32xf32>
      %104 = arith.divf %102, %103 : vector<2x32xf32>
      %105 = vector.extract_strided_slice %98 {offsets = [0, 32], sizes = [2, 32], strides = [1, 1]} : vector<2x128xf32> to vector<2x32xf32>
      %106 = arith.negf %105 : vector<2x32xf32>
      %107 = math.exp %106 : vector<2x32xf32>
      %cst_45 = arith.constant 1.000000e+00 : f32
      %108 = vector.broadcast %cst_45 : f32 to vector<2x32xf32>
      %109 = arith.addf %108, %107 : vector<2x32xf32>
      %110 = arith.divf %108, %109 : vector<2x32xf32>
      %111 = vector.extract_strided_slice %98 {offsets = [0, 64], sizes = [2, 32], strides = [1, 1]} : vector<2x128xf32> to vector<2x32xf32>
      %112 = math.tanh %111 : vector<2x32xf32>
      %113 = vector.extract_strided_slice %98 {offsets = [0, 96], sizes = [2, 32], strides = [1, 1]} : vector<2x128xf32> to vector<2x32xf32>
      %114 = arith.negf %113 : vector<2x32xf32>
      %115 = math.exp %114 : vector<2x32xf32>
      %cst_46 = arith.constant 1.000000e+00 : f32
      %116 = vector.broadcast %cst_46 : f32 to vector<2x32xf32>
      %117 = arith.addf %116, %115 : vector<2x32xf32>
      %118 = arith.divf %116, %117 : vector<2x32xf32>
      %119 = arith.mulf %110, %86 : vector<2x32xf32>
      %120 = arith.mulf %104, %112 : vector<2x32xf32>
      %121 = arith.addf %119, %120 : vector<2x32xf32>
      %122 = math.tanh %121 : vector<2x32xf32>
      %123 = arith.mulf %118, %122 : vector<2x32xf32>
      %c0_47 = arith.constant 0 : index
      %c2_48 = arith.constant 2 : index
      %c0_49 = arith.constant 0 : index
      %c0_50 = arith.constant 0 : index
      %124 = vector.load %arg6[%c0_47, %c2_48, %c0_49, %c0_50] : memref<1x8x2x32xf32, #tpu.memory_space<vmem>>, vector<1x1x2x32xf32>
      %125 = vector.shape_cast %124 : vector<1x1x2x32xf32> to vector<2x32xf32>
      %126 = vector.shape_cast %123 : vector<2x32xf32> to vector<1x1x2x32xf32>
      tpu.vector_store %arg6[%c0_47, %c2_48, %c0_49, %c0_50], %126 {strides = array<i32>} : memref<1x8x2x32xf32, #tpu.memory_space<vmem>>, vector<1x1x2x32xf32>,
      %c3 = arith.constant 3 : index
      %c0_51 = arith.constant 0 : index
      %c0_52 = arith.constant 0 : index
      %127 = vector.load %arg2[%c3, %c0_51, %c0_52] : memref<8x2x16xbf16, #tpu.memory_space<vmem>>, vector<1x2x16xbf16>
      %128 = vector.shape_cast %127 : vector<1x2x16xbf16> to vector<2x16xbf16>
      %cst_53 = arith.constant dense<0.000000e+00> : vector<2x128xf32>
      %129 = tpu.matmul %128, %4, %cst_53 {dimension_numbers = #tpu.dot_dimension_numbers<[1], [0], [0], [1], [0, 0, 1, 1], [], []>} : vector<2x16xbf16>, vector<16x128xbf16>, vector<2x128xf32> -> vector<2x128xf32>
      %130 = arith.truncf %123 : vector<2x32xf32> to vector<2x32xbf16>
      %cst_54 = arith.constant dense<0.000000e+00> : vector<2x128xf32>
      %131 = tpu.matmul %130, %6, %cst_54 {dimension_numbers = #tpu.dot_dimension_numbers<[1], [0], [0], [1], [0, 0, 1, 1], [], []>} : vector<2x32xbf16>, vector<32x128xbf16>, vector<2x128xf32> -> vector<2x128xf32>
      %132 = arith.addf %129, %131 : vector<2x128xf32>
      %133 = arith.addf %132, %10 : vector<2x128xf32>
      %134 = vector.extract_strided_slice %133 {offsets = [0, 0], sizes = [2, 32], strides = [1, 1]} : vector<2x128xf32> to vector<2x32xf32>
      %135 = arith.negf %134 : vector<2x32xf32>
      %136 = math.exp %135 : vector<2x32xf32>
      %cst_55 = arith.constant 1.000000e+00 : f32
      %137 = vector.broadcast %cst_55 : f32 to vector<2x32xf32>
      %138 = arith.addf %137, %136 : vector<2x32xf32>
      %139 = arith.divf %137, %138 : vector<2x32xf32>
      %140 = vector.extract_strided_slice %133 {offsets = [0, 32], sizes = [2, 32], strides = [1, 1]} : vector<2x128xf32> to vector<2x32xf32>
      %141 = arith.negf %140 : vector<2x32xf32>
      %142 = math.exp %141 : vector<2x32xf32>
      %cst_56 = arith.constant 1.000000e+00 : f32
      %143 = vector.broadcast %cst_56 : f32 to vector<2x32xf32>
      %144 = arith.addf %143, %142 : vector<2x32xf32>
      %145 = arith.divf %143, %144 : vector<2x32xf32>
      %146 = vector.extract_strided_slice %133 {offsets = [0, 64], sizes = [2, 32], strides = [1, 1]} : vector<2x128xf32> to vector<2x32xf32>
      %147 = math.tanh %146 : vector<2x32xf32>
      %148 = vector.extract_strided_slice %133 {offsets = [0, 96], sizes = [2, 32], strides = [1, 1]} : vector<2x128xf32> to vector<2x32xf32>
      %149 = arith.negf %148 : vector<2x32xf32>
      %150 = math.exp %149 : vector<2x32xf32>
      %cst_57 = arith.constant 1.000000e+00 : f32
      %151 = vector.broadcast %cst_57 : f32 to vector<2x32xf32>
      %152 = arith.addf %151, %150 : vector<2x32xf32>
      %153 = arith.divf %151, %152 : vector<2x32xf32>
      %154 = arith.mulf %145, %121 : vector<2x32xf32>
      %155 = arith.mulf %139, %147 : vector<2x32xf32>
      %156 = arith.addf %154, %155 : vector<2x32xf32>
      %157 = math.tanh %156 : vector<2x32xf32>
      %158 = arith.mulf %153, %157 : vector<2x32xf32>
      %c0_58 = arith.constant 0 : index
      %c3_59 = arith.constant 3 : index
      %c0_60 = arith.constant 0 : index
      %c0_61 = arith.constant 0 : index
      %159 = vector.load %arg6[%c0_58, %c3_59, %c0_60, %c0_61] : memref<1x8x2x32xf32, #tpu.memory_space<vmem>>, vector<1x1x2x32xf32>
      %160 = vector.shape_cast %159 : vector<1x1x2x32xf32> to vector<2x32xf32>
      %161 = vector.shape_cast %158 : vector<2x32xf32> to vector<1x1x2x32xf32>
      tpu.vector_store %arg6[%c0_58, %c3_59, %c0_60, %c0_61], %161 {strides = array<i32>} : memref<1x8x2x32xf32, #tpu.memory_space<vmem>>, vector<1x1x2x32xf32>,
      %c4 = arith.constant 4 : index
      %c0_62 = arith.constant 0 : index
      %c0_63 = arith.constant 0 : index
      %162 = vector.load %arg2[%c4, %c0_62, %c0_63] : memref<8x2x16xbf16, #tpu.memory_space<vmem>>, vector<1x2x16xbf16>
      %163 = vector.shape_cast %162 : vector<1x2x16xbf16> to vector<2x16xbf16>
      %cst_64 = arith.constant dense<0.000000e+00> : vector<2x128xf32>
      %164 = tpu.matmul %163, %4, %cst_64 {dimension_numbers = #tpu.dot_dimension_numbers<[1], [0], [0], [1], [0, 0, 1, 1], [], []>} : vector<2x16xbf16>, vector<16x128xbf16>, vector<2x128xf32> -> vector<2x128xf32>
      %165 = arith.truncf %158 : vector<2x32xf32> to vector<2x32xbf16>
      %cst_65 = arith.constant dense<0.000000e+00> : vector<2x128xf32>
      %166 = tpu.matmul %165, %6, %cst_65 {dimension_numbers = #tpu.dot_dimension_numbers<[1], [0], [0], [1], [0, 0, 1, 1], [], []>} : vector<2x32xbf16>, vector<32x128xbf16>, vector<2x128xf32> -> vector<2x128xf32>
      %167 = arith.addf %164, %166 : vector<2x128xf32>
      %168 = arith.addf %167, %10 : vector<2x128xf32>
      %169 = vector.extract_strided_slice %168 {offsets = [0, 0], sizes = [2, 32], strides = [1, 1]} : vector<2x128xf32> to vector<2x32xf32>
      %170 = arith.negf %169 : vector<2x32xf32>
      %171 = math.exp %170 : vector<2x32xf32>
      %cst_66 = arith.constant 1.000000e+00 : f32
      %172 = vector.broadcast %cst_66 : f32 to vector<2x32xf32>
      %173 = arith.addf %172, %171 : vector<2x32xf32>
      %174 = arith.divf %172, %173 : vector<2x32xf32>
      %175 = vector.extract_strided_slice %168 {offsets = [0, 32], sizes = [2, 32], strides = [1, 1]} : vector<2x128xf32> to vector<2x32xf32>
      %176 = arith.negf %175 : vector<2x32xf32>
      %177 = math.exp %176 : vector<2x32xf32>
      %cst_67 = arith.constant 1.000000e+00 : f32
      %178 = vector.broadcast %cst_67 : f32 to vector<2x32xf32>
      %179 = arith.addf %178, %177 : vector<2x32xf32>
      %180 = arith.divf %178, %179 : vector<2x32xf32>
      %181 = vector.extract_strided_slice %168 {offsets = [0, 64], sizes = [2, 32], strides = [1, 1]} : vector<2x128xf32> to vector<2x32xf32>
      %182 = math.tanh %181 : vector<2x32xf32>
      %183 = vector.extract_strided_slice %168 {offsets = [0, 96], sizes = [2, 32], strides = [1, 1]} : vector<2x128xf32> to vector<2x32xf32>
      %184 = arith.negf %183 : vector<2x32xf32>
      %185 = math.exp %184 : vector<2x32xf32>
      %cst_68 = arith.constant 1.000000e+00 : f32
      %186 = vector.broadcast %cst_68 : f32 to vector<2x32xf32>
      %187 = arith.addf %186, %185 : vector<2x32xf32>
      %188 = arith.divf %186, %187 : vector<2x32xf32>
      %189 = arith.mulf %180, %156 : vector<2x32xf32>
      %190 = arith.mulf %174, %182 : vector<2x32xf32>
      %191 = arith.addf %189, %190 : vector<2x32xf32>
      %192 = math.tanh %191 : vector<2x32xf32>
      %193 = arith.mulf %188, %192 : vector<2x32xf32>
      %c0_69 = arith.constant 0 : index
      %c4_70 = arith.constant 4 : index
      %c0_71 = arith.constant 0 : index
      %c0_72 = arith.constant 0 : index
      %194 = vector.load %arg6[%c0_69, %c4_70, %c0_71, %c0_72] : memref<1x8x2x32xf32, #tpu.memory_space<vmem>>, vector<1x1x2x32xf32>
      %195 = vector.shape_cast %194 : vector<1x1x2x32xf32> to vector<2x32xf32>
      %196 = vector.shape_cast %193 : vector<2x32xf32> to vector<1x1x2x32xf32>
      tpu.vector_store %arg6[%c0_69, %c4_70, %c0_71, %c0_72], %196 {strides = array<i32>} : memref<1x8x2x32xf32, #tpu.memory_space<vmem>>, vector<1x1x2x32xf32>,
      %c5 = arith.constant 5 : index
      %c0_73 = arith.constant 0 : index
      %c0_74 = arith.constant 0 : index
      %197 = vector.load %arg2[%c5, %c0_73, %c0_74] : memref<8x2x16xbf16, #tpu.memory_space<vmem>>, vector<1x2x16xbf16>
      %198 = vector.shape_cast %197 : vector<1x2x16xbf16> to vector<2x16xbf16>
      %cst_75 = arith.constant dense<0.000000e+00> : vector<2x128xf32>
      %199 = tpu.matmul %198, %4, %cst_75 {dimension_numbers = #tpu.dot_dimension_numbers<[1], [0], [0], [1], [0, 0, 1, 1], [], []>} : vector<2x16xbf16>, vector<16x128xbf16>, vector<2x128xf32> -> vector<2x128xf32>
      %200 = arith.truncf %193 : vector<2x32xf32> to vector<2x32xbf16>
      %cst_76 = arith.constant dense<0.000000e+00> : vector<2x128xf32>
      %201 = tpu.matmul %200, %6, %cst_76 {dimension_numbers = #tpu.dot_dimension_numbers<[1], [0], [0], [1], [0, 0, 1, 1], [], []>} : vector<2x32xbf16>, vector<32x128xbf16>, vector<2x128xf32> -> vector<2x128xf32>
      %202 = arith.addf %199, %201 : vector<2x128xf32>
      %203 = arith.addf %202, %10 : vector<2x128xf32>
      %204 = vector.extract_strided_slice %203 {offsets = [0, 0], sizes = [2, 32], strides = [1, 1]} : vector<2x128xf32> to vector<2x32xf32>
      %205 = arith.negf %204 : vector<2x32xf32>
      %206 = math.exp %205 : vector<2x32xf32>
      %cst_77 = arith.constant 1.000000e+00 : f32
      %207 = vector.broadcast %cst_77 : f32 to vector<2x32xf32>
      %208 = arith.addf %207, %206 : vector<2x32xf32>
      %209 = arith.divf %207, %208 : vector<2x32xf32>
      %210 = vector.extract_strided_slice %203 {offsets = [0, 32], sizes = [2, 32], strides = [1, 1]} : vector<2x128xf32> to vector<2x32xf32>
      %211 = arith.negf %210 : vector<2x32xf32>
      %212 = math.exp %211 : vector<2x32xf32>
      %cst_78 = arith.constant 1.000000e+00 : f32
      %213 = vector.broadcast %cst_78 : f32 to vector<2x32xf32>
      %214 = arith.addf %213, %212 : vector<2x32xf32>
      %215 = arith.divf %213, %214 : vector<2x32xf32>
      %216 = vector.extract_strided_slice %203 {offsets = [0, 64], sizes = [2, 32], strides = [1, 1]} : vector<2x128xf32> to vector<2x32xf32>
      %217 = math.tanh %216 : vector<2x32xf32>
      %218 = vector.extract_strided_slice %203 {offsets = [0, 96], sizes = [2, 32], strides = [1, 1]} : vector<2x128xf32> to vector<2x32xf32>
      %219 = arith.negf %218 : vector<2x32xf32>
      %220 = math.exp %219 : vector<2x32xf32>
      %cst_79 = arith.constant 1.000000e+00 : f32
      %221 = vector.broadcast %cst_79 : f32 to vector<2x32xf32>
      %222 = arith.addf %221, %220 : vector<2x32xf32>
      %223 = arith.divf %221, %222 : vector<2x32xf32>
      %224 = arith.mulf %215, %191 : vector<2x32xf32>
      %225 = arith.mulf %209, %217 : vector<2x32xf32>
      %226 = arith.addf %224, %225 : vector<2x32xf32>
      %227 = math.tanh %226 : vector<2x32xf32>
      %228 = arith.mulf %223, %227 : vector<2x32xf32>
      %c0_80 = arith.constant 0 : index
      %c5_81 = arith.constant 5 : index
      %c0_82 = arith.constant 0 : index
      %c0_83 = arith.constant 0 : index
      %229 = vector.load %arg6[%c0_80, %c5_81, %c0_82, %c0_83] : memref<1x8x2x32xf32, #tpu.memory_space<vmem>>, vector<1x1x2x32xf32>
      %230 = vector.shape_cast %229 : vector<1x1x2x32xf32> to vector<2x32xf32>
      %231 = vector.shape_cast %228 : vector<2x32xf32> to vector<1x1x2x32xf32>
      tpu.vector_store %arg6[%c0_80, %c5_81, %c0_82, %c0_83], %231 {strides = array<i32>} : memref<1x8x2x32xf32, #tpu.memory_space<vmem>>, vector<1x1x2x32xf32>,
      %c6 = arith.constant 6 : index
      %c0_84 = arith.constant 0 : index
      %c0_85 = arith.constant 0 : index
      %232 = vector.load %arg2[%c6, %c0_84, %c0_85] : memref<8x2x16xbf16, #tpu.memory_space<vmem>>, vector<1x2x16xbf16>
      %233 = vector.shape_cast %232 : vector<1x2x16xbf16> to vector<2x16xbf16>
      %cst_86 = arith.constant dense<0.000000e+00> : vector<2x128xf32>
      %234 = tpu.matmul %233, %4, %cst_86 {dimension_numbers = #tpu.dot_dimension_numbers<[1], [0], [0], [1], [0, 0, 1, 1], [], []>} : vector<2x16xbf16>, vector<16x128xbf16>, vector<2x128xf32> -> vector<2x128xf32>
      %235 = arith.truncf %228 : vector<2x32xf32> to vector<2x32xbf16>
      %cst_87 = arith.constant dense<0.000000e+00> : vector<2x128xf32>
      %236 = tpu.matmul %235, %6, %cst_87 {dimension_numbers = #tpu.dot_dimension_numbers<[1], [0], [0], [1], [0, 0, 1, 1], [], []>} : vector<2x32xbf16>, vector<32x128xbf16>, vector<2x128xf32> -> vector<2x128xf32>
      %237 = arith.addf %234, %236 : vector<2x128xf32>
      %238 = arith.addf %237, %10 : vector<2x128xf32>
      %239 = vector.extract_strided_slice %238 {offsets = [0, 0], sizes = [2, 32], strides = [1, 1]} : vector<2x128xf32> to vector<2x32xf32>
      %240 = arith.negf %239 : vector<2x32xf32>
      %241 = math.exp %240 : vector<2x32xf32>
      %cst_88 = arith.constant 1.000000e+00 : f32
      %242 = vector.broadcast %cst_88 : f32 to vector<2x32xf32>
      %243 = arith.addf %242, %241 : vector<2x32xf32>
      %244 = arith.divf %242, %243 : vector<2x32xf32>
      %245 = vector.extract_strided_slice %238 {offsets = [0, 32], sizes = [2, 32], strides = [1, 1]} : vector<2x128xf32> to vector<2x32xf32>
      %246 = arith.negf %245 : vector<2x32xf32>
      %247 = math.exp %246 : vector<2x32xf32>
      %cst_89 = arith.constant 1.000000e+00 : f32
      %248 = vector.broadcast %cst_89 : f32 to vector<2x32xf32>
      %249 = arith.addf %248, %247 : vector<2x32xf32>
      %250 = arith.divf %248, %249 : vector<2x32xf32>
      %251 = vector.extract_strided_slice %238 {offsets = [0, 64], sizes = [2, 32], strides = [1, 1]} : vector<2x128xf32> to vector<2x32xf32>
      %252 = math.tanh %251 : vector<2x32xf32>
      %253 = vector.extract_strided_slice %238 {offsets = [0, 96], sizes = [2, 32], strides = [1, 1]} : vector<2x128xf32> to vector<2x32xf32>
      %254 = arith.negf %253 : vector<2x32xf32>
      %255 = math.exp %254 : vector<2x32xf32>
      %cst_90 = arith.constant 1.000000e+00 : f32
      %256 = vector.broadcast %cst_90 : f32 to vector<2x32xf32>
      %257 = arith.addf %256, %255 : vector<2x32xf32>
      %258 = arith.divf %256, %257 : vector<2x32xf32>
      %259 = arith.mulf %250, %226 : vector<2x32xf32>
      %260 = arith.mulf %244, %252 : vector<2x32xf32>
      %261 = arith.addf %259, %260 : vector<2x32xf32>
      %262 = math.tanh %261 : vector<2x32xf32>
      %263 = arith.mulf %258, %262 : vector<2x32xf32>
      %c0_91 = arith.constant 0 : index
      %c6_92 = arith.constant 6 : index
      %c0_93 = arith.constant 0 : index
      %c0_94 = arith.constant 0 : index
      %264 = vector.load %arg6[%c0_91, %c6_92, %c0_93, %c0_94] : memref<1x8x2x32xf32, #tpu.memory_space<vmem>>, vector<1x1x2x32xf32>
      %265 = vector.shape_cast %264 : vector<1x1x2x32xf32> to vector<2x32xf32>
      %266 = vector.shape_cast %263 : vector<2x32xf32> to vector<1x1x2x32xf32>
      tpu.vector_store %arg6[%c0_91, %c6_92, %c0_93, %c0_94], %266 {strides = array<i32>} : memref<1x8x2x32xf32, #tpu.memory_space<vmem>>, vector<1x1x2x32xf32>,
      %c7 = arith.constant 7 : index
      %c0_95 = arith.constant 0 : index
      %c0_96 = arith.constant 0 : index
      %267 = vector.load %arg2[%c7, %c0_95, %c0_96] : memref<8x2x16xbf16, #tpu.memory_space<vmem>>, vector<1x2x16xbf16>
      %268 = vector.shape_cast %267 : vector<1x2x16xbf16> to vector<2x16xbf16>
      %cst_97 = arith.constant dense<0.000000e+00> : vector<2x128xf32>
      %269 = tpu.matmul %268, %4, %cst_97 {dimension_numbers = #tpu.dot_dimension_numbers<[1], [0], [0], [1], [0, 0, 1, 1], [], []>} : vector<2x16xbf16>, vector<16x128xbf16>, vector<2x128xf32> -> vector<2x128xf32>
      %270 = arith.truncf %263 : vector<2x32xf32> to vector<2x32xbf16>
      %cst_98 = arith.constant dense<0.000000e+00> : vector<2x128xf32>
      %271 = tpu.matmul %270, %6, %cst_98 {dimension_numbers = #tpu.dot_dimension_numbers<[1], [0], [0], [1], [0, 0, 1, 1], [], []>} : vector<2x32xbf16>, vector<32x128xbf16>, vector<2x128xf32> -> vector<2x128xf32>
      %272 = arith.addf %269, %271 : vector<2x128xf32>
      %273 = arith.addf %272, %10 : vector<2x128xf32>
      %274 = vector.extract_strided_slice %273 {offsets = [0, 0], sizes = [2, 32], strides = [1, 1]} : vector<2x128xf32> to vector<2x32xf32>
      %275 = arith.negf %274 : vector<2x32xf32>
      %276 = math.exp %275 : vector<2x32xf32>
      %cst_99 = arith.constant 1.000000e+00 : f32
      %277 = vector.broadcast %cst_99 : f32 to vector<2x32xf32>
      %278 = arith.addf %277, %276 : vector<2x32xf32>
      %279 = arith.divf %277, %278 : vector<2x32xf32>
      %280 = vector.extract_strided_slice %273 {offsets = [0, 32], sizes = [2, 32], strides = [1, 1]} : vector<2x128xf32> to vector<2x32xf32>
      %281 = arith.negf %280 : vector<2x32xf32>
      %282 = math.exp %281 : vector<2x32xf32>
      %cst_100 = arith.constant 1.000000e+00 : f32
      %283 = vector.broadcast %cst_100 : f32 to vector<2x32xf32>
      %284 = arith.addf %283, %282 : vector<2x32xf32>
      %285 = arith.divf %283, %284 : vector<2x32xf32>
      %286 = vector.extract_strided_slice %273 {offsets = [0, 64], sizes = [2, 32], strides = [1, 1]} : vector<2x128xf32> to vector<2x32xf32>
      %287 = math.tanh %286 : vector<2x32xf32>
      %288 = vector.extract_strided_slice %273 {offsets = [0, 96], sizes = [2, 32], strides = [1, 1]} : vector<2x128xf32> to vector<2x32xf32>
      %289 = arith.negf %288 : vector<2x32xf32>
      %290 = math.exp %289 : vector<2x32xf32>
      %cst_101 = arith.constant 1.000000e+00 : f32
      %291 = vector.broadcast %cst_101 : f32 to vector<2x32xf32>
      %292 = arith.addf %291, %290 : vector<2x32xf32>
      %293 = arith.divf %291, %292 : vector<2x32xf32>
      %294 = arith.mulf %285, %261 : vector<2x32xf32>
      %295 = arith.mulf %279, %287 : vector<2x32xf32>
      %296 = arith.addf %294, %295 : vector<2x32xf32>
      %297 = math.tanh %296 : vector<2x32xf32>
      %298 = arith.mulf %293, %297 : vector<2x32xf32>
      %c0_102 = arith.constant 0 : index
      %c7_103 = arith.constant 7 : index
      %c0_104 = arith.constant 0 : index
      %c0_105 = arith.constant 0 : index
      %299 = vector.load %arg6[%c0_102, %c7_103, %c0_104, %c0_105] : memref<1x8x2x32xf32, #tpu.memory_space<vmem>>, vector<1x1x2x32xf32>
      %300 = vector.shape_cast %299 : vector<1x1x2x32xf32> to vector<2x32xf32>
      %301 = vector.shape_cast %298 : vector<2x32xf32> to vector<1x1x2x32xf32>
      tpu.vector_store %arg6[%c0_102, %c7_103, %c0_104, %c0_105], %301 {strides = array<i32>} : memref<1x8x2x32xf32, #tpu.memory_space<vmem>>, vector<1x1x2x32xf32>,
      %c0_106 = arith.constant 0 : index
      %c0_107 = arith.constant 0 : index
      %302 = vector.load %arg9[%c0_106, %c0_107] : memref<2x32xf32, #tpu.memory_space<vmem>>, vector<2x32xf32>
      tpu.vector_store %arg9[%c0_106, %c0_107], %298 {strides = array<i32>} : memref<2x32xf32, #tpu.memory_space<vmem>>, vector<2x32xf32>,
      %c0_108 = arith.constant 0 : index
      %c0_109 = arith.constant 0 : index
      %303 = vector.load %arg10[%c0_108, %c0_109] : memref<2x32xf32, #tpu.memory_space<vmem>>, vector<2x32xf32>
      tpu.vector_store %arg10[%c0_108, %c0_109], %296 {strides = array<i32>} : memref<2x32xf32, #tpu.memory_space<vmem>>, vector<2x32xf32>,
    } else {
    }
    %c1_i32 = arith.constant 1 : i32
    %14 = arith.cmpi eq, %arg0, %c1_i32 : i32
    %15 = arith.extui %14 : i1 to i32
    %c0_i32_11 = arith.constant 0 : i32
    %16 = arith.cmpi ne, %15, %c0_i32_11 : i32
    scf.if %16 {
      %c0_14 = arith.constant 0 : index
      %c0_15 = arith.constant 0 : index
      %20 = vector.load %arg9[%c0_14, %c0_15] : memref<2x32xf32, #tpu.memory_space<vmem>>, vector<2x32xf32>
      %c0_16 = arith.constant 0 : index
      %c0_17 = arith.constant 0 : index
      %21 = vector.load %arg10[%c0_16, %c0_17] : memref<2x32xf32, #tpu.memory_space<vmem>>, vector<2x32xf32>
      %c7 = arith.constant 7 : index
      %c0_18 = arith.constant 0 : index
      %c0_19 = arith.constant 0 : index
      %22 = vector.load %arg2[%c7, %c0_18, %c0_19] : memref<8x2x16xbf16, #tpu.memory_space<vmem>>, vector<1x2x16xbf16>
      %23 = vector.shape_cast %22 : vector<1x2x16xbf16> to vector<2x16xbf16>
      %cst = arith.constant dense<0.000000e+00> : vector<2x128xf32>
      %24 = tpu.matmul %23, %4, %cst {dimension_numbers = #tpu.dot_dimension_numbers<[1], [0], [0], [1], [0, 0, 1, 1], [], []>} : vector<2x16xbf16>, vector<16x128xbf16>, vector<2x128xf32> -> vector<2x128xf32>
      %25 = arith.truncf %20 : vector<2x32xf32> to vector<2x32xbf16>
      %cst_20 = arith.constant dense<0.000000e+00> : vector<2x128xf32>
      %26 = tpu.matmul %25, %6, %cst_20 {dimension_numbers = #tpu.dot_dimension_numbers<[1], [0], [0], [1], [0, 0, 1, 1], [], []>} : vector<2x32xbf16>, vector<32x128xbf16>, vector<2x128xf32> -> vector<2x128xf32>
      %27 = arith.addf %24, %26 : vector<2x128xf32>
      %28 = arith.addf %27, %10 : vector<2x128xf32>
      %29 = vector.extract_strided_slice %28 {offsets = [0, 0], sizes = [2, 32], strides = [1, 1]} : vector<2x128xf32> to vector<2x32xf32>
      %30 = arith.negf %29 : vector<2x32xf32>
      %31 = math.exp %30 : vector<2x32xf32>
      %cst_21 = arith.constant 1.000000e+00 : f32
      %32 = vector.broadcast %cst_21 : f32 to vector<2x32xf32>
      %33 = arith.addf %32, %31 : vector<2x32xf32>
      %34 = arith.divf %32, %33 : vector<2x32xf32>
      %35 = vector.extract_strided_slice %28 {offsets = [0, 32], sizes = [2, 32], strides = [1, 1]} : vector<2x128xf32> to vector<2x32xf32>
      %36 = arith.negf %35 : vector<2x32xf32>
      %37 = math.exp %36 : vector<2x32xf32>
      %cst_22 = arith.constant 1.000000e+00 : f32
      %38 = vector.broadcast %cst_22 : f32 to vector<2x32xf32>
      %39 = arith.addf %38, %37 : vector<2x32xf32>
      %40 = arith.divf %38, %39 : vector<2x32xf32>
      %41 = vector.extract_strided_slice %28 {offsets = [0, 64], sizes = [2, 32], strides = [1, 1]} : vector<2x128xf32> to vector<2x32xf32>
      %42 = math.tanh %41 : vector<2x32xf32>
      %43 = vector.extract_strided_slice %28 {offsets = [0, 96], sizes = [2, 32], strides = [1, 1]} : vector<2x128xf32> to vector<2x32xf32>
      %44 = arith.negf %43 : vector<2x32xf32>
      %45 = math.exp %44 : vector<2x32xf32>
      %cst_23 = arith.constant 1.000000e+00 : f32
      %46 = vector.broadcast %cst_23 : f32 to vector<2x32xf32>
      %47 = arith.addf %46, %45 : vector<2x32xf32>
      %48 = arith.divf %46, %47 : vector<2x32xf32>
      %49 = arith.mulf %40, %21 : vector<2x32xf32>
      %50 = arith.mulf %34, %42 : vector<2x32xf32>
      %51 = arith.addf %49, %50 : vector<2x32xf32>
      %52 = math.tanh %51 : vector<2x32xf32>
      %53 = arith.mulf %48, %52 : vector<2x32xf32>
      %c0_24 = arith.constant 0 : index
      %c7_25 = arith.constant 7 : index
      %c0_26 = arith.constant 0 : index
      %c0_27 = arith.constant 0 : index
      %54 = vector.load %arg6[%c0_24, %c7_25, %c0_26, %c0_27] : memref<1x8x2x32xf32, #tpu.memory_space<vmem>>, vector<1x1x2x32xf32>
      %55 = vector.shape_cast %54 : vector<1x1x2x32xf32> to vector<2x32xf32>
      %56 = vector.shape_cast %53 : vector<2x32xf32> to vector<1x1x2x32xf32>
      tpu.vector_store %arg6[%c0_24, %c7_25, %c0_26, %c0_27], %56 {strides = array<i32>} : memref<1x8x2x32xf32, #tpu.memory_space<vmem>>, vector<1x1x2x32xf32>,
      %c6 = arith.constant 6 : index
      %c0_28 = arith.constant 0 : index
      %c0_29 = arith.constant 0 : index
      %57 = vector.load %arg2[%c6, %c0_28, %c0_29] : memref<8x2x16xbf16, #tpu.memory_space<vmem>>, vector<1x2x16xbf16>
      %58 = vector.shape_cast %57 : vector<1x2x16xbf16> to vector<2x16xbf16>
      %cst_30 = arith.constant dense<0.000000e+00> : vector<2x128xf32>
      %59 = tpu.matmul %58, %4, %cst_30 {dimension_numbers = #tpu.dot_dimension_numbers<[1], [0], [0], [1], [0, 0, 1, 1], [], []>} : vector<2x16xbf16>, vector<16x128xbf16>, vector<2x128xf32> -> vector<2x128xf32>
      %60 = arith.truncf %53 : vector<2x32xf32> to vector<2x32xbf16>
      %cst_31 = arith.constant dense<0.000000e+00> : vector<2x128xf32>
      %61 = tpu.matmul %60, %6, %cst_31 {dimension_numbers = #tpu.dot_dimension_numbers<[1], [0], [0], [1], [0, 0, 1, 1], [], []>} : vector<2x32xbf16>, vector<32x128xbf16>, vector<2x128xf32> -> vector<2x128xf32>
      %62 = arith.addf %59, %61 : vector<2x128xf32>
      %63 = arith.addf %62, %10 : vector<2x128xf32>
      %64 = vector.extract_strided_slice %63 {offsets = [0, 0], sizes = [2, 32], strides = [1, 1]} : vector<2x128xf32> to vector<2x32xf32>
      %65 = arith.negf %64 : vector<2x32xf32>
      %66 = math.exp %65 : vector<2x32xf32>
      %cst_32 = arith.constant 1.000000e+00 : f32
      %67 = vector.broadcast %cst_32 : f32 to vector<2x32xf32>
      %68 = arith.addf %67, %66 : vector<2x32xf32>
      %69 = arith.divf %67, %68 : vector<2x32xf32>
      %70 = vector.extract_strided_slice %63 {offsets = [0, 32], sizes = [2, 32], strides = [1, 1]} : vector<2x128xf32> to vector<2x32xf32>
      %71 = arith.negf %70 : vector<2x32xf32>
      %72 = math.exp %71 : vector<2x32xf32>
      %cst_33 = arith.constant 1.000000e+00 : f32
      %73 = vector.broadcast %cst_33 : f32 to vector<2x32xf32>
      %74 = arith.addf %73, %72 : vector<2x32xf32>
      %75 = arith.divf %73, %74 : vector<2x32xf32>
      %76 = vector.extract_strided_slice %63 {offsets = [0, 64], sizes = [2, 32], strides = [1, 1]} : vector<2x128xf32> to vector<2x32xf32>
      %77 = math.tanh %76 : vector<2x32xf32>
      %78 = vector.extract_strided_slice %63 {offsets = [0, 96], sizes = [2, 32], strides = [1, 1]} : vector<2x128xf32> to vector<2x32xf32>
      %79 = arith.negf %78 : vector<2x32xf32>
      %80 = math.exp %79 : vector<2x32xf32>
      %cst_34 = arith.constant 1.000000e+00 : f32
      %81 = vector.broadcast %cst_34 : f32 to vector<2x32xf32>
      %82 = arith.addf %81, %80 : vector<2x32xf32>
      %83 = arith.divf %81, %82 : vector<2x32xf32>
      %84 = arith.mulf %75, %51 : vector<2x32xf32>
      %85 = arith.mulf %69, %77 : vector<2x32xf32>
      %86 = arith.addf %84, %85 : vector<2x32xf32>
      %87 = math.tanh %86 : vector<2x32xf32>
      %88 = arith.mulf %83, %87 : vector<2x32xf32>
      %c0_35 = arith.constant 0 : index
      %c6_36 = arith.constant 6 : index
      %c0_37 = arith.constant 0 : index
      %c0_38 = arith.constant 0 : index
      %89 = vector.load %arg6[%c0_35, %c6_36, %c0_37, %c0_38] : memref<1x8x2x32xf32, #tpu.memory_space<vmem>>, vector<1x1x2x32xf32>
      %90 = vector.shape_cast %89 : vector<1x1x2x32xf32> to vector<2x32xf32>
      %91 = vector.shape_cast %88 : vector<2x32xf32> to vector<1x1x2x32xf32>
      tpu.vector_store %arg6[%c0_35, %c6_36, %c0_37, %c0_38], %91 {strides = array<i32>} : memref<1x8x2x32xf32, #tpu.memory_space<vmem>>, vector<1x1x2x32xf32>,
      %c5 = arith.constant 5 : index
      %c0_39 = arith.constant 0 : index
      %c0_40 = arith.constant 0 : index
      %92 = vector.load %arg2[%c5, %c0_39, %c0_40] : memref<8x2x16xbf16, #tpu.memory_space<vmem>>, vector<1x2x16xbf16>
      %93 = vector.shape_cast %92 : vector<1x2x16xbf16> to vector<2x16xbf16>
      %cst_41 = arith.constant dense<0.000000e+00> : vector<2x128xf32>
      %94 = tpu.matmul %93, %4, %cst_41 {dimension_numbers = #tpu.dot_dimension_numbers<[1], [0], [0], [1], [0, 0, 1, 1], [], []>} : vector<2x16xbf16>, vector<16x128xbf16>, vector<2x128xf32> -> vector<2x128xf32>
      %95 = arith.truncf %88 : vector<2x32xf32> to vector<2x32xbf16>
      %cst_42 = arith.constant dense<0.000000e+00> : vector<2x128xf32>
      %96 = tpu.matmul %95, %6, %cst_42 {dimension_numbers = #tpu.dot_dimension_numbers<[1], [0], [0], [1], [0, 0, 1, 1], [], []>} : vector<2x32xbf16>, vector<32x128xbf16>, vector<2x128xf32> -> vector<2x128xf32>
      %97 = arith.addf %94, %96 : vector<2x128xf32>
      %98 = arith.addf %97, %10 : vector<2x128xf32>
      %99 = vector.extract_strided_slice %98 {offsets = [0, 0], sizes = [2, 32], strides = [1, 1]} : vector<2x128xf32> to vector<2x32xf32>
      %100 = arith.negf %99 : vector<2x32xf32>
      %101 = math.exp %100 : vector<2x32xf32>
      %cst_43 = arith.constant 1.000000e+00 : f32
      %102 = vector.broadcast %cst_43 : f32 to vector<2x32xf32>
      %103 = arith.addf %102, %101 : vector<2x32xf32>
      %104 = arith.divf %102, %103 : vector<2x32xf32>
      %105 = vector.extract_strided_slice %98 {offsets = [0, 32], sizes = [2, 32], strides = [1, 1]} : vector<2x128xf32> to vector<2x32xf32>
      %106 = arith.negf %105 : vector<2x32xf32>
      %107 = math.exp %106 : vector<2x32xf32>
      %cst_44 = arith.constant 1.000000e+00 : f32
      %108 = vector.broadcast %cst_44 : f32 to vector<2x32xf32>
      %109 = arith.addf %108, %107 : vector<2x32xf32>
      %110 = arith.divf %108, %109 : vector<2x32xf32>
      %111 = vector.extract_strided_slice %98 {offsets = [0, 64], sizes = [2, 32], strides = [1, 1]} : vector<2x128xf32> to vector<2x32xf32>
      %112 = math.tanh %111 : vector<2x32xf32>
      %113 = vector.extract_strided_slice %98 {offsets = [0, 96], sizes = [2, 32], strides = [1, 1]} : vector<2x128xf32> to vector<2x32xf32>
      %114 = arith.negf %113 : vector<2x32xf32>
      %115 = math.exp %114 : vector<2x32xf32>
      %cst_45 = arith.constant 1.000000e+00 : f32
      %116 = vector.broadcast %cst_45 : f32 to vector<2x32xf32>
      %117 = arith.addf %116, %115 : vector<2x32xf32>
      %118 = arith.divf %116, %117 : vector<2x32xf32>
      %119 = arith.mulf %110, %86 : vector<2x32xf32>
      %120 = arith.mulf %104, %112 : vector<2x32xf32>
      %121 = arith.addf %119, %120 : vector<2x32xf32>
      %122 = math.tanh %121 : vector<2x32xf32>
      %123 = arith.mulf %118, %122 : vector<2x32xf32>
      %c0_46 = arith.constant 0 : index
      %c5_47 = arith.constant 5 : index
      %c0_48 = arith.constant 0 : index
      %c0_49 = arith.constant 0 : index
      %124 = vector.load %arg6[%c0_46, %c5_47, %c0_48, %c0_49] : memref<1x8x2x32xf32, #tpu.memory_space<vmem>>, vector<1x1x2x32xf32>
      %125 = vector.shape_cast %124 : vector<1x1x2x32xf32> to vector<2x32xf32>
      %126 = vector.shape_cast %123 : vector<2x32xf32> to vector<1x1x2x32xf32>
      tpu.vector_store %arg6[%c0_46, %c5_47, %c0_48, %c0_49], %126 {strides = array<i32>} : memref<1x8x2x32xf32, #tpu.memory_space<vmem>>, vector<1x1x2x32xf32>,
      %c4 = arith.constant 4 : index
      %c0_50 = arith.constant 0 : index
      %c0_51 = arith.constant 0 : index
      %127 = vector.load %arg2[%c4, %c0_50, %c0_51] : memref<8x2x16xbf16, #tpu.memory_space<vmem>>, vector<1x2x16xbf16>
      %128 = vector.shape_cast %127 : vector<1x2x16xbf16> to vector<2x16xbf16>
      %cst_52 = arith.constant dense<0.000000e+00> : vector<2x128xf32>
      %129 = tpu.matmul %128, %4, %cst_52 {dimension_numbers = #tpu.dot_dimension_numbers<[1], [0], [0], [1], [0, 0, 1, 1], [], []>} : vector<2x16xbf16>, vector<16x128xbf16>, vector<2x128xf32> -> vector<2x128xf32>
      %130 = arith.truncf %123 : vector<2x32xf32> to vector<2x32xbf16>
      %cst_53 = arith.constant dense<0.000000e+00> : vector<2x128xf32>
      %131 = tpu.matmul %130, %6, %cst_53 {dimension_numbers = #tpu.dot_dimension_numbers<[1], [0], [0], [1], [0, 0, 1, 1], [], []>} : vector<2x32xbf16>, vector<32x128xbf16>, vector<2x128xf32> -> vector<2x128xf32>
      %132 = arith.addf %129, %131 : vector<2x128xf32>
      %133 = arith.addf %132, %10 : vector<2x128xf32>
      %134 = vector.extract_strided_slice %133 {offsets = [0, 0], sizes = [2, 32], strides = [1, 1]} : vector<2x128xf32> to vector<2x32xf32>
      %135 = arith.negf %134 : vector<2x32xf32>
      %136 = math.exp %135 : vector<2x32xf32>
      %cst_54 = arith.constant 1.000000e+00 : f32
      %137 = vector.broadcast %cst_54 : f32 to vector<2x32xf32>
      %138 = arith.addf %137, %136 : vector<2x32xf32>
      %139 = arith.divf %137, %138 : vector<2x32xf32>
      %140 = vector.extract_strided_slice %133 {offsets = [0, 32], sizes = [2, 32], strides = [1, 1]} : vector<2x128xf32> to vector<2x32xf32>
      %141 = arith.negf %140 : vector<2x32xf32>
      %142 = math.exp %141 : vector<2x32xf32>
      %cst_55 = arith.constant 1.000000e+00 : f32
      %143 = vector.broadcast %cst_55 : f32 to vector<2x32xf32>
      %144 = arith.addf %143, %142 : vector<2x32xf32>
      %145 = arith.divf %143, %144 : vector<2x32xf32>
      %146 = vector.extract_strided_slice %133 {offsets = [0, 64], sizes = [2, 32], strides = [1, 1]} : vector<2x128xf32> to vector<2x32xf32>
      %147 = math.tanh %146 : vector<2x32xf32>
      %148 = vector.extract_strided_slice %133 {offsets = [0, 96], sizes = [2, 32], strides = [1, 1]} : vector<2x128xf32> to vector<2x32xf32>
      %149 = arith.negf %148 : vector<2x32xf32>
      %150 = math.exp %149 : vector<2x32xf32>
      %cst_56 = arith.constant 1.000000e+00 : f32
      %151 = vector.broadcast %cst_56 : f32 to vector<2x32xf32>
      %152 = arith.addf %151, %150 : vector<2x32xf32>
      %153 = arith.divf %151, %152 : vector<2x32xf32>
      %154 = arith.mulf %145, %121 : vector<2x32xf32>
      %155 = arith.mulf %139, %147 : vector<2x32xf32>
      %156 = arith.addf %154, %155 : vector<2x32xf32>
      %157 = math.tanh %156 : vector<2x32xf32>
      %158 = arith.mulf %153, %157 : vector<2x32xf32>
      %c0_57 = arith.constant 0 : index
      %c4_58 = arith.constant 4 : index
      %c0_59 = arith.constant 0 : index
      %c0_60 = arith.constant 0 : index
      %159 = vector.load %arg6[%c0_57, %c4_58, %c0_59, %c0_60] : memref<1x8x2x32xf32, #tpu.memory_space<vmem>>, vector<1x1x2x32xf32>
      %160 = vector.shape_cast %159 : vector<1x1x2x32xf32> to vector<2x32xf32>
      %161 = vector.shape_cast %158 : vector<2x32xf32> to vector<1x1x2x32xf32>
      tpu.vector_store %arg6[%c0_57, %c4_58, %c0_59, %c0_60], %161 {strides = array<i32>} : memref<1x8x2x32xf32, #tpu.memory_space<vmem>>, vector<1x1x2x32xf32>,
      %c3 = arith.constant 3 : index
      %c0_61 = arith.constant 0 : index
      %c0_62 = arith.constant 0 : index
      %162 = vector.load %arg2[%c3, %c0_61, %c0_62] : memref<8x2x16xbf16, #tpu.memory_space<vmem>>, vector<1x2x16xbf16>
      %163 = vector.shape_cast %162 : vector<1x2x16xbf16> to vector<2x16xbf16>
      %cst_63 = arith.constant dense<0.000000e+00> : vector<2x128xf32>
      %164 = tpu.matmul %163, %4, %cst_63 {dimension_numbers = #tpu.dot_dimension_numbers<[1], [0], [0], [1], [0, 0, 1, 1], [], []>} : vector<2x16xbf16>, vector<16x128xbf16>, vector<2x128xf32> -> vector<2x128xf32>
      %165 = arith.truncf %158 : vector<2x32xf32> to vector<2x32xbf16>
      %cst_64 = arith.constant dense<0.000000e+00> : vector<2x128xf32>
      %166 = tpu.matmul %165, %6, %cst_64 {dimension_numbers = #tpu.dot_dimension_numbers<[1], [0], [0], [1], [0, 0, 1, 1], [], []>} : vector<2x32xbf16>, vector<32x128xbf16>, vector<2x128xf32> -> vector<2x128xf32>
      %167 = arith.addf %164, %166 : vector<2x128xf32>
      %168 = arith.addf %167, %10 : vector<2x128xf32>
      %169 = vector.extract_strided_slice %168 {offsets = [0, 0], sizes = [2, 32], strides = [1, 1]} : vector<2x128xf32> to vector<2x32xf32>
      %170 = arith.negf %169 : vector<2x32xf32>
      %171 = math.exp %170 : vector<2x32xf32>
      %cst_65 = arith.constant 1.000000e+00 : f32
      %172 = vector.broadcast %cst_65 : f32 to vector<2x32xf32>
      %173 = arith.addf %172, %171 : vector<2x32xf32>
      %174 = arith.divf %172, %173 : vector<2x32xf32>
      %175 = vector.extract_strided_slice %168 {offsets = [0, 32], sizes = [2, 32], strides = [1, 1]} : vector<2x128xf32> to vector<2x32xf32>
      %176 = arith.negf %175 : vector<2x32xf32>
      %177 = math.exp %176 : vector<2x32xf32>
      %cst_66 = arith.constant 1.000000e+00 : f32
      %178 = vector.broadcast %cst_66 : f32 to vector<2x32xf32>
      %179 = arith.addf %178, %177 : vector<2x32xf32>
      %180 = arith.divf %178, %179 : vector<2x32xf32>
      %181 = vector.extract_strided_slice %168 {offsets = [0, 64], sizes = [2, 32], strides = [1, 1]} : vector<2x128xf32> to vector<2x32xf32>
      %182 = math.tanh %181 : vector<2x32xf32>
      %183 = vector.extract_strided_slice %168 {offsets = [0, 96], sizes = [2, 32], strides = [1, 1]} : vector<2x128xf32> to vector<2x32xf32>
      %184 = arith.negf %183 : vector<2x32xf32>
      %185 = math.exp %184 : vector<2x32xf32>
      %cst_67 = arith.constant 1.000000e+00 : f32
      %186 = vector.broadcast %cst_67 : f32 to vector<2x32xf32>
      %187 = arith.addf %186, %185 : vector<2x32xf32>
      %188 = arith.divf %186, %187 : vector<2x32xf32>
      %189 = arith.mulf %180, %156 : vector<2x32xf32>
      %190 = arith.mulf %174, %182 : vector<2x32xf32>
      %191 = arith.addf %189, %190 : vector<2x32xf32>
      %192 = math.tanh %191 : vector<2x32xf32>
      %193 = arith.mulf %188, %192 : vector<2x32xf32>
      %c0_68 = arith.constant 0 : index
      %c3_69 = arith.constant 3 : index
      %c0_70 = arith.constant 0 : index
      %c0_71 = arith.constant 0 : index
      %194 = vector.load %arg6[%c0_68, %c3_69, %c0_70, %c0_71] : memref<1x8x2x32xf32, #tpu.memory_space<vmem>>, vector<1x1x2x32xf32>
      %195 = vector.shape_cast %194 : vector<1x1x2x32xf32> to vector<2x32xf32>
      %196 = vector.shape_cast %193 : vector<2x32xf32> to vector<1x1x2x32xf32>
      tpu.vector_store %arg6[%c0_68, %c3_69, %c0_70, %c0_71], %196 {strides = array<i32>} : memref<1x8x2x32xf32, #tpu.memory_space<vmem>>, vector<1x1x2x32xf32>,
      %c2 = arith.constant 2 : index
      %c0_72 = arith.constant 0 : index
      %c0_73 = arith.constant 0 : index
      %197 = vector.load %arg2[%c2, %c0_72, %c0_73] : memref<8x2x16xbf16, #tpu.memory_space<vmem>>, vector<1x2x16xbf16>
      %198 = vector.shape_cast %197 : vector<1x2x16xbf16> to vector<2x16xbf16>
      %cst_74 = arith.constant dense<0.000000e+00> : vector<2x128xf32>
      %199 = tpu.matmul %198, %4, %cst_74 {dimension_numbers = #tpu.dot_dimension_numbers<[1], [0], [0], [1], [0, 0, 1, 1], [], []>} : vector<2x16xbf16>, vector<16x128xbf16>, vector<2x128xf32> -> vector<2x128xf32>
      %200 = arith.truncf %193 : vector<2x32xf32> to vector<2x32xbf16>
      %cst_75 = arith.constant dense<0.000000e+00> : vector<2x128xf32>
      %201 = tpu.matmul %200, %6, %cst_75 {dimension_numbers = #tpu.dot_dimension_numbers<[1], [0], [0], [1], [0, 0, 1, 1], [], []>} : vector<2x32xbf16>, vector<32x128xbf16>, vector<2x128xf32> -> vector<2x128xf32>
      %202 = arith.addf %199, %201 : vector<2x128xf32>
      %203 = arith.addf %202, %10 : vector<2x128xf32>
      %204 = vector.extract_strided_slice %203 {offsets = [0, 0], sizes = [2, 32], strides = [1, 1]} : vector<2x128xf32> to vector<2x32xf32>
      %205 = arith.negf %204 : vector<2x32xf32>
      %206 = math.exp %205 : vector<2x32xf32>
      %cst_76 = arith.constant 1.000000e+00 : f32
      %207 = vector.broadcast %cst_76 : f32 to vector<2x32xf32>
      %208 = arith.addf %207, %206 : vector<2x32xf32>
      %209 = arith.divf %207, %208 : vector<2x32xf32>
      %210 = vector.extract_strided_slice %203 {offsets = [0, 32], sizes = [2, 32], strides = [1, 1]} : vector<2x128xf32> to vector<2x32xf32>
      %211 = arith.negf %210 : vector<2x32xf32>
      %212 = math.exp %211 : vector<2x32xf32>
      %cst_77 = arith.constant 1.000000e+00 : f32
      %213 = vector.broadcast %cst_77 : f32 to vector<2x32xf32>
      %214 = arith.addf %213, %212 : vector<2x32xf32>
      %215 = arith.divf %213, %214 : vector<2x32xf32>
      %216 = vector.extract_strided_slice %203 {offsets = [0, 64], sizes = [2, 32], strides = [1, 1]} : vector<2x128xf32> to vector<2x32xf32>
      %217 = math.tanh %216 : vector<2x32xf32>
      %218 = vector.extract_strided_slice %203 {offsets = [0, 96], sizes = [2, 32], strides = [1, 1]} : vector<2x128xf32> to vector<2x32xf32>
      %219 = arith.negf %218 : vector<2x32xf32>
      %220 = math.exp %219 : vector<2x32xf32>
      %cst_78 = arith.constant 1.000000e+00 : f32
      %221 = vector.broadcast %cst_78 : f32 to vector<2x32xf32>
      %222 = arith.addf %221, %220 : vector<2x32xf32>
      %223 = arith.divf %221, %222 : vector<2x32xf32>
      %224 = arith.mulf %215, %191 : vector<2x32xf32>
      %225 = arith.mulf %209, %217 : vector<2x32xf32>
      %226 = arith.addf %224, %225 : vector<2x32xf32>
      %227 = math.tanh %226 : vector<2x32xf32>
      %228 = arith.mulf %223, %227 : vector<2x32xf32>
      %c0_79 = arith.constant 0 : index
      %c2_80 = arith.constant 2 : index
      %c0_81 = arith.constant 0 : index
      %c0_82 = arith.constant 0 : index
      %229 = vector.load %arg6[%c0_79, %c2_80, %c0_81, %c0_82] : memref<1x8x2x32xf32, #tpu.memory_space<vmem>>, vector<1x1x2x32xf32>
      %230 = vector.shape_cast %229 : vector<1x1x2x32xf32> to vector<2x32xf32>
      %231 = vector.shape_cast %228 : vector<2x32xf32> to vector<1x1x2x32xf32>
      tpu.vector_store %arg6[%c0_79, %c2_80, %c0_81, %c0_82], %231 {strides = array<i32>} : memref<1x8x2x32xf32, #tpu.memory_space<vmem>>, vector<1x1x2x32xf32>,
      %c1 = arith.constant 1 : index
      %c0_83 = arith.constant 0 : index
      %c0_84 = arith.constant 0 : index
      %232 = vector.load %arg2[%c1, %c0_83, %c0_84] : memref<8x2x16xbf16, #tpu.memory_space<vmem>>, vector<1x2x16xbf16>
      %233 = vector.shape_cast %232 : vector<1x2x16xbf16> to vector<2x16xbf16>
      %cst_85 = arith.constant dense<0.000000e+00> : vector<2x128xf32>
      %234 = tpu.matmul %233, %4, %cst_85 {dimension_numbers = #tpu.dot_dimension_numbers<[1], [0], [0], [1], [0, 0, 1, 1], [], []>} : vector<2x16xbf16>, vector<16x128xbf16>, vector<2x128xf32> -> vector<2x128xf32>
      %235 = arith.truncf %228 : vector<2x32xf32> to vector<2x32xbf16>
      %cst_86 = arith.constant dense<0.000000e+00> : vector<2x128xf32>
      %236 = tpu.matmul %235, %6, %cst_86 {dimension_numbers = #tpu.dot_dimension_numbers<[1], [0], [0], [1], [0, 0, 1, 1], [], []>} : vector<2x32xbf16>, vector<32x128xbf16>, vector<2x128xf32> -> vector<2x128xf32>
      %237 = arith.addf %234, %236 : vector<2x128xf32>
      %238 = arith.addf %237, %10 : vector<2x128xf32>
      %239 = vector.extract_strided_slice %238 {offsets = [0, 0], sizes = [2, 32], strides = [1, 1]} : vector<2x128xf32> to vector<2x32xf32>
      %240 = arith.negf %239 : vector<2x32xf32>
      %241 = math.exp %240 : vector<2x32xf32>
      %cst_87 = arith.constant 1.000000e+00 : f32
      %242 = vector.broadcast %cst_87 : f32 to vector<2x32xf32>
      %243 = arith.addf %242, %241 : vector<2x32xf32>
      %244 = arith.divf %242, %243 : vector<2x32xf32>
      %245 = vector.extract_strided_slice %238 {offsets = [0, 32], sizes = [2, 32], strides = [1, 1]} : vector<2x128xf32> to vector<2x32xf32>
      %246 = arith.negf %245 : vector<2x32xf32>
      %247 = math.exp %246 : vector<2x32xf32>
      %cst_88 = arith.constant 1.000000e+00 : f32
      %248 = vector.broadcast %cst_88 : f32 to vector<2x32xf32>
      %249 = arith.addf %248, %247 : vector<2x32xf32>
      %250 = arith.divf %248, %249 : vector<2x32xf32>
      %251 = vector.extract_strided_slice %238 {offsets = [0, 64], sizes = [2, 32], strides = [1, 1]} : vector<2x128xf32> to vector<2x32xf32>
      %252 = math.tanh %251 : vector<2x32xf32>
      %253 = vector.extract_strided_slice %238 {offsets = [0, 96], sizes = [2, 32], strides = [1, 1]} : vector<2x128xf32> to vector<2x32xf32>
      %254 = arith.negf %253 : vector<2x32xf32>
      %255 = math.exp %254 : vector<2x32xf32>
      %cst_89 = arith.constant 1.000000e+00 : f32
      %256 = vector.broadcast %cst_89 : f32 to vector<2x32xf32>
      %257 = arith.addf %256, %255 : vector<2x32xf32>
      %258 = arith.divf %256, %257 : vector<2x32xf32>
      %259 = arith.mulf %250, %226 : vector<2x32xf32>
      %260 = arith.mulf %244, %252 : vector<2x32xf32>
      %261 = arith.addf %259, %260 : vector<2x32xf32>
      %262 = math.tanh %261 : vector<2x32xf32>
      %263 = arith.mulf %258, %262 : vector<2x32xf32>
      %c0_90 = arith.constant 0 : index
      %c1_91 = arith.constant 1 : index
      %c0_92 = arith.constant 0 : index
      %c0_93 = arith.constant 0 : index
      %264 = vector.load %arg6[%c0_90, %c1_91, %c0_92, %c0_93] : memref<1x8x2x32xf32, #tpu.memory_space<vmem>>, vector<1x1x2x32xf32>
      %265 = vector.shape_cast %264 : vector<1x1x2x32xf32> to vector<2x32xf32>
      %266 = vector.shape_cast %263 : vector<2x32xf32> to vector<1x1x2x32xf32>
      tpu.vector_store %arg6[%c0_90, %c1_91, %c0_92, %c0_93], %266 {strides = array<i32>} : memref<1x8x2x32xf32, #tpu.memory_space<vmem>>, vector<1x1x2x32xf32>,
      %c0_94 = arith.constant 0 : index
      %c0_95 = arith.constant 0 : index
      %c0_96 = arith.constant 0 : index
      %267 = vector.load %arg2[%c0_94, %c0_95, %c0_96] : memref<8x2x16xbf16, #tpu.memory_space<vmem>>, vector<1x2x16xbf16>
      %268 = vector.shape_cast %267 : vector<1x2x16xbf16> to vector<2x16xbf16>
      %cst_97 = arith.constant dense<0.000000e+00> : vector<2x128xf32>
      %269 = tpu.matmul %268, %4, %cst_97 {dimension_numbers = #tpu.dot_dimension_numbers<[1], [0], [0], [1], [0, 0, 1, 1], [], []>} : vector<2x16xbf16>, vector<16x128xbf16>, vector<2x128xf32> -> vector<2x128xf32>
      %270 = arith.truncf %263 : vector<2x32xf32> to vector<2x32xbf16>
      %cst_98 = arith.constant dense<0.000000e+00> : vector<2x128xf32>
      %271 = tpu.matmul %270, %6, %cst_98 {dimension_numbers = #tpu.dot_dimension_numbers<[1], [0], [0], [1], [0, 0, 1, 1], [], []>} : vector<2x32xbf16>, vector<32x128xbf16>, vector<2x128xf32> -> vector<2x128xf32>
      %272 = arith.addf %269, %271 : vector<2x128xf32>
      %273 = arith.addf %272, %10 : vector<2x128xf32>
      %274 = vector.extract_strided_slice %273 {offsets = [0, 0], sizes = [2, 32], strides = [1, 1]} : vector<2x128xf32> to vector<2x32xf32>
      %275 = arith.negf %274 : vector<2x32xf32>
      %276 = math.exp %275 : vector<2x32xf32>
      %cst_99 = arith.constant 1.000000e+00 : f32
      %277 = vector.broadcast %cst_99 : f32 to vector<2x32xf32>
      %278 = arith.addf %277, %276 : vector<2x32xf32>
      %279 = arith.divf %277, %278 : vector<2x32xf32>
      %280 = vector.extract_strided_slice %273 {offsets = [0, 32], sizes = [2, 32], strides = [1, 1]} : vector<2x128xf32> to vector<2x32xf32>
      %281 = arith.negf %280 : vector<2x32xf32>
      %282 = math.exp %281 : vector<2x32xf32>
      %cst_100 = arith.constant 1.000000e+00 : f32
      %283 = vector.broadcast %cst_100 : f32 to vector<2x32xf32>
      %284 = arith.addf %283, %282 : vector<2x32xf32>
      %285 = arith.divf %283, %284 : vector<2x32xf32>
      %286 = vector.extract_strided_slice %273 {offsets = [0, 64], sizes = [2, 32], strides = [1, 1]} : vector<2x128xf32> to vector<2x32xf32>
      %287 = math.tanh %286 : vector<2x32xf32>
      %288 = vector.extract_strided_slice %273 {offsets = [0, 96], sizes = [2, 32], strides = [1, 1]} : vector<2x128xf32> to vector<2x32xf32>
      %289 = arith.negf %288 : vector<2x32xf32>
      %290 = math.exp %289 : vector<2x32xf32>
      %cst_101 = arith.constant 1.000000e+00 : f32
      %291 = vector.broadcast %cst_101 : f32 to vector<2x32xf32>
      %292 = arith.addf %291, %290 : vector<2x32xf32>
      %293 = arith.divf %291, %292 : vector<2x32xf32>
      %294 = arith.mulf %285, %261 : vector<2x32xf32>
      %295 = arith.mulf %279, %287 : vector<2x32xf32>
      %296 = arith.addf %294, %295 : vector<2x32xf32>
      %297 = math.tanh %296 : vector<2x32xf32>
      %298 = arith.mulf %293, %297 : vector<2x32xf32>
      %c0_102 = arith.constant 0 : index
      %c0_103 = arith.constant 0 : index
      %c0_104 = arith.constant 0 : index
      %c0_105 = arith.constant 0 : index
      %299 = vector.load %arg6[%c0_102, %c0_103, %c0_104, %c0_105] : memref<1x8x2x32xf32, #tpu.memory_space<vmem>>, vector<1x1x2x32xf32>
      %300 = vector.shape_cast %299 : vector<1x1x2x32xf32> to vector<2x32xf32>
      %301 = vector.shape_cast %298 : vector<2x32xf32> to vector<1x1x2x32xf32>
      tpu.vector_store %arg6[%c0_102, %c0_103, %c0_104, %c0_105], %301 {strides = array<i32>} : memref<1x8x2x32xf32, #tpu.memory_space<vmem>>, vector<1x1x2x32xf32>,
      %c0_106 = arith.constant 0 : index
      %c0_107 = arith.constant 0 : index
      %302 = vector.load %arg9[%c0_106, %c0_107] : memref<2x32xf32, #tpu.memory_space<vmem>>, vector<2x32xf32>
      tpu.vector_store %arg9[%c0_106, %c0_107], %298 {strides = array<i32>} : memref<2x32xf32, #tpu.memory_space<vmem>>, vector<2x32xf32>,
      %c0_108 = arith.constant 0 : index
      %c0_109 = arith.constant 0 : index
      %303 = vector.load %arg10[%c0_108, %c0_109] : memref<2x32xf32, #tpu.memory_space<vmem>>, vector<2x32xf32>
      tpu.vector_store %arg10[%c0_108, %c0_109], %296 {strides = array<i32>} : memref<2x32xf32, #tpu.memory_space<vmem>>, vector<2x32xf32>,
    } else {
    }
    %c0_i32_12 = arith.constant 0 : i32
    %17 = arith.cmpi eq, %arg1, %c0_i32_12 : i32
    %18 = arith.extui %17 : i1 to i32
    %c0_i32_13 = arith.constant 0 : i32
    %19 = arith.cmpi ne, %18, %c0_i32_13 : i32
    scf.if %19 {
      %c0_14 = arith.constant 0 : index
      %c0_15 = arith.constant 0 : index
      %20 = vector.load %arg9[%c0_14, %c0_15] : memref<2x32xf32, #tpu.memory_space<vmem>>, vector<2x32xf32>
      %c0_16 = arith.constant 0 : index
      %c0_17 = arith.constant 0 : index
      %c0_18 = arith.constant 0 : index
      %21 = vector.load %arg7[%c0_16, %c0_17, %c0_18] : memref<1x2x32xf32, #tpu.memory_space<vmem>>, vector<1x2x32xf32>
      %22 = vector.shape_cast %21 : vector<1x2x32xf32> to vector<2x32xf32>
      %23 = vector.shape_cast %20 : vector<2x32xf32> to vector<1x2x32xf32>
      tpu.vector_store %arg7[%c0_16, %c0_17, %c0_18], %23 {strides = array<i32>} : memref<1x2x32xf32, #tpu.memory_space<vmem>>, vector<1x2x32xf32>,
      %c0_19 = arith.constant 0 : index
      %c0_20 = arith.constant 0 : index
      %24 = vector.load %arg10[%c0_19, %c0_20] : memref<2x32xf32, #tpu.memory_space<vmem>>, vector<2x32xf32>
      %c0_21 = arith.constant 0 : index
      %c0_22 = arith.constant 0 : index
      %c0_23 = arith.constant 0 : index
      %25 = vector.load %arg8[%c0_21, %c0_22, %c0_23] : memref<1x2x32xf32, #tpu.memory_space<vmem>>, vector<1x2x32xf32>
      %26 = vector.shape_cast %25 : vector<1x2x32xf32> to vector<2x32xf32>
      %27 = vector.shape_cast %24 : vector<2x32xf32> to vector<1x2x32xf32>
      tpu.vector_store %arg8[%c0_21, %c0_22, %c0_23], %27 {strides = array<i32>} : memref<1x2x32xf32, #tpu.memory_space<vmem>>, vector<1x2x32xf32>,
    } else {
    }
    return
  }
  func.func @transform_0(%arg0: i32, %arg1: i32) -> (i32, i32, i32) {
    %c2_i32 = arith.constant 2 : i32
    %0 = arith.muli %c2_i32, %arg1 : i32
    %c0_i32 = arith.constant 0 : i32
    %1 = arith.subi %c0_i32, %0 : i32
    %2 = arith.muli %arg0, %1 : i32
    %3 = arith.addi %arg1, %2 : i32
    %c0_i32_0 = arith.constant 0 : i32
    %c0_i32_1 = arith.constant 0 : i32
    %c0_i32_2 = arith.constant 0 : i32
    return %3, %c0_i32_0, %c0_i32_1 : i32, i32, i32
  }
  func.func @transform_1(%arg0: i32, %arg1: i32) -> (i32, i32, i32) {
    %c0_i32 = arith.constant 0 : i32
    %c0_i32_0 = arith.constant 0 : i32
    %c0_i32_1 = arith.constant 0 : i32
    return %arg0, %c0_i32, %c0_i32_0 : i32, i32, i32
  }
  func.func @transform_2(%arg0: i32, %arg1: i32) -> (i32, i32, i32) {
    %c0_i32 = arith.constant 0 : i32
    %c0_i32_0 = arith.constant 0 : i32
    %c0_i32_1 = arith.constant 0 : i32
    return %arg0, %c0_i32, %c0_i32_0 : i32, i32, i32
  }
  func.func @transform_3(%arg0: i32, %arg1: i32) -> (i32, i32, i32) {
    %c0_i32 = arith.constant 0 : i32
    %c0_i32_0 = arith.constant 0 : i32
    %c0_i32_1 = arith.constant 0 : i32
    return %arg0, %c0_i32, %c0_i32_0 : i32, i32, i32
  }
  func.func @transform_4(%arg0: i32, %arg1: i32) -> (i32, i32, i32, i32) {
    %c2_i32 = arith.constant 2 : i32
    %0 = arith.muli %c2_i32, %arg1 : i32
    %c0_i32 = arith.constant 0 : i32
    %1 = arith.subi %c0_i32, %0 : i32
    %2 = arith.muli %arg0, %1 : i32
    %3 = arith.addi %arg1, %2 : i32
    %c0_i32_0 = arith.constant 0 : i32
    %c0_i32_1 = arith.constant 0 : i32
    %c0_i32_2 = arith.constant 0 : i32
    return %arg0, %3, %c0_i32_0, %c0_i32_1 : i32, i32, i32, i32
  }
  func.func @transform_5(%arg0: i32, %arg1: i32) -> (i32, i32, i32) {
    %c0_i32 = arith.constant 0 : i32
    %c0_i32_0 = arith.constant 0 : i32
    %c0_i32_1 = arith.constant 0 : i32
    return %arg0, %c0_i32, %c0_i32_0 : i32, i32, i32
  }
  func.func @transform_6(%arg0: i32, %arg1: i32) -> (i32, i32, i32) {
    %c0_i32 = arith.constant 0 : i32
    %c0_i32_0 = arith.constant 0 : i32
    %c0_i32_1 = arith.constant 0 : i32
    return %arg0, %c0_i32, %c0_i32_0 : i32, i32, i32
  }
}

</mosaic_0001>

<llo_original>
// kernel: bidirectional_lstm.1
$region0: #{bidirectional_lstm.1}
  #allocation0 [shape = 'u32[]', space=smem, size = 0x4, offset = 0x4, fixed_abs, tag = 'smem constant byte address 0x4 - core index']
  #allocation1 [shape = 'u32[144,128]{1,0:T(1,128)}', space=vmem, size = 0x12000, scoped, tag = 'internal scratch']
  #allocation2 [shape = 'f32[2,32]{1,0:T(2,128)}', space=vmem, size = 0x400, scoped, tag = 'scratch operand']
  #allocation3 [shape = 'f32[2,32]{1,0:T(2,128)}', space=vmem, size = 0x400, scoped, tag = 'scratch operand']
  %s0 = inlined_call_operand.vmem [shape: bf16[8,2,16], index: 0, kind: input, shape index: {}]
  %s1 = inlined_call_operand.vmem [shape: bf16[2,16,128], index: 1, kind: input, shape index: {}]
  %s2 = inlined_call_operand.hbm [shape: bf16[2,32,128], index: 2, kind: input, shape index: {}]
  %s3 = inlined_call_operand.vmem [shape: f32[2,1,128], index: 3, kind: input, shape index: {}]
  %s4 = inlined_call_operand.vmem [shape: f32[2,8,2,32], index: 4, kind: output, shape index: {0}]
  %s5 = inlined_call_operand.vmem [shape: f32[2,2,32], index: 5, kind: output, shape index: {1}]
  %s6 = inlined_call_operand.vmem [shape: f32[2,2,32], index: 6, kind: output, shape index: {2}]
  %7 = xla_tuple %s4, %s5, %s6
  %s8 = sld [smem:[#allocation0]]
  $region85: #{bidirectional_lstm.1} parent=0
    _
  %s10 = ssub.s32 1, %s8
  %s11 = scalar_select 0, %s10, %s8
  $region1: #{bidirectional_lstm.1} parent=0
    #allocation4 [shape = 'u8[16384]{0}', space=vmem, size = 0x4000, scoped, tag = 'input window, operand 2']
    #allocation5 [shape = 's32[2]{0}', space=sflag, size = 0x8, scoped, tag = 'scoped memory for bidirectional_lstm.1']
    %12 = vsyncpa [#allocation5], 0
    %s13 = scalar_lea.sflag [#allocation5], 1
    %14 = vsyncpa %s13, 0
    loop: start=0, step=1, limit=4
    $region2: #{bidirectional_lstm.1} parent=1 // loop_pre_header
      _
    $region3: #{bidirectional_lstm.1} parent=1 // loop_header
      %s16 = sphi 0, %s20
      %p17 = scmp.ge.s32.totalorder %s16, 4
      %s23 = sphi 0, %s35
      %s24 = sphi 0, %s31
      %s25 = sphi 0, %s23
      %s26 = sphi 0, %s24
      %s27 = sphi 0, %s25
      %s28 = sphi 0, %s26
      %s46 = sphi 0, %s48
      %s49 = sphi 0, %s46
      %s50 = sphi 0, %s49
      %s66 = sphi 0, %s50
      %s72 = sphi 0, %s74
      %s75 = sphi 0, %s72
      %s76 = sphi 0, %s75
      %s92 = sphi 0, %s76
      %s98 = sphi 0, %s100
      %s101 = sphi 0, %s98
      %s102 = sphi 0, %s101
      %s118 = sphi 0, %s102
      %s124 = sphi 0, %s126
      %s127 = sphi 0, %s124
      %s128 = sphi 0, %s127
      %s144 = sphi 0, %s128
      %s160 = sphi 0, %s162
      %s163 = sphi 0, %s160
      %s164 = sphi 0, %s163
      %s180 = sphi 0, %s164
      %s186 = sphi 0, %s188
      %s189 = sphi 0, %s186
      %s190 = sphi 0, %s189
      %s206 = sphi 0, %s190
      %s212 = sphi 0, %s214
      %s215 = sphi 0, %s212
      %s216 = sphi 0, %s215
      %s232 = sphi 0, %s216
    $region4: #{bidirectional_lstm.1} parent=1 // loop_header_branch
      %19 = sbr.rel (%p17) target = $region8
    $region5: #{bidirectional_lstm.1} parent=1 // loop_body
      %s21 = ssub.s32 %s16, 1
      %s22 = ssub.s32 %s16, 2
      %s29 = sadd.s32 1, %s24
      %p30 = scmp.ge.s32.totalorder %s29, 1
      %s31 = scalar_select %p30, 0, %s29
      %s32 = sadd.s32 1, %s23
      %s33 = scalar_select %p30, %s32, %s23
      %p34 = scmp.ge.s32.totalorder %s33, 2
      %s35 = scalar_select %p34, 0, %s33
      %s36 = smul.u32 %s24, 2
      %s37 = ssub.s32 0, %s36
      %s38 = smul.u32 %s23, %s37
      %s39 = sadd.s32 %s24, %s38
      %s40 = smul.u32 %s31, 2
      %s41 = ssub.s32 0, %s40
      %s42 = smul.u32 %s35, %s41
      %s43 = sadd.s32 %s31, %s42
      %s44 = ssub.s32 %s39, %s43
      %p45 = scmp.eq.s32.totalorder %s44, 0
      %s47 = sadd.s32 %s46, 1
      %s48 = scalar_select %p45, %s46, %s47
      %p51 = pneg %p45
      %p52 = scmp.eq.s32.totalorder %s16, 1
      %p53 = por %p51, %p52
      %p54 = scmp.ne.s32.totalorder %s46, %s49
      %p55 = scmp.eq.s32.totalorder %s16, 0
      %p56 = por %p54, %p55
      %p57 = scmp.ne.s32.totalorder %s46, %s49
      %p58 = scmp.eq.s32.totalorder %s21, 1
      %p59 = por %p57, %p58
      %p60 = scmp.ne.s32.totalorder %s49, %s50
      %p61 = scmp.eq.s32.totalorder %s21, 0
      %p62 = por %p60, %p61
      %p63 = scmp.ne.s32.totalorder %s49, %s50
      %p64 = scmp.eq.s32.totalorder %s22, 1
      %p65 = por %p63, %p64
      %p67 = scmp.ne.s32.totalorder %s50, %s66
      %p68 = scmp.eq.s32.totalorder %s22, 0
      %p69 = por %p67, %p68
      %s70 = ssub.s32 %s23, %s35
      %p71 = scmp.eq.s32.totalorder %s70, 0
      %s73 = sadd.s32 %s72, 1
      %s74 = scalar_select %p71, %s72, %s73
      %p77 = pneg %p71
      %p78 = scmp.eq.s32.totalorder %s16, 1
      %p79 = por %p77, %p78
      %p80 = scmp.ne.s32.totalorder %s72, %s75
      %p81 = scmp.eq.s32.totalorder %s16, 0
      %p82 = por %p80, %p81
      %p83 = scmp.ne.s32.totalorder %s72, %s75
      %p84 = scmp.eq.s32.totalorder %s21, 1
      %p85 = por %p83, %p84
      %p86 = scmp.ne.s32.totalorder %s75, %s76
      %p87 = scmp.eq.s32.totalorder %s21, 0
      %p88 = por %p86, %p87
      %p89 = scmp.ne.s32.totalorder %s75, %s76
      %p90 = scmp.eq.s32.totalorder %s22, 1
      %p91 = por %p89, %p90
      %p93 = scmp.ne.s32.totalorder %s76, %s92
      %p94 = scmp.eq.s32.totalorder %s22, 0
      %p95 = por %p93, %p94
      %s96 = ssub.s32 %s23, %s35
      %p97 = scmp.eq.s32.totalorder %s96, 0
      %s99 = sadd.s32 %s98, 1
      %s100 = scalar_select %p97, %s98, %s99
      %p103 = pneg %p97
      %p104 = scmp.eq.s32.totalorder %s16, 1
      %p105 = por %p103, %p104
      %p106 = scmp.ne.s32.totalorder %s98, %s101
      %p107 = scmp.eq.s32.totalorder %s16, 0
      %p108 = por %p106, %p107
      %p109 = scmp.ne.s32.totalorder %s98, %s101
      %p110 = scmp.eq.s32.totalorder %s21, 1
      %p111 = por %p109, %p110
      %p112 = scmp.ne.s32.totalorder %s101, %s102
      %p113 = scmp.eq.s32.totalorder %s21, 0
      %p114 = por %p112, %p113
      %p115 = scmp.ne.s32.totalorder %s101, %s102
      %p116 = scmp.eq.s32.totalorder %s22, 1
      %p117 = por %p115, %p116
      %p119 = scmp.ne.s32.totalorder %s102, %s118
      %p120 = scmp.eq.s32.totalorder %s22, 0
      %p121 = por %p119, %p120
      %s122 = ssub.s32 %s23, %s35
      %p123 = scmp.eq.s32.totalorder %s122, 0
      %s125 = sadd.s32 %s124, 1
      %s126 = scalar_select %p123, %s124, %s125
      %p129 = pneg %p123
      %p130 = scmp.eq.s32.totalorder %s16, 1
      %p131 = por %p129, %p130
      %p132 = scmp.ne.s32.totalorder %s124, %s127
      %p133 = scmp.eq.s32.totalorder %s16, 0
      %p134 = por %p132, %p133
      %p135 = scmp.ne.s32.totalorder %s124, %s127
      %p136 = scmp.eq.s32.totalorder %s21, 1
      %p137 = por %p135, %p136
      %p138 = scmp.ne.s32.totalorder %s127, %s128
      %p139 = scmp.eq.s32.totalorder %s21, 0
      %p140 = por %p138, %p139
      %p141 = scmp.ne.s32.totalorder %s127, %s128
      %p142 = scmp.eq.s32.totalorder %s22, 1
      %p143 = por %p141, %p142
      %p145 = scmp.ne.s32.totalorder %s128, %s144
      %p146 = scmp.eq.s32.totalorder %s22, 0
      %p147 = por %p145, %p146
      %s148 = smul.u32 %s24, 2
      %s149 = ssub.s32 0, %s148
      %s150 = smul.u32 %s23, %s149
      %s151 = sadd.s32 %s24, %s150
      %s152 = smul.u32 %s31, 2
      %s153 = ssub.s32 0, %s152
      %s154 = smul.u32 %s35, %s153
      %s155 = sadd.s32 %s31, %s154
      %s156 = ssub.s32 %s23, %s35
      %s157 = ssub.s32 %s151, %s155
      %s158 = sor.u32 %s156, %s157
      %p159 = scmp.eq.s32.totalorder %s158, 0
      %s161 = sadd.s32 %s160, 1
      %s162 = scalar_select %p159, %s160, %s161
      %p165 = pneg %p159
      %p166 = scmp.eq.s32.totalorder %s16, 1
      %p167 = por %p165, %p166
      %p168 = scmp.ne.s32.totalorder %s160, %s163
      %p169 = scmp.eq.s32.totalorder %s16, 0
      %p170 = por %p168, %p169
      %p171 = scmp.ne.s32.totalorder %s160, %s163
      %p172 = scmp.eq.s32.totalorder %s21, 1
      %p173 = por %p171, %p172
      %p174 = scmp.ne.s32.totalorder %s163, %s164
      %p175 = scmp.eq.s32.totalorder %s21, 0
      %p176 = por %p174, %p175
      %p177 = scmp.ne.s32.totalorder %s163, %s164
      %p178 = scmp.eq.s32.totalorder %s22, 1
      %p179 = por %p177, %p178
      %p181 = scmp.ne.s32.totalorder %s164, %s180
      %p182 = scmp.eq.s32.totalorder %s22, 0
      %p183 = por %p181, %p182
      %s184 = ssub.s32 %s23, %s35
      %p185 = scmp.eq.s32.totalorder %s184, 0
      %s187 = sadd.s32 %s186, 1
      %s188 = scalar_select %p185, %s186, %s187
      %p191 = pneg %p185
      %p192 = scmp.eq.s32.totalorder %s16, 1
      %p193 = por %p191, %p192
      %p194 = scmp.ne.s32.totalorder %s186, %s189
      %p195 = scmp.eq.s32.totalorder %s16, 0
      %p196 = por %p194, %p195
      %p197 = scmp.ne.s32.totalorder %s186, %s189
      %p198 = scmp.eq.s32.totalorder %s21, 1
      %p199 = por %p197, %p198
      %p200 = scmp.ne.s32.totalorder %s189, %s190
      %p201 = scmp.eq.s32.totalorder %s21, 0
      %p202 = por %p200, %p201
      %p203 = scmp.ne.s32.totalorder %s189, %s190
      %p204 = scmp.eq.s32.totalorder %s22, 1
      %p205 = por %p203, %p204
      %p207 = scmp.ne.s32.totalorder %s190, %s206
      %p208 = scmp.eq.s32.totalorder %s22, 0
      %p209 = por %p207, %p208
      %s210 = ssub.s32 %s23, %s35
      %p211 = scmp.eq.s32.totalorder %s210, 0
      %s213 = sadd.s32 %s212, 1
      %s214 = scalar_select %p211, %s212, %s213
      %p217 = pneg %p211
      %p218 = scmp.eq.s32.totalorder %s16, 1
      %p219 = por %p217, %p218
      %p220 = scmp.ne.s32.totalorder %s212, %s215
      %p221 = scmp.eq.s32.totalorder %s16, 0
      %p222 = por %p220, %p221
      %p223 = scmp.ne.s32.totalorder %s212, %s215
      %p224 = scmp.eq.s32.totalorder %s21, 1
      %p225 = por %p223, %p224
      %p226 = scmp.ne.s32.totalorder %s215, %s216
      %p227 = scmp.eq.s32.totalorder %s21, 0
      %p228 = por %p226, %p227
      %p229 = scmp.ne.s32.totalorder %s215, %s216
      %p230 = scmp.eq.s32.totalorder %s22, 1
      %p231 = por %p229, %p230
      %p233 = scmp.ne.s32.totalorder %s216, %s232
      %p234 = scmp.eq.s32.totalorder %s22, 0
      %p235 = por %p233, %p234
      %p236 = scmp.le.s32.totalorder 1, %s16
      %p237 = scmp.lt.s32.totalorder %s16, 3
      %p238 = pnand %p236, %p237
      %p239 = pneg %p238
      // Predicated region
      $region9: #{bidirectional_lstm.1} parent=5 // pred_check
        _
      $region10: #{bidirectional_lstm.1} parent=5 // pred_check_branch
        %241 = sbr.rel (%p238) target = $region12
      $region11: #{bidirectional_lstm.1} parent=5 // pred_region
        %s242 = ssub.s32 %s16, 1
      $region12: #{bidirectional_lstm.1} parent=5 // pred_fallthru
        _
      %p243 = scmp.lt.s32.totalorder %s16, 2
      // Predicated region
      $region13: #{bidirectional_lstm.1} parent=5 // pred_check
        %p244 = pneg %p243
      $region14: #{bidirectional_lstm.1} parent=5 // pred_check_branch
        %246 = sbr.rel (%p244) target = $region16
      $region15: #{bidirectional_lstm.1} parent=5 // pred_region
        // Predicated region
        $region17: #{bidirectional_lstm.1} parent=15 // pred_check
          %p247 = pneg %p56
        $region18: #{bidirectional_lstm.1} parent=15 // pred_check_branch
          %249 = sbr.rel (%p247) target = $region20
        $region19: #{bidirectional_lstm.1} parent=15 // pred_region
          %s250 = smul.u32 %s24, 2
          %s251 = ssub.s32 0, %s250
          %s252 = smul.u32 %s23, %s251
          %s253 = sadd.s32 %s24, %s252
          %s254 = smul.u32 8, %s253
          %p255 = scmp.lt.s32.totalorder %s254, 7
          %s256 = scalar_select %p255, %s254, 7
          %s257 = scalar_lea.vmem %s0, %s256
          %s258 = smul.u32 %s24, 2
          %s259 = ssub.s32 0, %s258
          %s260 = smul.u32 %s23, %s259
          %s261 = sadd.s32 %s24, %s260
          %s262 = smul.u32 8, %s261
        $region20: #{bidirectional_lstm.1} parent=15 // pred_fallthru
          _
        // Predicated region
        $region21: #{bidirectional_lstm.1} parent=15 // pred_check
          %p263 = pneg %p82
        $region22: #{bidirectional_lstm.1} parent=15 // pred_check_branch
          %265 = sbr.rel (%p263) target = $region24
        $region23: #{bidirectional_lstm.1} parent=15 // pred_region
          %p266 = scmp.lt.s32.totalorder %s23, 1
          %s267 = scalar_select %p266, %s23, 1
          %s268 = smul.addr %s267, 2
          %s269 = smul.addr %s268, 4
          %s270 = scalar_lea.vmem %s1, %s269
        $region24: #{bidirectional_lstm.1} parent=15 // pred_fallthru
          _
        // Predicated region
        $region25: #{bidirectional_lstm.1} parent=15 // pred_check
          %p271 = pneg %p108
        $region26: #{bidirectional_lstm.1} parent=15 // pred_check_branch
          %273 = sbr.rel (%p271) target = $region28
        $region27: #{bidirectional_lstm.1} parent=15 // pred_region
          %s274 = sand.u32 %s98, 1
          %s275 = scalar_lea.sflag [#allocation5], %s274
          %s276 = sand.u32 %s98, 1
          %s277 = smul.addr %s276, 16
          %s278 = scalar_lea.vmem [#allocation4], %s277
          %s280 = ssub.s32 256, 256
          %281 = vsyncadd %s275, %s280
          %s282 = smul.addr %s23, 4
          %s283 = smul.addr %s282, 64
          %s284 = scalar_lea.hbm %s2, %s283
          %s285 = sshll.u32 %s278, 4
          %s286 = int_to_ptr.vmem [resolvable:$true] %s285
          %291 = dma.hbm_to_vmem [thread:$0]  %s284, 256, %s286, %s275, 64, 64, 4
        $region28: #{bidirectional_lstm.1} parent=15 // pred_fallthru
          _
        // Predicated region
        $region29: #{bidirectional_lstm.1} parent=15 // pred_check
          %p292 = pneg %p134
        $region30: #{bidirectional_lstm.1} parent=15 // pred_check_branch
          %294 = sbr.rel (%p292) target = $region32
        $region31: #{bidirectional_lstm.1} parent=15 // pred_region
          %p295 = scmp.lt.s32.totalorder %s23, 1
          %s296 = scalar_select %p295, %s23, 1
          %s297 = scalar_lea.vmem %s3, %s296
        $region32: #{bidirectional_lstm.1} parent=15 // pred_fallthru
          _
      $region16: #{bidirectional_lstm.1} parent=5 // pred_fallthru
        _
      %p298 = scmp.le.s32.totalorder 1, %s16
      %p299 = scmp.lt.s32.totalorder %s16, 3
      %p300 = pnand %p298, %p299
      %p301 = pneg %p300
      // Predicated region
      $region33: #{bidirectional_lstm.1} parent=5 // pred_check
        _
      $region34: #{bidirectional_lstm.1} parent=5 // pred_check_branch
        %303 = sbr.rel (%p300) target = $region36
      $region35: #{bidirectional_lstm.1} parent=5 // pred_region
        %s304 = ssub.s32 %s16, 1
        %s305 = sand.u32 %s101, 1
        %s306 = scalar_lea.sflag [#allocation5], %s305
        %s307 = sand.u32 %s101, 1
        %s308 = smul.addr %s307, 16
        %s309 = scalar_lea.vmem [#allocation4], %s308
        // Predicated region
        $region37: #{bidirectional_lstm.1} parent=35 // pred_check
          %p310 = pneg %p114
        $region38: #{bidirectional_lstm.1} parent=35 // pred_check_branch
          %312 = sbr.rel (%p310) target = $region40
        $region39: #{bidirectional_lstm.1} parent=35 // pred_region
          %313 = dma.done %s306, 256
        $region40: #{bidirectional_lstm.1} parent=35 // pred_fallthru
          _
        %s314 = smul.u32 %s26, 2
        %s315 = ssub.s32 0, %s314
        %s316 = smul.u32 %s25, %s315
        %s317 = sadd.s32 %s26, %s316
        %s318 = smul.u32 8, %s317
        %p319 = scmp.lt.s32.totalorder %s318, 7
        %s320 = scalar_select %p319, %s318, 7
        %s321 = scalar_lea.vmem %s0, %s320
        %p322 = pneg %p62
        %p323 = pneg %p59
        %p324 = scmp.lt.s32.totalorder %s25, 1
        %s325 = scalar_select %p324, %s25, 1
        %s326 = smul.addr %s325, 2
        %s327 = smul.addr %s326, 4
        %s328 = scalar_lea.vmem %s1, %s327
        %p329 = pneg %p88
        %p330 = pneg %p85
        %s331 = sand.u32 %s101, 1
        %s332 = scalar_lea.sflag [#allocation5], %s331
        %s333 = sand.u32 %s101, 1
        %s334 = smul.addr %s333, 16
        %s335 = scalar_lea.vmem [#allocation4], %s334
        %p336 = pneg %p114
        %p337 = pneg %p111
        %p338 = scmp.lt.s32.totalorder %s25, 1
        %s339 = scalar_select %p338, %s25, 1
        %s340 = scalar_lea.vmem %s3, %s339
        %p341 = pneg %p140
        %p342 = pneg %p137
        %p343 = pneg %p176
        %p344 = pneg %p173
        %s345 = smul.u32 %s26, 2
        %s346 = ssub.s32 0, %s345
        %s347 = smul.u32 %s25, %s346
        %s348 = sadd.s32 %s26, %s347
        %s349 = smul.u32 8, %s348
        %p350 = scmp.lt.s32.totalorder %s25, 1
        %s351 = scalar_select %p350, %s25, 1
        %p352 = scmp.lt.s32.totalorder %s349, 7
        %s353 = scalar_select %p352, %s349, 7
        %s354 = smul.addr %s351, 8
        %s355 = sadd.s32 %s353, %s354
        %s356 = smul.addr %s355, 2
        %s357 = scalar_lea.vmem %s4, %s356
        %p358 = pneg %p202
        %p359 = pneg %p199
        %p360 = scmp.lt.s32.totalorder %s25, 1
        %s361 = scalar_select %p360, %s25, 1
        %s362 = smul.addr %s361, 2
        %s363 = scalar_lea.vmem %s5, %s362
        %p364 = pneg %p228
        %p365 = pneg %p225
        %p366 = scmp.lt.s32.totalorder %s25, 1
        %s367 = scalar_select %p366, %s25, 1
        %s368 = smul.addr %s367, 2
        %s369 = scalar_lea.vmem %s6, %s368
        %s370 = smul.u32 %s26, 2
        %s371 = ssub.s32 0, %s370
        %s372 = smul.u32 %s25, %s371
        %s373 = sadd.s32 %s26, %s372
        %s374 = smul.u32 8, %s373
        %p375 = scmp.lt.s32.totalorder %s374, 7
        %s376 = scalar_select %p375, %s374, 7
        %s377 = scalar_lea.vmem %s0, %s376
        %s378 = smul.u32 %s26, 2
        %s379 = ssub.s32 0, %s378
        %s380 = smul.u32 %s25, %s379
        %s381 = sadd.s32 %s26, %s380
        %s382 = smul.u32 8, %s381
        %p383 = scmp.lt.s32.totalorder %s25, 1
        %s384 = scalar_select %p383, %s25, 1
        %s385 = smul.addr %s384, 2
        %s386 = smul.addr %s385, 4
        %s387 = scalar_lea.vmem %s1, %s386
        %p388 = scmp.lt.s32.totalorder %s25, 1
        %s389 = scalar_select %p388, %s25, 1
        %s390 = scalar_lea.vmem %s3, %s389
        %s391 = smul.u32 %s26, 2
        %s392 = ssub.s32 0, %s391
        %s393 = smul.u32 %s25, %s392
        %s394 = sadd.s32 %s26, %s393
        %s395 = smul.u32 8, %s394
        %p396 = scmp.lt.s32.totalorder %s25, 1
        %s397 = scalar_select %p396, %s25, 1
        %p398 = scmp.lt.s32.totalorder %s395, 7
        %s399 = scalar_select %p398, %s395, 7
        %s400 = smul.addr %s397, 8
        %s401 = sadd.s32 %s399, %s400
        %s402 = smul.addr %s401, 2
        %s403 = scalar_lea.vmem %s4, %s402
        %s404 = smul.u32 %s26, 2
        %s405 = ssub.s32 0, %s404
        %s406 = smul.u32 %s25, %s405
        %s407 = sadd.s32 %s26, %s406
        %s408 = smul.u32 8, %s407
        %p409 = scmp.lt.s32.totalorder %s25, 1
        %s410 = scalar_select %p409, %s25, 1
        %s411 = smul.addr %s410, 2
        %s412 = scalar_lea.vmem %s5, %s411
        %p413 = scmp.lt.s32.totalorder %s25, 1
        %s414 = scalar_select %p413, %s25, 1
        %s415 = smul.addr %s414, 2
        %s416 = scalar_lea.vmem %s6, %s415
        %p418 = scmp.eq.s32.totalorder %s26, 0
        // Predicated region
        $region41: #{bidirectional_lstm.1} parent=35 // pred_check
          %p419 = pneg %p418
        $region42: #{bidirectional_lstm.1} parent=35 // pred_check_branch
          %421 = sbr.rel (%p419) target = $region44
        $region43: #{bidirectional_lstm.1} parent=35 // pred_region
          %vm422 = vcmask 254976
          %423 = vst.msk [vmem:[#allocation2] sm:$0x3] %vm422, 0.0
          %424 = vst.msk [vmem:[#allocation3] sm:$0x3] %vm422, 0.0
        $region44: #{bidirectional_lstm.1} parent=35 // pred_fallthru
          _
        %v425 = vld [vmem:[%s387] sm:$0xf]
        %v426 = vld [vmem:[%s387 + $0x4] sm:$0xf]
        %v427 = vld [vmem:[%s309] sm:$0xf]
        %v428 = vld [vmem:[%s309 + $0x4] sm:$0xf]
        %v429 = vld [vmem:[%s309 + $0x8] sm:$0xf]
        %v430 = vld [vmem:[%s309 + $0xc] sm:$0xf]
        %v431 = vld [vmem:[%s390] sm:$0x1]
        %v433 = vlaneseq
        %v434 = vshrl.u32 %v433, 7
        %v435 = vsub.s32 0, %v434
        %v436 = vrot.slane %v431, %v435
        %p438 = scmp.eq.s32.totalorder %s25, 0
        // Predicated region
        $region45: #{bidirectional_lstm.1} parent=35 // pred_check
          %p439 = pneg %p438
        $region46: #{bidirectional_lstm.1} parent=35 // pred_check_branch
          %441 = sbr.rel (%p439) target = $region48
        $region47: #{bidirectional_lstm.1} parent=35 // pred_region
          %v442 = vld [vmem:[#allocation2] sm:$0x3]
          %v443 = vld [vmem:[#allocation3] sm:$0x3]
          %v444 = vld [vmem:[%s377] sm:$0x1]
          %v445 = vpack.c.bf16 %v442, %v442
          %v450 = vunpack.c.l.b16 %v427
          %v451 = vunpack.c.l.b16 %v428
          %v452 = vunpack.c.l.b16 %v429
          %v453 = vunpack.c.l.b16 %v430
          %v454 = vpack.c.b16 %v451, %v450
          %v455 = vpack.c.b16 %v453, %v452
          %vm458 = vcmask 261120
          %v460 = vsel %vm458, %v445, 0
          %462 = vmatprep.subr.bf16.mxu0 0
          %463 = vmatpush1.bf16.msra.mxu0 0
          %464 = vmatprep.subr.bf16.mxu0 0
          %465 = vmatpush1.bf16.msra.mxu0 0
          %466 = vmatprep.subr.bf16.mxu0 0
          %467 = vmatpush1.bf16.msra.mxu0 0
          %468 = vmatprep.subr.bf16.mxu0 0
          %469 = vmatpush1.bf16.msra.mxu0 0
          %470 = vmatprep.subr.bf16.mxu0 0
          %471 = vmatpush1.bf16.msra.mxu0 0
          %472 = vmatprep.subr.bf16.mxu0 0
          %473 = vmatpush1.bf16.msra.mxu0 0
          %474 = vmatprep.subr.bf16.mxu0 0
          %475 = vmatpush1.bf16.msra.mxu0 %v455
          %476 = vmatprep.subr.bf16.mxu0 0
          %477 = vmatpush1.bf16.msra.mxu0 %v454
          %478 = vmatprep.subr.bf16.mxu0 0
          %479 = vmatpush2.bf16.msra.mxu0 0
          %480 = vmatprep.subr.bf16.mxu0 0
          %481 = vmatpush2.bf16.msra.mxu0 0
          %482 = vmatprep.subr.bf16.mxu0 0
          %483 = vmatpush2.bf16.msra.mxu0 0
          %484 = vmatprep.subr.bf16.mxu0 0
          %485 = vmatpush2.bf16.msra.mxu0 0
          %486 = vmatprep.subr.bf16.mxu0 0
          %487 = vmatpush2.bf16.msra.mxu0 0
          %488 = vmatprep.subr.bf16.mxu0 0
          %489 = vmatpush2.bf16.msra.mxu0 0
          %490 = vmatprep.subr.bf16.mxu0 0
          %491 = vmatpush2.bf16.msra.mxu0 0
          %492 = vmatprep.subr.bf16.mxu0 0
          %493 = vmatpush2.bf16.msra.mxu0 0
          %494 = vmatprep.mubr.bf16.mxu0 0
          %495 = vmatmul.mubr.bf16.gmra.mxu0 %v460
          %v496 = vpop.f32.mrf.mxu0
          %v497 = vadd.f32 0.0, %v496
          %v498 = vpop.f32.mrf.mxu0
          %v499 = vpop.f32.mrf.mxu0
          %v500 = vpop.f32.mrf.mxu0
          %501 = vdwg.mxu0
          %v504 = vunpack.c.l.b16 %v425
          %v505 = vunpack.c.l.b16 %v426
          %v506 = vpack.c.b16 %v505, %v504
          %vm508 = vcmask 130048
          %v510 = vsel %vm508, %v444, 0
          %512 = vmatprep.subr.bf16.mxu0 0
          %513 = vmatpush1.bf16.msra.mxu0 0
          %514 = vmatprep.subr.bf16.mxu0 0
          %515 = vmatpush1.bf16.msra.mxu0 0
          %516 = vmatprep.subr.bf16.mxu0 0
          %517 = vmatpush1.bf16.msra.mxu0 0
          %518 = vmatprep.subr.bf16.mxu0 0
          %519 = vmatpush1.bf16.msra.mxu0 0
          %520 = vmatprep.subr.bf16.mxu0 0
          %521 = vmatpush1.bf16.msra.mxu0 0
          %522 = vmatprep.subr.bf16.mxu0 0
          %523 = vmatpush1.bf16.msra.mxu0 0
          %524 = vmatprep.subr.bf16.mxu0 0
          %525 = vmatpush1.bf16.msra.mxu0 0
          %526 = vmatprep.subr.bf16.mxu0 0
          %527 = vmatpush1.bf16.msra.mxu0 %v506
          %528 = vmatprep.subr.bf16.mxu0 0
          %529 = vmatpush2.bf16.msra.mxu0 0
          %530 = vmatprep.subr.bf16.mxu0 0
          %531 = vmatpush2.bf16.msra.mxu0 0
          %532 = vmatprep.subr.bf16.mxu0 0
          %533 = vmatpush2.bf16.msra.mxu0 0
          %534 = vmatprep.subr.bf16.mxu0 0
          %535 = vmatpush2.bf16.msra.mxu0 0
          %536 = vmatprep.subr.bf16.mxu0 0
          %537 = vmatpush2.bf16.msra.mxu0 0
          %538 = vmatprep.subr.bf16.mxu0 0
          %539 = vmatpush2.bf16.msra.mxu0 0
          %540 = vmatprep.subr.bf16.mxu0 0
          %541 = vmatpush2.bf16.msra.mxu0 0
          %542 = vmatprep.subr.bf16.mxu0 0
          %543 = vmatpush2.bf16.msra.mxu0 0
          %544 = vmatprep.mubr.bf16.mxu0 0
          %545 = vmatmul.mubr.bf16.gmra.mxu0 %v510
          %v546 = vpop.f32.mrf.mxu0
          %v547 = vadd.f32 %v497, %v546
          %v548 = vpop.f32.mrf.mxu0
          %v549 = vpop.f32.mrf.mxu0
          %v550 = vpop.f32.mrf.mxu0
          %551 = vdwg.mxu0
          %v552 = vadd.f32 %v547, %v436
          %v553 = vxor.u32 %v552, 2147483648
          %v554 = vmul.f32 %v553, 1.442695
          %v555 = vpow.pop %v554
          %v556 = vadd.f32 %v555, 1.0
          %v557 = vrcp.pop %v556
          %v558 = vmul.f32 1.0, %v557
          %v559 = vtanh.pop %v552
          %561 = vrot.lane.b32.xlu0 %v443, 32
          %v562 = vpop.permute.xlu0 %561
          %v564 = vmul.f32 %v558, %v562
          %566 = vrot.lane.b32.xlu0 %v559, 64
          %v567 = vpop.permute.xlu0 %566
          %v569 = vmul.f32 %v558, %v567
          %571 = vrot.lane.b32.xlu0 %v569, 32
          %v572 = vpop.permute.xlu0 %571
          %v574 = vadd.f32 %v564, %v572
          %v575 = vtanh.pop %v574
          %577 = vrot.lane.b32.xlu0 %v575, 64
          %v578 = vpop.permute.xlu0 %577
          %v580 = vmul.f32 %v558, %v578
          %582 = vrot.lane.b32.xlu0 %v580, 32
          %v583 = vpop.permute.xlu0 %582
          %vm585 = vcmask 254976
          %586 = vst.msk [vmem:[%s403] sm:$0x3] %vm585, %v583
          %s587 = scalar_lea.vmem %s377, 1
          %v588 = vld [vmem:[%s587] sm:$0x1]
          %v589 = vpack.c.bf16 %v580, %v580
          %591 = vrot.lane.b32.xlu0 %v589, 32
          %v592 = vpop.permute.xlu0 %591
          %v594 = vsel %vm458, %v592, 0
          %596 = vmatprep.subr.bf16.mxu0 0
          %597 = vmatpush1.bf16.msra.mxu0 0
          %598 = vmatprep.subr.bf16.mxu0 0
          %599 = vmatpush1.bf16.msra.mxu0 0
          %600 = vmatprep.subr.bf16.mxu0 0
          %601 = vmatpush1.bf16.msra.mxu0 0
          %602 = vmatprep.subr.bf16.mxu0 0
          %603 = vmatpush1.bf16.msra.mxu0 0
          %604 = vmatprep.subr.bf16.mxu0 0
          %605 = vmatpush1.bf16.msra.mxu0 0
          %606 = vmatprep.subr.bf16.mxu0 0
          %607 = vmatpush1.bf16.msra.mxu0 0
          %608 = vmatprep.subr.bf16.mxu0 0
          %609 = vmatpush1.bf16.msra.mxu0 %v455
          %610 = vmatprep.subr.bf16.mxu0 0
          %611 = vmatpush1.bf16.msra.mxu0 %v454
          %612 = vmatprep.subr.bf16.mxu0 0
          %613 = vmatpush2.bf16.msra.mxu0 0
          %614 = vmatprep.subr.bf16.mxu0 0
          %615 = vmatpush2.bf16.msra.mxu0 0
          %616 = vmatprep.subr.bf16.mxu0 0
          %617 = vmatpush2.bf16.msra.mxu0 0
          %618 = vmatprep.subr.bf16.mxu0 0
          %619 = vmatpush2.bf16.msra.mxu0 0
          %620 = vmatprep.subr.bf16.mxu0 0
          %621 = vmatpush2.bf16.msra.mxu0 0
          %622 = vmatprep.subr.bf16.mxu0 0
          %623 = vmatpush2.bf16.msra.mxu0 0
          %624 = vmatprep.subr.bf16.mxu0 0
          %625 = vmatpush2.bf16.msra.mxu0 0
          %626 = vmatprep.subr.bf16.mxu0 0
          %627 = vmatpush2.bf16.msra.mxu0 0
          %628 = vmatprep.mubr.bf16.mxu0 0
          %629 = vmatmul.mubr.bf16.gmra.mxu0 %v594
          %v630 = vpop.f32.mrf.mxu0
          %v631 = vadd.f32 0.0, %v630
          %v632 = vpop.f32.mrf.mxu0
          %v633 = vpop.f32.mrf.mxu0
          %v634 = vpop.f32.mrf.mxu0
          %635 = vdwg.mxu0
          %v637 = vsel %vm508, %v588, 0
          %639 = vmatprep.subr.bf16.mxu0 0
          %640 = vmatpush1.bf16.msra.mxu0 0
          %641 = vmatprep.subr.bf16.mxu0 0
          %642 = vmatpush1.bf16.msra.mxu0 0
          %643 = vmatprep.subr.bf16.mxu0 0
          %644 = vmatpush1.bf16.msra.mxu0 0
          %645 = vmatprep.subr.bf16.mxu0 0
          %646 = vmatpush1.bf16.msra.mxu0 0
          %647 = vmatprep.subr.bf16.mxu0 0
          %648 = vmatpush1.bf16.msra.mxu0 0
          %649 = vmatprep.subr.bf16.mxu0 0
          %650 = vmatpush1.bf16.msra.mxu0 0
          %651 = vmatprep.subr.bf16.mxu0 0
          %652 = vmatpush1.bf16.msra.mxu0 0
          %653 = vmatprep.subr.bf16.mxu0 0
          %654 = vmatpush1.bf16.msra.mxu0 %v506
          %655 = vmatprep.subr.bf16.mxu0 0
          %656 = vmatpush2.bf16.msra.mxu0 0
          %657 = vmatprep.subr.bf16.mxu0 0
          %658 = vmatpush2.bf16.msra.mxu0 0
          %659 = vmatprep.subr.bf16.mxu0 0
          %660 = vmatpush2.bf16.msra.mxu0 0
          %661 = vmatprep.subr.bf16.mxu0 0
          %662 = vmatpush2.bf16.msra.mxu0 0
          %663 = vmatprep.subr.bf16.mxu0 0
          %664 = vmatpush2.bf16.msra.mxu0 0
          %665 = vmatprep.subr.bf16.mxu0 0
          %666 = vmatpush2.bf16.msra.mxu0 0
          %667 = vmatprep.subr.bf16.mxu0 0
          %668 = vmatpush2.bf16.msra.mxu0 0
          %669 = vmatprep.subr.bf16.mxu0 0
          %670 = vmatpush2.bf16.msra.mxu0 0
          %671 = vmatprep.mubr.bf16.mxu0 0
          %672 = vmatmul.mubr.bf16.gmra.mxu0 %v637
          %v673 = vpop.f32.mrf.mxu0
          %v674 = vadd.f32 %v631, %v673
          %v675 = vpop.f32.mrf.mxu0
          %v676 = vpop.f32.mrf.mxu0
          %v677 = vpop.f32.mrf.mxu0
          %678 = vdwg.mxu0
          %v679 = vadd.f32 %v674, %v436
          %v680 = vxor.u32 %v679, 2147483648
          %v681 = vmul.f32 %v680, 1.442695
          %v682 = vpow.pop %v681
          %v683 = vadd.f32 %v682, 1.0
          %v684 = vrcp.pop %v683
          %v685 = vmul.f32 1.0, %v684
          %v686 = vtanh.pop %v679
          %v687 = vmul.f32 %v685, %v574
          %689 = vrot.lane.b32.xlu0 %v686, 64
          %v690 = vpop.permute.xlu0 %689
          %v692 = vmul.f32 %v685, %v690
          %694 = vrot.lane.b32.xlu0 %v692, 32
          %v695 = vpop.permute.xlu0 %694
          %v697 = vadd.f32 %v687, %v695
          %v698 = vtanh.pop %v697
          %700 = vrot.lane.b32.xlu0 %v698, 64
          %v701 = vpop.permute.xlu0 %700
          %v703 = vmul.f32 %v685, %v701
          %705 = vrot.lane.b32.xlu0 %v703, 32
          %v706 = vpop.permute.xlu0 %705
          %s708 = scalar_lea.vmem %s403, 2
          %709 = vst.msk [vmem:[%s708] sm:$0x3] %vm585, %v706
          %s710 = scalar_lea.vmem %s377, 2
          %v711 = vld [vmem:[%s710] sm:$0x1]
          %v712 = vpack.c.bf16 %v703, %v703
          %714 = vrot.lane.b32.xlu0 %v712, 32
          %v715 = vpop.permute.xlu0 %714
          %v717 = vsel %vm458, %v715, 0
          %719 = vmatprep.subr.bf16.mxu0 0
          %720 = vmatpush1.bf16.msra.mxu0 0
          %721 = vmatprep.subr.bf16.mxu0 0
          %722 = vmatpush1.bf16.msra.mxu0 0
          %723 = vmatprep.subr.bf16.mxu0 0
          %724 = vmatpush1.bf16.msra.mxu0 0
          %725 = vmatprep.subr.bf16.mxu0 0
          %726 = vmatpush1.bf16.msra.mxu0 0
          %727 = vmatprep.subr.bf16.mxu0 0
          %728 = vmatpush1.bf16.msra.mxu0 0
          %729 = vmatprep.subr.bf16.mxu0 0
          %730 = vmatpush1.bf16.msra.mxu0 0
          %731 = vmatprep.subr.bf16.mxu0 0
          %732 = vmatpush1.bf16.msra.mxu0 %v455
          %733 = vmatprep.subr.bf16.mxu0 0
          %734 = vmatpush1.bf16.msra.mxu0 %v454
          %735 = vmatprep.subr.bf16.mxu0 0
          %736 = vmatpush2.bf16.msra.mxu0 0
          %737 = vmatprep.subr.bf16.mxu0 0
          %738 = vmatpush2.bf16.msra.mxu0 0
          %739 = vmatprep.subr.bf16.mxu0 0
          %740 = vmatpush2.bf16.msra.mxu0 0
          %741 = vmatprep.subr.bf16.mxu0 0
          %742 = vmatpush2.bf16.msra.mxu0 0
          %743 = vmatprep.subr.bf16.mxu0 0
          %744 = vmatpush2.bf16.msra.mxu0 0
          %745 = vmatprep.subr.bf16.mxu0 0
          %746 = vmatpush2.bf16.msra.mxu0 0
          %747 = vmatprep.subr.bf16.mxu0 0
          %748 = vmatpush2.bf16.msra.mxu0 0
          %749 = vmatprep.subr.bf16.mxu0 0
          %750 = vmatpush2.bf16.msra.mxu0 0
          %751 = vmatprep.mubr.bf16.mxu0 0
          %752 = vmatmul.mubr.bf16.gmra.mxu0 %v717
          %v753 = vpop.f32.mrf.mxu0
          %v754 = vadd.f32 0.0, %v753
          %v755 = vpop.f32.mrf.mxu0
          %v756 = vpop.f32.mrf.mxu0
          %v757 = vpop.f32.mrf.mxu0
          %758 = vdwg.mxu0
          %v760 = vsel %vm508, %v711, 0
          %762 = vmatprep.subr.bf16.mxu0 0
          %763 = vmatpush1.bf16.msra.mxu0 0
          %764 = vmatprep.subr.bf16.mxu0 0
          %765 = vmatpush1.bf16.msra.mxu0 0
          %766 = vmatprep.subr.bf16.mxu0 0
          %767 = vmatpush1.bf16.msra.mxu0 0
          %768 = vmatprep.subr.bf16.mxu0 0
          %769 = vmatpush1.bf16.msra.mxu0 0
          %770 = vmatprep.subr.bf16.mxu0 0
          %771 = vmatpush1.bf16.msra.mxu0 0
          %772 = vmatprep.subr.bf16.mxu0 0
          %773 = vmatpush1.bf16.msra.mxu0 0
          %774 = vmatprep.subr.bf16.mxu0 0
          %775 = vmatpush1.bf16.msra.mxu0 0
          %776 = vmatprep.subr.bf16.mxu0 0
          %777 = vmatpush1.bf16.msra.mxu0 %v506
          %778 = vmatprep.subr.bf16.mxu0 0
          %779 = vmatpush2.bf16.msra.mxu0 0
          %780 = vmatprep.subr.bf16.mxu0 0
          %781 = vmatpush2.bf16.msra.mxu0 0
          %782 = vmatprep.subr.bf16.mxu0 0
          %783 = vmatpush2.bf16.msra.mxu0 0
          %784 = vmatprep.subr.bf16.mxu0 0
          %785 = vmatpush2.bf16.msra.mxu0 0
          %786 = vmatprep.subr.bf16.mxu0 0
          %787 = vmatpush2.bf16.msra.mxu0 0
          %788 = vmatprep.subr.bf16.mxu0 0
          %789 = vmatpush2.bf16.msra.mxu0 0
          %790 = vmatprep.subr.bf16.mxu0 0
          %791 = vmatpush2.bf16.msra.mxu0 0
          %792 = vmatprep.subr.bf16.mxu0 0
          %793 = vmatpush2.bf16.msra.mxu0 0
          %794 = vmatprep.mubr.bf16.mxu0 0
          %795 = vmatmul.mubr.bf16.gmra.mxu0 %v760
          %v796 = vpop.f32.mrf.mxu0
          %v797 = vadd.f32 %v754, %v796
          %v798 = vpop.f32.mrf.mxu0
          %v799 = vpop.f32.mrf.mxu0
          %v800 = vpop.f32.mrf.mxu0
          %801 = vdwg.mxu0
          %v802 = vadd.f32 %v797, %v436
          %v803 = vxor.u32 %v802, 2147483648
          %v804 = vmul.f32 %v803, 1.442695
          %v805 = vpow.pop %v804
          %v806 = vadd.f32 %v805, 1.0
          %v807 = vrcp.pop %v806
          %v808 = vmul.f32 1.0, %v807
          %v809 = vtanh.pop %v802
          %v810 = vmul.f32 %v808, %v697
          %812 = vrot.lane.b32.xlu0 %v809, 64
          %v813 = vpop.permute.xlu0 %812
          %v815 = vmul.f32 %v808, %v813
          %817 = vrot.lane.b32.xlu0 %v815, 32
          %v818 = vpop.permute.xlu0 %817
          %v820 = vadd.f32 %v810, %v818
          %v821 = vtanh.pop %v820
          %823 = vrot.lane.b32.xlu0 %v821, 64
          %v824 = vpop.permute.xlu0 %823
          %v826 = vmul.f32 %v808, %v824
          %828 = vrot.lane.b32.xlu0 %v826, 32
          %v829 = vpop.permute.xlu0 %828
          %s831 = scalar_lea.vmem %s403, 4
          %832 = vst.msk [vmem:[%s831] sm:$0x3] %vm585, %v829
          %s833 = scalar_lea.vmem %s377, 3
          %v834 = vld [vmem:[%s833] sm:$0x1]
          %v835 = vpack.c.bf16 %v826, %v826
          %837 = vrot.lane.b32.xlu0 %v835, 32
          %v838 = vpop.permute.xlu0 %837
          %v840 = vsel %vm458, %v838, 0
          %842 = vmatprep.subr.bf16.mxu0 0
          %843 = vmatpush1.bf16.msra.mxu0 0
          %844 = vmatprep.subr.bf16.mxu0 0
          %845 = vmatpush1.bf16.msra.mxu0 0
          %846 = vmatprep.subr.bf16.mxu0 0
          %847 = vmatpush1.bf16.msra.mxu0 0
          %848 = vmatprep.subr.bf16.mxu0 0
          %849 = vmatpush1.bf16.msra.mxu0 0
          %850 = vmatprep.subr.bf16.mxu0 0
          %851 = vmatpush1.bf16.msra.mxu0 0
          %852 = vmatprep.subr.bf16.mxu0 0
          %853 = vmatpush1.bf16.msra.mxu0 0
          %854 = vmatprep.subr.bf16.mxu0 0
          %855 = vmatpush1.bf16.msra.mxu0 %v455
          %856 = vmatprep.subr.bf16.mxu0 0
          %857 = vmatpush1.bf16.msra.mxu0 %v454
          %858 = vmatprep.subr.bf16.mxu0 0
          %859 = vmatpush2.bf16.msra.mxu0 0
          %860 = vmatprep.subr.bf16.mxu0 0
          %861 = vmatpush2.bf16.msra.mxu0 0
          %862 = vmatprep.subr.bf16.mxu0 0
          %863 = vmatpush2.bf16.msra.mxu0 0
          %864 = vmatprep.subr.bf16.mxu0 0
          %865 = vmatpush2.bf16.msra.mxu0 0
          %866 = vmatprep.subr.bf16.mxu0 0
          %867 = vmatpush2.bf16.msra.mxu0 0
          %868 = vmatprep.subr.bf16.mxu0 0
          %869 = vmatpush2.bf16.msra.mxu0 0
          %870 = vmatprep.subr.bf16.mxu0 0
          %871 = vmatpush2.bf16.msra.mxu0 0
          %872 = vmatprep.subr.bf16.mxu0 0
          %873 = vmatpush2.bf16.msra.mxu0 0
          %874 = vmatprep.mubr.bf16.mxu0 0
          %875 = vmatmul.mubr.bf16.gmra.mxu0 %v840
          %v876 = vpop.f32.mrf.mxu0
          %v877 = vadd.f32 0.0, %v876
          %v878 = vpop.f32.mrf.mxu0
          %v879 = vpop.f32.mrf.mxu0
          %v880 = vpop.f32.mrf.mxu0
          %881 = vdwg.mxu0
          %v883 = vsel %vm508, %v834, 0
          %885 = vmatprep.subr.bf16.mxu0 0
          %886 = vmatpush1.bf16.msra.mxu0 0
          %887 = vmatprep.subr.bf16.mxu0 0
          %888 = vmatpush1.bf16.msra.mxu0 0
          %889 = vmatprep.subr.bf16.mxu0 0
          %890 = vmatpush1.bf16.msra.mxu0 0
          %891 = vmatprep.subr.bf16.mxu0 0
          %892 = vmatpush1.bf16.msra.mxu0 0
          %893 = vmatprep.subr.bf16.mxu0 0
          %894 = vmatpush1.bf16.msra.mxu0 0
          %895 = vmatprep.subr.bf16.mxu0 0
          %896 = vmatpush1.bf16.msra.mxu0 0
          %897 = vmatprep.subr.bf16.mxu0 0
          %898 = vmatpush1.bf16.msra.mxu0 0
          %899 = vmatprep.subr.bf16.mxu0 0
          %900 = vmatpush1.bf16.msra.mxu0 %v506
          %901 = vmatprep.subr.bf16.mxu0 0
          %902 = vmatpush2.bf16.msra.mxu0 0
          %903 = vmatprep.subr.bf16.mxu0 0
          %904 = vmatpush2.bf16.msra.mxu0 0
          %905 = vmatprep.subr.bf16.mxu0 0
          %906 = vmatpush2.bf16.msra.mxu0 0
          %907 = vmatprep.subr.bf16.mxu0 0
          %908 = vmatpush2.bf16.msra.mxu0 0
          %909 = vmatprep.subr.bf16.mxu0 0
          %910 = vmatpush2.bf16.msra.mxu0 0
          %911 = vmatprep.subr.bf16.mxu0 0
          %912 = vmatpush2.bf16.msra.mxu0 0
          %913 = vmatprep.subr.bf16.mxu0 0
          %914 = vmatpush2.bf16.msra.mxu0 0
          %915 = vmatprep.subr.bf16.mxu0 0
          %916 = vmatpush2.bf16.msra.mxu0 0
          %917 = vmatprep.mubr.bf16.mxu0 0
          %918 = vmatmul.mubr.bf16.gmra.mxu0 %v883
          %v919 = vpop.f32.mrf.mxu0
          %v920 = vadd.f32 %v877, %v919
          %v921 = vpop.f32.mrf.mxu0
          %v922 = vpop.f32.mrf.mxu0
          %v923 = vpop.f32.mrf.mxu0
          %924 = vdwg.mxu0
          %v925 = vadd.f32 %v920, %v436
          %v926 = vxor.u32 %v925, 2147483648
          %v927 = vmul.f32 %v926, 1.442695
          %v928 = vpow.pop %v927
          %v929 = vadd.f32 %v928, 1.0
          %v930 = vrcp.pop %v929
          %v931 = vmul.f32 1.0, %v930
          %v932 = vtanh.pop %v925
          %v933 = vmul.f32 %v931, %v820
          %935 = vrot.lane.b32.xlu0 %v932, 64
          %v936 = vpop.permute.xlu0 %935
          %v938 = vmul.f32 %v931, %v936
          %940 = vrot.lane.b32.xlu0 %v938, 32
          %v941 = vpop.permute.xlu0 %940
          %v943 = vadd.f32 %v933, %v941
          %v944 = vtanh.pop %v943
          %946 = vrot.lane.b32.xlu0 %v944, 64
          %v947 = vpop.permute.xlu0 %946
          %v949 = vmul.f32 %v931, %v947
          %951 = vrot.lane.b32.xlu0 %v949, 32
          %v952 = vpop.permute.xlu0 %951
          %s954 = scalar_lea.vmem %s403, 6
          %955 = vst.msk [vmem:[%s954] sm:$0x3] %vm585, %v952
          %s956 = scalar_lea.vmem %s377, 4
          %v957 = vld [vmem:[%s956] sm:$0x1]
          %v958 = vpack.c.bf16 %v949, %v949
          %960 = vrot.lane.b32.xlu0 %v958, 32
          %v961 = vpop.permute.xlu0 %960
          %v963 = vsel %vm458, %v961, 0
          %965 = vmatprep.subr.bf16.mxu0 0
          %966 = vmatpush1.bf16.msra.mxu0 0
          %967 = vmatprep.subr.bf16.mxu0 0
          %968 = vmatpush1.bf16.msra.mxu0 0
          %969 = vmatprep.subr.bf16.mxu0 0
          %970 = vmatpush1.bf16.msra.mxu0 0
          %971 = vmatprep.subr.bf16.mxu0 0
          %972 = vmatpush1.bf16.msra.mxu0 0
          %973 = vmatprep.subr.bf16.mxu0 0
          %974 = vmatpush1.bf16.msra.mxu0 0
          %975 = vmatprep.subr.bf16.mxu0 0
          %976 = vmatpush1.bf16.msra.mxu0 0
          %977 = vmatprep.subr.bf16.mxu0 0
          %978 = vmatpush1.bf16.msra.mxu0 %v455
          %979 = vmatprep.subr.bf16.mxu0 0
          %980 = vmatpush1.bf16.msra.mxu0 %v454
          %981 = vmatprep.subr.bf16.mxu0 0
          %982 = vmatpush2.bf16.msra.mxu0 0
          %983 = vmatprep.subr.bf16.mxu0 0
          %984 = vmatpush2.bf16.msra.mxu0 0
          %985 = vmatprep.subr.bf16.mxu0 0
          %986 = vmatpush2.bf16.msra.mxu0 0
          %987 = vmatprep.subr.bf16.mxu0 0
          %988 = vmatpush2.bf16.msra.mxu0 0
          %989 = vmatprep.subr.bf16.mxu0 0
          %990 = vmatpush2.bf16.msra.mxu0 0
          %991 = vmatprep.subr.bf16.mxu0 0
          %992 = vmatpush2.bf16.msra.mxu0 0
          %993 = vmatprep.subr.bf16.mxu0 0
          %994 = vmatpush2.bf16.msra.mxu0 0
          %995 = vmatprep.subr.bf16.mxu0 0
          %996 = vmatpush2.bf16.msra.mxu0 0
          %997 = vmatprep.mubr.bf16.mxu0 0
          %998 = vmatmul.mubr.bf16.gmra.mxu0 %v963
          %v999 = vpop.f32.mrf.mxu0
          %v1000 = vadd.f32 0.0, %v999
          %v1001 = vpop.f32.mrf.mxu0
          %v1002 = vpop.f32.mrf.mxu0
          %v1003 = vpop.f32.mrf.mxu0
          %1004 = vdwg.mxu0
          %v1006 = vsel %vm508, %v957, 0
          %1008 = vmatprep.subr.bf16.mxu0 0
          %1009 = vmatpush1.bf16.msra.mxu0 0
          %1010 = vmatprep.subr.bf16.mxu0 0
          %1011 = vmatpush1.bf16.msra.mxu0 0
          %1012 = vmatprep.subr.bf16.mxu0 0
          %1013 = vmatpush1.bf16.msra.mxu0 0
          %1014 = vmatprep.subr.bf16.mxu0 0
          %1015 = vmatpush1.bf16.msra.mxu0 0
          %1016 = vmatprep.subr.bf16.mxu0 0
          %1017 = vmatpush1.bf16.msra.mxu0 0
          %1018 = vmatprep.subr.bf16.mxu0 0
          %1019 = vmatpush1.bf16.msra.mxu0 0
          %1020 = vmatprep.subr.bf16.mxu0 0
          %1021 = vmatpush1.bf16.msra.mxu0 0
          %1022 = vmatprep.subr.bf16.mxu0 0
          %1023 = vmatpush1.bf16.msra.mxu0 %v506
          %1024 = vmatprep.subr.bf16.mxu0 0
          %1025 = vmatpush2.bf16.msra.mxu0 0
          %1026 = vmatprep.subr.bf16.mxu0 0
          %1027 = vmatpush2.bf16.msra.mxu0 0
          %1028 = vmatprep.subr.bf16.mxu0 0
          %1029 = vmatpush2.bf16.msra.mxu0 0
          %1030 = vmatprep.subr.bf16.mxu0 0
          %1031 = vmatpush2.bf16.msra.mxu0 0
          %1032 = vmatprep.subr.bf16.mxu0 0
          %1033 = vmatpush2.bf16.msra.mxu0 0
          %1034 = vmatprep.subr.bf16.mxu0 0
          %1035 = vmatpush2.bf16.msra.mxu0 0
          %1036 = vmatprep.subr.bf16.mxu0 0
          %1037 = vmatpush2.bf16.msra.mxu0 0
          %1038 = vmatprep.subr.bf16.mxu0 0
          %1039 = vmatpush2.bf16.msra.mxu0 0
          %1040 = vmatprep.mubr.bf16.mxu0 0
          %1041 = vmatmul.mubr.bf16.gmra.mxu0 %v1006
          %v1042 = vpop.f32.mrf.mxu0
          %v1043 = vadd.f32 %v1000, %v1042
          %v1044 = vpop.f32.mrf.mxu0
          %v1045 = vpop.f32.mrf.mxu0
          %v1046 = vpop.f32.mrf.mxu0
          %1047 = vdwg.mxu0
          %v1048 = vadd.f32 %v1043, %v436
          %v1049 = vxor.u32 %v1048, 2147483648
          %v1050 = vmul.f32 %v1049, 1.442695
          %v1051 = vpow.pop %v1050
          %v1052 = vadd.f32 %v1051, 1.0
          %v1053 = vrcp.pop %v1052
          %v1054 = vmul.f32 1.0, %v1053
          %v1055 = vtanh.pop %v1048
          %v1056 = vmul.f32 %v1054, %v943
          %1058 = vrot.lane.b32.xlu0 %v1055, 64
          %v1059 = vpop.permute.xlu0 %1058
          %v1061 = vmul.f32 %v1054, %v1059
          %1063 = vrot.lane.b32.xlu0 %v1061, 32
          %v1064 = vpop.permute.xlu0 %1063
          %v1066 = vadd.f32 %v1056, %v1064
          %v1067 = vtanh.pop %v1066
          %1069 = vrot.lane.b32.xlu0 %v1067, 64
          %v1070 = vpop.permute.xlu0 %1069
          %v1072 = vmul.f32 %v1054, %v1070
          %1074 = vrot.lane.b32.xlu0 %v1072, 32
          %v1075 = vpop.permute.xlu0 %1074
          %s1077 = scalar_lea.vmem %s403, 8
          %1078 = vst.msk [vmem:[%s1077] sm:$0x3] %vm585, %v1075
          %s1079 = scalar_lea.vmem %s377, 5
          %v1080 = vld [vmem:[%s1079] sm:$0x1]
          %v1081 = vpack.c.bf16 %v1072, %v1072
          %1083 = vrot.lane.b32.xlu0 %v1081, 32
          %v1084 = vpop.permute.xlu0 %1083
          %v1086 = vsel %vm458, %v1084, 0
          %1088 = vmatprep.subr.bf16.mxu0 0
          %1089 = vmatpush1.bf16.msra.mxu0 0
          %1090 = vmatprep.subr.bf16.mxu0 0
          %1091 = vmatpush1.bf16.msra.mxu0 0
          %1092 = vmatprep.subr.bf16.mxu0 0
          %1093 = vmatpush1.bf16.msra.mxu0 0
          %1094 = vmatprep.subr.bf16.mxu0 0
          %1095 = vmatpush1.bf16.msra.mxu0 0
          %1096 = vmatprep.subr.bf16.mxu0 0
          %1097 = vmatpush1.bf16.msra.mxu0 0
          %1098 = vmatprep.subr.bf16.mxu0 0
          %1099 = vmatpush1.bf16.msra.mxu0 0
          %1100 = vmatprep.subr.bf16.mxu0 0
          %1101 = vmatpush1.bf16.msra.mxu0 %v455
          %1102 = vmatprep.subr.bf16.mxu0 0
          %1103 = vmatpush1.bf16.msra.mxu0 %v454
          %1104 = vmatprep.subr.bf16.mxu0 0
          %1105 = vmatpush2.bf16.msra.mxu0 0
          %1106 = vmatprep.subr.bf16.mxu0 0
          %1107 = vmatpush2.bf16.msra.mxu0 0
          %1108 = vmatprep.subr.bf16.mxu0 0
          %1109 = vmatpush2.bf16.msra.mxu0 0
          %1110 = vmatprep.subr.bf16.mxu0 0
          %1111 = vmatpush2.bf16.msra.mxu0 0
          %1112 = vmatprep.subr.bf16.mxu0 0
          %1113 = vmatpush2.bf16.msra.mxu0 0
          %1114 = vmatprep.subr.bf16.mxu0 0
          %1115 = vmatpush2.bf16.msra.mxu0 0
          %1116 = vmatprep.subr.bf16.mxu0 0
          %1117 = vmatpush2.bf16.msra.mxu0 0
          %1118 = vmatprep.subr.bf16.mxu0 0
          %1119 = vmatpush2.bf16.msra.mxu0 0
          %1120 = vmatprep.mubr.bf16.mxu0 0
          %1121 = vmatmul.mubr.bf16.gmra.mxu0 %v1086
          %v1122 = vpop.f32.mrf.mxu0
          %v1123 = vadd.f32 0.0, %v1122
          %v1124 = vpop.f32.mrf.mxu0
          %v1125 = vpop.f32.mrf.mxu0
          %v1126 = vpop.f32.mrf.mxu0
          %1127 = vdwg.mxu0
          %v1129 = vsel %vm508, %v1080, 0
          %1131 = vmatprep.subr.bf16.mxu0 0
          %1132 = vmatpush1.bf16.msra.mxu0 0
          %1133 = vmatprep.subr.bf16.mxu0 0
          %1134 = vmatpush1.bf16.msra.mxu0 0
          %1135 = vmatprep.subr.bf16.mxu0 0
          %1136 = vmatpush1.bf16.msra.mxu0 0
          %1137 = vmatprep.subr.bf16.mxu0 0
          %1138 = vmatpush1.bf16.msra.mxu0 0
          %1139 = vmatprep.subr.bf16.mxu0 0
          %1140 = vmatpush1.bf16.msra.mxu0 0
          %1141 = vmatprep.subr.bf16.mxu0 0
          %1142 = vmatpush1.bf16.msra.mxu0 0
          %1143 = vmatprep.subr.bf16.mxu0 0
          %1144 = vmatpush1.bf16.msra.mxu0 0
          %1145 = vmatprep.subr.bf16.mxu0 0
          %1146 = vmatpush1.bf16.msra.mxu0 %v506
          %1147 = vmatprep.subr.bf16.mxu0 0
          %1148 = vmatpush2.bf16.msra.mxu0 0
          %1149 = vmatprep.subr.bf16.mxu0 0
          %1150 = vmatpush2.bf16.msra.mxu0 0
          %1151 = vmatprep.subr.bf16.mxu0 0
          %1152 = vmatpush2.bf16.msra.mxu0 0
          %1153 = vmatprep.subr.bf16.mxu0 0
          %1154 = vmatpush2.bf16.msra.mxu0 0
          %1155 = vmatprep.subr.bf16.mxu0 0
          %1156 = vmatpush2.bf16.msra.mxu0 0
          %1157 = vmatprep.subr.bf16.mxu0 0
          %1158 = vmatpush2.bf16.msra.mxu0 0
          %1159 = vmatprep.subr.bf16.mxu0 0
          %1160 = vmatpush2.bf16.msra.mxu0 0
          %1161 = vmatprep.subr.bf16.mxu0 0
          %1162 = vmatpush2.bf16.msra.mxu0 0
          %1163 = vmatprep.mubr.bf16.mxu0 0
          %1164 = vmatmul.mubr.bf16.gmra.mxu0 %v1129
          %v1165 = vpop.f32.mrf.mxu0
          %v1166 = vadd.f32 %v1123, %v1165
          %v1167 = vpop.f32.mrf.mxu0
          %v1168 = vpop.f32.mrf.mxu0
          %v1169 = vpop.f32.mrf.mxu0
          %1170 = vdwg.mxu0
          %v1171 = vadd.f32 %v1166, %v436
          %v1172 = vxor.u32 %v1171, 2147483648
          %v1173 = vmul.f32 %v1172, 1.442695
          %v1174 = vpow.pop %v1173
          %v1175 = vadd.f32 %v1174, 1.0
          %v1176 = vrcp.pop %v1175
          %v1177 = vmul.f32 1.0, %v1176
          %v1178 = vtanh.pop %v1171
          %v1179 = vmul.f32 %v1177, %v1066
          %1181 = vrot.lane.b32.xlu0 %v1178, 64
          %v1182 = vpop.permute.xlu0 %1181
          %v1184 = vmul.f32 %v1177, %v1182
          %1186 = vrot.lane.b32.xlu0 %v1184, 32
          %v1187 = vpop.permute.xlu0 %1186
          %v1189 = vadd.f32 %v1179, %v1187
          %v1190 = vtanh.pop %v1189
          %1192 = vrot.lane.b32.xlu0 %v1190, 64
          %v1193 = vpop.permute.xlu0 %1192
          %v1195 = vmul.f32 %v1177, %v1193
          %1197 = vrot.lane.b32.xlu0 %v1195, 32
          %v1198 = vpop.permute.xlu0 %1197
          %s1200 = scalar_lea.vmem %s403, 10
          %1201 = vst.msk [vmem:[%s1200] sm:$0x3] %vm585, %v1198
          %s1202 = scalar_lea.vmem %s377, 6
          %v1203 = vld [vmem:[%s1202] sm:$0x1]
          %v1204 = vpack.c.bf16 %v1195, %v1195
          %1206 = vrot.lane.b32.xlu0 %v1204, 32
          %v1207 = vpop.permute.xlu0 %1206
          %v1209 = vsel %vm458, %v1207, 0
          %1211 = vmatprep.subr.bf16.mxu0 0
          %1212 = vmatpush1.bf16.msra.mxu0 0
          %1213 = vmatprep.subr.bf16.mxu0 0
          %1214 = vmatpush1.bf16.msra.mxu0 0
          %1215 = vmatprep.subr.bf16.mxu0 0
          %1216 = vmatpush1.bf16.msra.mxu0 0
          %1217 = vmatprep.subr.bf16.mxu0 0
          %1218 = vmatpush1.bf16.msra.mxu0 0
          %1219 = vmatprep.subr.bf16.mxu0 0
          %1220 = vmatpush1.bf16.msra.mxu0 0
          %1221 = vmatprep.subr.bf16.mxu0 0
          %1222 = vmatpush1.bf16.msra.mxu0 0
          %1223 = vmatprep.subr.bf16.mxu0 0
          %1224 = vmatpush1.bf16.msra.mxu0 %v455
          %1225 = vmatprep.subr.bf16.mxu0 0
          %1226 = vmatpush1.bf16.msra.mxu0 %v454
          %1227 = vmatprep.subr.bf16.mxu0 0
          %1228 = vmatpush2.bf16.msra.mxu0 0
          %1229 = vmatprep.subr.bf16.mxu0 0
          %1230 = vmatpush2.bf16.msra.mxu0 0
          %1231 = vmatprep.subr.bf16.mxu0 0
          %1232 = vmatpush2.bf16.msra.mxu0 0
          %1233 = vmatprep.subr.bf16.mxu0 0
          %1234 = vmatpush2.bf16.msra.mxu0 0
          %1235 = vmatprep.subr.bf16.mxu0 0
          %1236 = vmatpush2.bf16.msra.mxu0 0
          %1237 = vmatprep.subr.bf16.mxu0 0
          %1238 = vmatpush2.bf16.msra.mxu0 0
          %1239 = vmatprep.subr.bf16.mxu0 0
          %1240 = vmatpush2.bf16.msra.mxu0 0
          %1241 = vmatprep.subr.bf16.mxu0 0
          %1242 = vmatpush2.bf16.msra.mxu0 0
          %1243 = vmatprep.mubr.bf16.mxu0 0
          %1244 = vmatmul.mubr.bf16.gmra.mxu0 %v1209
          %v1245 = vpop.f32.mrf.mxu0
          %v1246 = vadd.f32 0.0, %v1245
          %v1247 = vpop.f32.mrf.mxu0
          %v1248 = vpop.f32.mrf.mxu0
          %v1249 = vpop.f32.mrf.mxu0
          %1250 = vdwg.mxu0
          %v1252 = vsel %vm508, %v1203, 0
          %1254 = vmatprep.subr.bf16.mxu0 0
          %1255 = vmatpush1.bf16.msra.mxu0 0
          %1256 = vmatprep.subr.bf16.mxu0 0
          %1257 = vmatpush1.bf16.msra.mxu0 0
          %1258 = vmatprep.subr.bf16.mxu0 0
          %1259 = vmatpush1.bf16.msra.mxu0 0
          %1260 = vmatprep.subr.bf16.mxu0 0
          %1261 = vmatpush1.bf16.msra.mxu0 0
          %1262 = vmatprep.subr.bf16.mxu0 0
          %1263 = vmatpush1.bf16.msra.mxu0 0
          %1264 = vmatprep.subr.bf16.mxu0 0
          %1265 = vmatpush1.bf16.msra.mxu0 0
          %1266 = vmatprep.subr.bf16.mxu0 0
          %1267 = vmatpush1.bf16.msra.mxu0 0
          %1268 = vmatprep.subr.bf16.mxu0 0
          %1269 = vmatpush1.bf16.msra.mxu0 %v506
          %1270 = vmatprep.subr.bf16.mxu0 0
          %1271 = vmatpush2.bf16.msra.mxu0 0
          %1272 = vmatprep.subr.bf16.mxu0 0
          %1273 = vmatpush2.bf16.msra.mxu0 0
          %1274 = vmatprep.subr.bf16.mxu0 0
          %1275 = vmatpush2.bf16.msra.mxu0 0
          %1276 = vmatprep.subr.bf16.mxu0 0
          %1277 = vmatpush2.bf16.msra.mxu0 0
          %1278 = vmatprep.subr.bf16.mxu0 0
          %1279 = vmatpush2.bf16.msra.mxu0 0
          %1280 = vmatprep.subr.bf16.mxu0 0
          %1281 = vmatpush2.bf16.msra.mxu0 0
          %1282 = vmatprep.subr.bf16.mxu0 0
          %1283 = vmatpush2.bf16.msra.mxu0 0
          %1284 = vmatprep.subr.bf16.mxu0 0
          %1285 = vmatpush2.bf16.msra.mxu0 0
          %1286 = vmatprep.mubr.bf16.mxu0 0
          %1287 = vmatmul.mubr.bf16.gmra.mxu0 %v1252
          %v1288 = vpop.f32.mrf.mxu0
          %v1289 = vadd.f32 %v1246, %v1288
          %v1290 = vpop.f32.mrf.mxu0
          %v1291 = vpop.f32.mrf.mxu0
          %v1292 = vpop.f32.mrf.mxu0
          %1293 = vdwg.mxu0
          %v1294 = vadd.f32 %v1289, %v436
          %v1295 = vxor.u32 %v1294, 2147483648
          %v1296 = vmul.f32 %v1295, 1.442695
          %v1297 = vpow.pop %v1296
          %v1298 = vadd.f32 %v1297, 1.0
          %v1299 = vrcp.pop %v1298
          %v1300 = vmul.f32 1.0, %v1299
          %v1301 = vtanh.pop %v1294
          %v1302 = vmul.f32 %v1300, %v1189
          %1304 = vrot.lane.b32.xlu0 %v1301, 64
          %v1305 = vpop.permute.xlu0 %1304
          %v1307 = vmul.f32 %v1300, %v1305
          %1309 = vrot.lane.b32.xlu0 %v1307, 32
          %v1310 = vpop.permute.xlu0 %1309
          %v1312 = vadd.f32 %v1302, %v1310
          %v1313 = vtanh.pop %v1312
          %1315 = vrot.lane.b32.xlu0 %v1313, 64
          %v1316 = vpop.permute.xlu0 %1315
          %v1318 = vmul.f32 %v1300, %v1316
          %1320 = vrot.lane.b32.xlu0 %v1318, 32
          %v1321 = vpop.permute.xlu0 %1320
          %s1323 = scalar_lea.vmem %s403, 12
          %1324 = vst.msk [vmem:[%s1323] sm:$0x3] %vm585, %v1321
          %s1325 = scalar_lea.vmem %s377, 7
          %v1326 = vld [vmem:[%s1325] sm:$0x1]
          %v1327 = vpack.c.bf16 %v1318, %v1318
          %1329 = vrot.lane.b32.xlu0 %v1327, 32
          %v1330 = vpop.permute.xlu0 %1329
          %v1332 = vsel %vm458, %v1330, 0
          %1334 = vmatprep.subr.bf16.mxu0 0
          %1335 = vmatpush1.bf16.msra.mxu0 0
          %1336 = vmatprep.subr.bf16.mxu0 0
          %1337 = vmatpush1.bf16.msra.mxu0 0
          %1338 = vmatprep.subr.bf16.mxu0 0
          %1339 = vmatpush1.bf16.msra.mxu0 0
          %1340 = vmatprep.subr.bf16.mxu0 0
          %1341 = vmatpush1.bf16.msra.mxu0 0
          %1342 = vmatprep.subr.bf16.mxu0 0
          %1343 = vmatpush1.bf16.msra.mxu0 0
          %1344 = vmatprep.subr.bf16.mxu0 0
          %1345 = vmatpush1.bf16.msra.mxu0 0
          %1346 = vmatprep.subr.bf16.mxu0 0
          %1347 = vmatpush1.bf16.msra.mxu0 %v455
          %1348 = vmatprep.subr.bf16.mxu0 0
          %1349 = vmatpush1.bf16.msra.mxu0 %v454
          %1350 = vmatprep.subr.bf16.mxu0 0
          %1351 = vmatpush2.bf16.msra.mxu0 0
          %1352 = vmatprep.subr.bf16.mxu0 0
          %1353 = vmatpush2.bf16.msra.mxu0 0
          %1354 = vmatprep.subr.bf16.mxu0 0
          %1355 = vmatpush2.bf16.msra.mxu0 0
          %1356 = vmatprep.subr.bf16.mxu0 0
          %1357 = vmatpush2.bf16.msra.mxu0 0
          %1358 = vmatprep.subr.bf16.mxu0 0
          %1359 = vmatpush2.bf16.msra.mxu0 0
          %1360 = vmatprep.subr.bf16.mxu0 0
          %1361 = vmatpush2.bf16.msra.mxu0 0
          %1362 = vmatprep.subr.bf16.mxu0 0
          %1363 = vmatpush2.bf16.msra.mxu0 0
          %1364 = vmatprep.subr.bf16.mxu0 0
          %1365 = vmatpush2.bf16.msra.mxu0 0
          %1366 = vmatprep.mubr.bf16.mxu0 0
          %1367 = vmatmul.mubr.bf16.gmra.mxu0 %v1332
          %v1368 = vpop.f32.mrf.mxu0
          %v1369 = vadd.f32 0.0, %v1368
          %v1370 = vpop.f32.mrf.mxu0
          %v1371 = vpop.f32.mrf.mxu0
          %v1372 = vpop.f32.mrf.mxu0
          %1373 = vdwg.mxu0
          %v1375 = vsel %vm508, %v1326, 0
          %1377 = vmatprep.subr.bf16.mxu0 0
          %1378 = vmatpush1.bf16.msra.mxu0 0
          %1379 = vmatprep.subr.bf16.mxu0 0
          %1380 = vmatpush1.bf16.msra.mxu0 0
          %1381 = vmatprep.subr.bf16.mxu0 0
          %1382 = vmatpush1.bf16.msra.mxu0 0
          %1383 = vmatprep.subr.bf16.mxu0 0
          %1384 = vmatpush1.bf16.msra.mxu0 0
          %1385 = vmatprep.subr.bf16.mxu0 0
          %1386 = vmatpush1.bf16.msra.mxu0 0
          %1387 = vmatprep.subr.bf16.mxu0 0
          %1388 = vmatpush1.bf16.msra.mxu0 0
          %1389 = vmatprep.subr.bf16.mxu0 0
          %1390 = vmatpush1.bf16.msra.mxu0 0
          %1391 = vmatprep.subr.bf16.mxu0 0
          %1392 = vmatpush1.bf16.msra.mxu0 %v506
          %1393 = vmatprep.subr.bf16.mxu0 0
          %1394 = vmatpush2.bf16.msra.mxu0 0
          %1395 = vmatprep.subr.bf16.mxu0 0
          %1396 = vmatpush2.bf16.msra.mxu0 0
          %1397 = vmatprep.subr.bf16.mxu0 0
          %1398 = vmatpush2.bf16.msra.mxu0 0
          %1399 = vmatprep.subr.bf16.mxu0 0
          %1400 = vmatpush2.bf16.msra.mxu0 0
          %1401 = vmatprep.subr.bf16.mxu0 0
          %1402 = vmatpush2.bf16.msra.mxu0 0
          %1403 = vmatprep.subr.bf16.mxu0 0
          %1404 = vmatpush2.bf16.msra.mxu0 0
          %1405 = vmatprep.subr.bf16.mxu0 0
          %1406 = vmatpush2.bf16.msra.mxu0 0
          %1407 = vmatprep.subr.bf16.mxu0 0
          %1408 = vmatpush2.bf16.msra.mxu0 0
          %1409 = vmatprep.mubr.bf16.mxu0 0
          %1410 = vmatmul.mubr.bf16.gmra.mxu0 %v1375
          %v1411 = vpop.f32.mrf.mxu0
          %v1412 = vadd.f32 %v1369, %v1411
          %v1413 = vpop.f32.mrf.mxu0
          %v1414 = vpop.f32.mrf.mxu0
          %v1415 = vpop.f32.mrf.mxu0
          %1416 = vdwg.mxu0
          %v1417 = vadd.f32 %v1412, %v436
          %v1418 = vxor.u32 %v1417, 2147483648
          %v1419 = vmul.f32 %v1418, 1.442695
          %v1420 = vpow.pop %v1419
          %v1421 = vadd.f32 %v1420, 1.0
          %v1422 = vrcp.pop %v1421
          %v1423 = vmul.f32 1.0, %v1422
          %v1424 = vtanh.pop %v1417
          %v1425 = vmul.f32 %v1423, %v1312
          %1427 = vrot.lane.b32.xlu0 %v1424, 64
          %v1428 = vpop.permute.xlu0 %1427
          %v1430 = vmul.f32 %v1423, %v1428
          %1432 = vrot.lane.b32.xlu0 %v1430, 32
          %v1433 = vpop.permute.xlu0 %1432
          %v1435 = vadd.f32 %v1425, %v1433
          %v1436 = vtanh.pop %v1435
          %1438 = vrot.lane.b32.xlu0 %v1436, 64
          %v1439 = vpop.permute.xlu0 %1438
          %v1441 = vmul.f32 %v1423, %v1439
          %1443 = vrot.lane.b32.xlu0 %v1441, 32
          %v1444 = vpop.permute.xlu0 %1443
          %s1446 = scalar_lea.vmem %s403, 14
          %1447 = vst.msk [vmem:[%s1446] sm:$0x3] %vm585, %v1444
          %1448 = vst.msk [vmem:[#allocation2] sm:$0x3] %vm585, %v1444
          %1450 = vrot.lane.b32.xlu0 %v1435, 96
          %v1451 = vpop.permute.xlu0 %1450
          %1453 = vst.msk [vmem:[#allocation3] sm:$0x3] %vm585, %v1451
        $region48: #{bidirectional_lstm.1} parent=35 // pred_fallthru
          _
        %p1454 = scmp.eq.s32.totalorder %s25, 1
        // Predicated region
        $region49: #{bidirectional_lstm.1} parent=35 // pred_check
          %p1455 = pneg %p1454
        $region50: #{bidirectional_lstm.1} parent=35 // pred_check_branch
          %1457 = sbr.rel (%p1455) target = $region52
        $region51: #{bidirectional_lstm.1} parent=35 // pred_region
          %v1458 = vld [vmem:[#allocation2] sm:$0x3]
          %v1459 = vld [vmem:[#allocation3] sm:$0x3]
          %s1460 = scalar_lea.vmem %s377, 7
          %v1461 = vld [vmem:[%s1460] sm:$0x1]
          %v1462 = vpack.c.bf16 %v1458, %v1458
          %v1467 = vunpack.c.l.b16 %v427
          %v1468 = vunpack.c.l.b16 %v428
          %v1469 = vunpack.c.l.b16 %v429
          %v1470 = vunpack.c.l.b16 %v430
          %v1471 = vpack.c.b16 %v1468, %v1467
          %v1472 = vpack.c.b16 %v1470, %v1469
          %vm1475 = vcmask 261120
          %v1477 = vsel %vm1475, %v1462, 0
          %1479 = vmatprep.subr.bf16.mxu0 0
          %1480 = vmatpush1.bf16.msra.mxu0 0
          %1481 = vmatprep.subr.bf16.mxu0 0
          %1482 = vmatpush1.bf16.msra.mxu0 0
          %1483 = vmatprep.subr.bf16.mxu0 0
          %1484 = vmatpush1.bf16.msra.mxu0 0
          %1485 = vmatprep.subr.bf16.mxu0 0
          %1486 = vmatpush1.bf16.msra.mxu0 0
          %1487 = vmatprep.subr.bf16.mxu0 0
          %1488 = vmatpush1.bf16.msra.mxu0 0
          %1489 = vmatprep.subr.bf16.mxu0 0
          %1490 = vmatpush1.bf16.msra.mxu0 0
          %1491 = vmatprep.subr.bf16.mxu0 0
          %1492 = vmatpush1.bf16.msra.mxu0 %v1472
          %1493 = vmatprep.subr.bf16.mxu0 0
          %1494 = vmatpush1.bf16.msra.mxu0 %v1471
          %1495 = vmatprep.subr.bf16.mxu0 0
          %1496 = vmatpush2.bf16.msra.mxu0 0
          %1497 = vmatprep.subr.bf16.mxu0 0
          %1498 = vmatpush2.bf16.msra.mxu0 0
          %1499 = vmatprep.subr.bf16.mxu0 0
          %1500 = vmatpush2.bf16.msra.mxu0 0
          %1501 = vmatprep.subr.bf16.mxu0 0
          %1502 = vmatpush2.bf16.msra.mxu0 0
          %1503 = vmatprep.subr.bf16.mxu0 0
          %1504 = vmatpush2.bf16.msra.mxu0 0
          %1505 = vmatprep.subr.bf16.mxu0 0
          %1506 = vmatpush2.bf16.msra.mxu0 0
          %1507 = vmatprep.subr.bf16.mxu0 0
          %1508 = vmatpush2.bf16.msra.mxu0 0
          %1509 = vmatprep.subr.bf16.mxu0 0
          %1510 = vmatpush2.bf16.msra.mxu0 0
          %1511 = vmatprep.mubr.bf16.mxu0 0
          %1512 = vmatmul.mubr.bf16.gmra.mxu0 %v1477
          %v1513 = vpop.f32.mrf.mxu0
          %v1514 = vadd.f32 0.0, %v1513
          %v1515 = vpop.f32.mrf.mxu0
          %v1516 = vpop.f32.mrf.mxu0
          %v1517 = vpop.f32.mrf.mxu0
          %1518 = vdwg.mxu0
          %v1521 = vunpack.c.l.b16 %v425
          %v1522 = vunpack.c.l.b16 %v426
          %v1523 = vpack.c.b16 %v1522, %v1521
          %vm1525 = vcmask 130048
          %v1527 = vsel %vm1525, %v1461, 0
          %1529 = vmatprep.subr.bf16.mxu0 0
          %1530 = vmatpush1.bf16.msra.mxu0 0
          %1531 = vmatprep.subr.bf16.mxu0 0
          %1532 = vmatpush1.bf16.msra.mxu0 0
          %1533 = vmatprep.subr.bf16.mxu0 0
          %1534 = vmatpush1.bf16.msra.mxu0 0
          %1535 = vmatprep.subr.bf16.mxu0 0
          %1536 = vmatpush1.bf16.msra.mxu0 0
          %1537 = vmatprep.subr.bf16.mxu0 0
          %1538 = vmatpush1.bf16.msra.mxu0 0
          %1539 = vmatprep.subr.bf16.mxu0 0
          %1540 = vmatpush1.bf16.msra.mxu0 0
          %1541 = vmatprep.subr.bf16.mxu0 0
          %1542 = vmatpush1.bf16.msra.mxu0 0
          %1543 = vmatprep.subr.bf16.mxu0 0
          %1544 = vmatpush1.bf16.msra.mxu0 %v1523
          %1545 = vmatprep.subr.bf16.mxu0 0
          %1546 = vmatpush2.bf16.msra.mxu0 0
          %1547 = vmatprep.subr.bf16.mxu0 0
          %1548 = vmatpush2.bf16.msra.mxu0 0
          %1549 = vmatprep.subr.bf16.mxu0 0
          %1550 = vmatpush2.bf16.msra.mxu0 0
          %1551 = vmatprep.subr.bf16.mxu0 0
          %1552 = vmatpush2.bf16.msra.mxu0 0
          %1553 = vmatprep.subr.bf16.mxu0 0
          %1554 = vmatpush2.bf16.msra.mxu0 0
          %1555 = vmatprep.subr.bf16.mxu0 0
          %1556 = vmatpush2.bf16.msra.mxu0 0
          %1557 = vmatprep.subr.bf16.mxu0 0
          %1558 = vmatpush2.bf16.msra.mxu0 0
          %1559 = vmatprep.subr.bf16.mxu0 0
          %1560 = vmatpush2.bf16.msra.mxu0 0
          %1561 = vmatprep.mubr.bf16.mxu0 0
          %1562 = vmatmul.mubr.bf16.gmra.mxu0 %v1527
          %v1563 = vpop.f32.mrf.mxu0
          %v1564 = vadd.f32 %v1514, %v1563
          %v1565 = vpop.f32.mrf.mxu0
          %v1566 = vpop.f32.mrf.mxu0
          %v1567 = vpop.f32.mrf.mxu0
          %1568 = vdwg.mxu0
          %v1569 = vadd.f32 %v1564, %v436
          %v1570 = vxor.u32 %v1569, 2147483648
          %v1571 = vmul.f32 %v1570, 1.442695
          %v1572 = vpow.pop %v1571
          %v1573 = vadd.f32 %v1572, 1.0
          %v1574 = vrcp.pop %v1573
          %v1575 = vmul.f32 1.0, %v1574
          %v1576 = vtanh.pop %v1569
          %1578 = vrot.lane.b32.xlu0 %v1459, 32
          %v1579 = vpop.permute.xlu0 %1578
          %v1581 = vmul.f32 %v1575, %v1579
          %1583 = vrot.lane.b32.xlu0 %v1576, 64
          %v1584 = vpop.permute.xlu0 %1583
          %v1586 = vmul.f32 %v1575, %v1584
          %1588 = vrot.lane.b32.xlu0 %v1586, 32
          %v1589 = vpop.permute.xlu0 %1588
          %v1591 = vadd.f32 %v1581, %v1589
          %v1592 = vtanh.pop %v1591
          %1594 = vrot.lane.b32.xlu0 %v1592, 64
          %v1595 = vpop.permute.xlu0 %1594
          %v1597 = vmul.f32 %v1575, %v1595
          %1599 = vrot.lane.b32.xlu0 %v1597, 32
          %v1600 = vpop.permute.xlu0 %1599
          %s1602 = scalar_lea.vmem %s403, 14
          %vm1603 = vcmask 254976
          %1604 = vst.msk [vmem:[%s1602] sm:$0x3] %vm1603, %v1600
          %s1605 = scalar_lea.vmem %s377, 6
          %v1606 = vld [vmem:[%s1605] sm:$0x1]
          %v1607 = vpack.c.bf16 %v1597, %v1597
          %1609 = vrot.lane.b32.xlu0 %v1607, 32
          %v1610 = vpop.permute.xlu0 %1609
          %v1612 = vsel %vm1475, %v1610, 0
          %1614 = vmatprep.subr.bf16.mxu0 0
          %1615 = vmatpush1.bf16.msra.mxu0 0
          %1616 = vmatprep.subr.bf16.mxu0 0
          %1617 = vmatpush1.bf16.msra.mxu0 0
          %1618 = vmatprep.subr.bf16.mxu0 0
          %1619 = vmatpush1.bf16.msra.mxu0 0
          %1620 = vmatprep.subr.bf16.mxu0 0
          %1621 = vmatpush1.bf16.msra.mxu0 0
          %1622 = vmatprep.subr.bf16.mxu0 0
          %1623 = vmatpush1.bf16.msra.mxu0 0
          %1624 = vmatprep.subr.bf16.mxu0 0
          %1625 = vmatpush1.bf16.msra.mxu0 0
          %1626 = vmatprep.subr.bf16.mxu0 0
          %1627 = vmatpush1.bf16.msra.mxu0 %v1472
          %1628 = vmatprep.subr.bf16.mxu0 0
          %1629 = vmatpush1.bf16.msra.mxu0 %v1471
          %1630 = vmatprep.subr.bf16.mxu0 0
          %1631 = vmatpush2.bf16.msra.mxu0 0
          %1632 = vmatprep.subr.bf16.mxu0 0
          %1633 = vmatpush2.bf16.msra.mxu0 0
          %1634 = vmatprep.subr.bf16.mxu0 0
          %1635 = vmatpush2.bf16.msra.mxu0 0
          %1636 = vmatprep.subr.bf16.mxu0 0
          %1637 = vmatpush2.bf16.msra.mxu0 0
          %1638 = vmatprep.subr.bf16.mxu0 0
          %1639 = vmatpush2.bf16.msra.mxu0 0
          %1640 = vmatprep.subr.bf16.mxu0 0
          %1641 = vmatpush2.bf16.msra.mxu0 0
          %1642 = vmatprep.subr.bf16.mxu0 0
          %1643 = vmatpush2.bf16.msra.mxu0 0
          %1644 = vmatprep.subr.bf16.mxu0 0
          %1645 = vmatpush2.bf16.msra.mxu0 0
          %1646 = vmatprep.mubr.bf16.mxu0 0
          %1647 = vmatmul.mubr.bf16.gmra.mxu0 %v1612
          %v1648 = vpop.f32.mrf.mxu0
          %v1649 = vadd.f32 0.0, %v1648
          %v1650 = vpop.f32.mrf.mxu0
          %v1651 = vpop.f32.mrf.mxu0
          %v1652 = vpop.f32.mrf.mxu0
          %1653 = vdwg.mxu0
          %v1655 = vsel %vm1525, %v1606, 0
          %1657 = vmatprep.subr.bf16.mxu0 0
          %1658 = vmatpush1.bf16.msra.mxu0 0
          %1659 = vmatprep.subr.bf16.mxu0 0
          %1660 = vmatpush1.bf16.msra.mxu0 0
          %1661 = vmatprep.subr.bf16.mxu0 0
          %1662 = vmatpush1.bf16.msra.mxu0 0
          %1663 = vmatprep.subr.bf16.mxu0 0
          %1664 = vmatpush1.bf16.msra.mxu0 0
          %1665 = vmatprep.subr.bf16.mxu0 0
          %1666 = vmatpush1.bf16.msra.mxu0 0
          %1667 = vmatprep.subr.bf16.mxu0 0
          %1668 = vmatpush1.bf16.msra.mxu0 0
          %1669 = vmatprep.subr.bf16.mxu0 0
          %1670 = vmatpush1.bf16.msra.mxu0 0
          %1671 = vmatprep.subr.bf16.mxu0 0
          %1672 = vmatpush1.bf16.msra.mxu0 %v1523
          %1673 = vmatprep.subr.bf16.mxu0 0
          %1674 = vmatpush2.bf16.msra.mxu0 0
          %1675 = vmatprep.subr.bf16.mxu0 0
          %1676 = vmatpush2.bf16.msra.mxu0 0
          %1677 = vmatprep.subr.bf16.mxu0 0
          %1678 = vmatpush2.bf16.msra.mxu0 0
          %1679 = vmatprep.subr.bf16.mxu0 0
          %1680 = vmatpush2.bf16.msra.mxu0 0
          %1681 = vmatprep.subr.bf16.mxu0 0
          %1682 = vmatpush2.bf16.msra.mxu0 0
          %1683 = vmatprep.subr.bf16.mxu0 0
          %1684 = vmatpush2.bf16.msra.mxu0 0
          %1685 = vmatprep.subr.bf16.mxu0 0
          %1686 = vmatpush2.bf16.msra.mxu0 0
          %1687 = vmatprep.subr.bf16.mxu0 0
          %1688 = vmatpush2.bf16.msra.mxu0 0
          %1689 = vmatprep.mubr.bf16.mxu0 0
          %1690 = vmatmul.mubr.bf16.gmra.mxu0 %v1655
          %v1691 = vpop.f32.mrf.mxu0
          %v1692 = vadd.f32 %v1649, %v1691
          %v1693 = vpop.f32.mrf.mxu0
          %v1694 = vpop.f32.mrf.mxu0
          %v1695 = vpop.f32.mrf.mxu0
          %1696 = vdwg.mxu0
          %v1697 = vadd.f32 %v1692, %v436
          %v1698 = vxor.u32 %v1697, 2147483648
          %v1699 = vmul.f32 %v1698, 1.442695
          %v1700 = vpow.pop %v1699
          %v1701 = vadd.f32 %v1700, 1.0
          %v1702 = vrcp.pop %v1701
          %v1703 = vmul.f32 1.0, %v1702
          %v1704 = vtanh.pop %v1697
          %v1705 = vmul.f32 %v1703, %v1591
          %1707 = vrot.lane.b32.xlu0 %v1704, 64
          %v1708 = vpop.permute.xlu0 %1707
          %v1710 = vmul.f32 %v1703, %v1708
          %1712 = vrot.lane.b32.xlu0 %v1710, 32
          %v1713 = vpop.permute.xlu0 %1712
          %v1715 = vadd.f32 %v1705, %v1713
          %v1716 = vtanh.pop %v1715
          %1718 = vrot.lane.b32.xlu0 %v1716, 64
          %v1719 = vpop.permute.xlu0 %1718
          %v1721 = vmul.f32 %v1703, %v1719
          %1723 = vrot.lane.b32.xlu0 %v1721, 32
          %v1724 = vpop.permute.xlu0 %1723
          %s1726 = scalar_lea.vmem %s403, 12
          %1727 = vst.msk [vmem:[%s1726] sm:$0x3] %vm1603, %v1724
          %s1728 = scalar_lea.vmem %s377, 5
          %v1729 = vld [vmem:[%s1728] sm:$0x1]
          %v1730 = vpack.c.bf16 %v1721, %v1721
          %1732 = vrot.lane.b32.xlu0 %v1730, 32
          %v1733 = vpop.permute.xlu0 %1732
          %v1735 = vsel %vm1475, %v1733, 0
          %1737 = vmatprep.subr.bf16.mxu0 0
          %1738 = vmatpush1.bf16.msra.mxu0 0
          %1739 = vmatprep.subr.bf16.mxu0 0
          %1740 = vmatpush1.bf16.msra.mxu0 0
          %1741 = vmatprep.subr.bf16.mxu0 0
          %1742 = vmatpush1.bf16.msra.mxu0 0
          %1743 = vmatprep.subr.bf16.mxu0 0
          %1744 = vmatpush1.bf16.msra.mxu0 0
          %1745 = vmatprep.subr.bf16.mxu0 0
          %1746 = vmatpush1.bf16.msra.mxu0 0
          %1747 = vmatprep.subr.bf16.mxu0 0
          %1748 = vmatpush1.bf16.msra.mxu0 0
          %1749 = vmatprep.subr.bf16.mxu0 0
          %1750 = vmatpush1.bf16.msra.mxu0 %v1472
          %1751 = vmatprep.subr.bf16.mxu0 0
          %1752 = vmatpush1.bf16.msra.mxu0 %v1471
          %1753 = vmatprep.subr.bf16.mxu0 0
          %1754 = vmatpush2.bf16.msra.mxu0 0
          %1755 = vmatprep.subr.bf16.mxu0 0
          %1756 = vmatpush2.bf16.msra.mxu0 0
          %1757 = vmatprep.subr.bf16.mxu0 0
          %1758 = vmatpush2.bf16.msra.mxu0 0
          %1759 = vmatprep.subr.bf16.mxu0 0
          %1760 = vmatpush2.bf16.msra.mxu0 0
          %1761 = vmatprep.subr.bf16.mxu0 0
          %1762 = vmatpush2.bf16.msra.mxu0 0
          %1763 = vmatprep.subr.bf16.mxu0 0
          %1764 = vmatpush2.bf16.msra.mxu0 0
          %1765 = vmatprep.subr.bf16.mxu0 0
          %1766 = vmatpush2.bf16.msra.mxu0 0
          %1767 = vmatprep.subr.bf16.mxu0 0
          %1768 = vmatpush2.bf16.msra.mxu0 0
          %1769 = vmatprep.mubr.bf16.mxu0 0
          %1770 = vmatmul.mubr.bf16.gmra.mxu0 %v1735
          %v1771 = vpop.f32.mrf.mxu0
          %v1772 = vadd.f32 0.0, %v1771
          %v1773 = vpop.f32.mrf.mxu0
          %v1774 = vpop.f32.mrf.mxu0
          %v1775 = vpop.f32.mrf.mxu0
          %1776 = vdwg.mxu0
          %v1778 = vsel %vm1525, %v1729, 0
          %1780 = vmatprep.subr.bf16.mxu0 0
          %1781 = vmatpush1.bf16.msra.mxu0 0
          %1782 = vmatprep.subr.bf16.mxu0 0
          %1783 = vmatpush1.bf16.msra.mxu0 0
          %1784 = vmatprep.subr.bf16.mxu0 0
          %1785 = vmatpush1.bf16.msra.mxu0 0
          %1786 = vmatprep.subr.bf16.mxu0 0
          %1787 = vmatpush1.bf16.msra.mxu0 0
          %1788 = vmatprep.subr.bf16.mxu0 0
          %1789 = vmatpush1.bf16.msra.mxu0 0
          %1790 = vmatprep.subr.bf16.mxu0 0
          %1791 = vmatpush1.bf16.msra.mxu0 0
          %1792 = vmatprep.subr.bf16.mxu0 0
          %1793 = vmatpush1.bf16.msra.mxu0 0
          %1794 = vmatprep.subr.bf16.mxu0 0
          %1795 = vmatpush1.bf16.msra.mxu0 %v1523
          %1796 = vmatprep.subr.bf16.mxu0 0
          %1797 = vmatpush2.bf16.msra.mxu0 0
          %1798 = vmatprep.subr.bf16.mxu0 0
          %1799 = vmatpush2.bf16.msra.mxu0 0
          %1800 = vmatprep.subr.bf16.mxu0 0
          %1801 = vmatpush2.bf16.msra.mxu0 0
          %1802 = vmatprep.subr.bf16.mxu0 0
          %1803 = vmatpush2.bf16.msra.mxu0 0
          %1804 = vmatprep.subr.bf16.mxu0 0
          %1805 = vmatpush2.bf16.msra.mxu0 0
          %1806 = vmatprep.subr.bf16.mxu0 0
          %1807 = vmatpush2.bf16.msra.mxu0 0
          %1808 = vmatprep.subr.bf16.mxu0 0
          %1809 = vmatpush2.bf16.msra.mxu0 0
          %1810 = vmatprep.subr.bf16.mxu0 0
          %1811 = vmatpush2.bf16.msra.mxu0 0
          %1812 = vmatprep.mubr.bf16.mxu0 0
          %1813 = vmatmul.mubr.bf16.gmra.mxu0 %v1778
          %v1814 = vpop.f32.mrf.mxu0
          %v1815 = vadd.f32 %v1772, %v1814
          %v1816 = vpop.f32.mrf.mxu0
          %v1817 = vpop.f32.mrf.mxu0
          %v1818 = vpop.f32.mrf.mxu0
          %1819 = vdwg.mxu0
          %v1820 = vadd.f32 %v1815, %v436
          %v1821 = vxor.u32 %v1820, 2147483648
          %v1822 = vmul.f32 %v1821, 1.442695
          %v1823 = vpow.pop %v1822
          %v1824 = vadd.f32 %v1823, 1.0
          %v1825 = vrcp.pop %v1824
          %v1826 = vmul.f32 1.0, %v1825
          %v1827 = vtanh.pop %v1820
          %v1828 = vmul.f32 %v1826, %v1715
          %1830 = vrot.lane.b32.xlu0 %v1827, 64
          %v1831 = vpop.permute.xlu0 %1830
          %v1833 = vmul.f32 %v1826, %v1831
          %1835 = vrot.lane.b32.xlu0 %v1833, 32
          %v1836 = vpop.permute.xlu0 %1835
          %v1838 = vadd.f32 %v1828, %v1836
          %v1839 = vtanh.pop %v1838
          %1841 = vrot.lane.b32.xlu0 %v1839, 64
          %v1842 = vpop.permute.xlu0 %1841
          %v1844 = vmul.f32 %v1826, %v1842
          %1846 = vrot.lane.b32.xlu0 %v1844, 32
          %v1847 = vpop.permute.xlu0 %1846
          %s1849 = scalar_lea.vmem %s403, 10
          %1850 = vst.msk [vmem:[%s1849] sm:$0x3] %vm1603, %v1847
          %s1851 = scalar_lea.vmem %s377, 4
          %v1852 = vld [vmem:[%s1851] sm:$0x1]
          %v1853 = vpack.c.bf16 %v1844, %v1844
          %1855 = vrot.lane.b32.xlu0 %v1853, 32
          %v1856 = vpop.permute.xlu0 %1855
          %v1858 = vsel %vm1475, %v1856, 0
          %1860 = vmatprep.subr.bf16.mxu0 0
          %1861 = vmatpush1.bf16.msra.mxu0 0
          %1862 = vmatprep.subr.bf16.mxu0 0
          %1863 = vmatpush1.bf16.msra.mxu0 0
          %1864 = vmatprep.subr.bf16.mxu0 0
          %1865 = vmatpush1.bf16.msra.mxu0 0
          %1866 = vmatprep.subr.bf16.mxu0 0
          %1867 = vmatpush1.bf16.msra.mxu0 0
          %1868 = vmatprep.subr.bf16.mxu0 0
          %1869 = vmatpush1.bf16.msra.mxu0 0
          %1870 = vmatprep.subr.bf16.mxu0 0
          %1871 = vmatpush1.bf16.msra.mxu0 0
          %1872 = vmatprep.subr.bf16.mxu0 0
          %1873 = vmatpush1.bf16.msra.mxu0 %v1472
          %1874 = vmatprep.subr.bf16.mxu0 0
          %1875 = vmatpush1.bf16.msra.mxu0 %v1471
          %1876 = vmatprep.subr.bf16.mxu0 0
          %1877 = vmatpush2.bf16.msra.mxu0 0
          %1878 = vmatprep.subr.bf16.mxu0 0
          %1879 = vmatpush2.bf16.msra.mxu0 0
          %1880 = vmatprep.subr.bf16.mxu0 0
          %1881 = vmatpush2.bf16.msra.mxu0 0
          %1882 = vmatprep.subr.bf16.mxu0 0
          %1883 = vmatpush2.bf16.msra.mxu0 0
          %1884 = vmatprep.subr.bf16.mxu0 0
          %1885 = vmatpush2.bf16.msra.mxu0 0
          %1886 = vmatprep.subr.bf16.mxu0 0
          %1887 = vmatpush2.bf16.msra.mxu0 0
          %1888 = vmatprep.subr.bf16.mxu0 0
          %1889 = vmatpush2.bf16.msra.mxu0 0
          %1890 = vmatprep.subr.bf16.mxu0 0
          %1891 = vmatpush2.bf16.msra.mxu0 0
          %1892 = vmatprep.mubr.bf16.mxu0 0
          %1893 = vmatmul.mubr.bf16.gmra.mxu0 %v1858
          %v1894 = vpop.f32.mrf.mxu0
          %v1895 = vadd.f32 0.0, %v1894
          %v1896 = vpop.f32.mrf.mxu0
          %v1897 = vpop.f32.mrf.mxu0
          %v1898 = vpop.f32.mrf.mxu0
          %1899 = vdwg.mxu0
          %v1901 = vsel %vm1525, %v1852, 0
          %1903 = vmatprep.subr.bf16.mxu0 0
          %1904 = vmatpush1.bf16.msra.mxu0 0
          %1905 = vmatprep.subr.bf16.mxu0 0
          %1906 = vmatpush1.bf16.msra.mxu0 0
          %1907 = vmatprep.subr.bf16.mxu0 0
          %1908 = vmatpush1.bf16.msra.mxu0 0
          %1909 = vmatprep.subr.bf16.mxu0 0
          %1910 = vmatpush1.bf16.msra.mxu0 0
          %1911 = vmatprep.subr.bf16.mxu0 0
          %1912 = vmatpush1.bf16.msra.mxu0 0
          %1913 = vmatprep.subr.bf16.mxu0 0
          %1914 = vmatpush1.bf16.msra.mxu0 0
          %1915 = vmatprep.subr.bf16.mxu0 0
          %1916 = vmatpush1.bf16.msra.mxu0 0
          %1917 = vmatprep.subr.bf16.mxu0 0
          %1918 = vmatpush1.bf16.msra.mxu0 %v1523
          %1919 = vmatprep.subr.bf16.mxu0 0
          %1920 = vmatpush2.bf16.msra.mxu0 0
          %1921 = vmatprep.subr.bf16.mxu0 0
          %1922 = vmatpush2.bf16.msra.mxu0 0
          %1923 = vmatprep.subr.bf16.mxu0 0
          %1924 = vmatpush2.bf16.msra.mxu0 0
          %1925 = vmatprep.subr.bf16.mxu0 0
          %1926 = vmatpush2.bf16.msra.mxu0 0
          %1927 = vmatprep.subr.bf16.mxu0 0
          %1928 = vmatpush2.bf16.msra.mxu0 0
          %1929 = vmatprep.subr.bf16.mxu0 0
          %1930 = vmatpush2.bf16.msra.mxu0 0
          %1931 = vmatprep.subr.bf16.mxu0 0
          %1932 = vmatpush2.bf16.msra.mxu0 0
          %1933 = vmatprep.subr.bf16.mxu0 0
          %1934 = vmatpush2.bf16.msra.mxu0 0
          %1935 = vmatprep.mubr.bf16.mxu0 0
          %1936 = vmatmul.mubr.bf16.gmra.mxu0 %v1901
          %v1937 = vpop.f32.mrf.mxu0
          %v1938 = vadd.f32 %v1895, %v1937
          %v1939 = vpop.f32.mrf.mxu0
          %v1940 = vpop.f32.mrf.mxu0
          %v1941 = vpop.f32.mrf.mxu0
          %1942 = vdwg.mxu0
          %v1943 = vadd.f32 %v1938, %v436
          %v1944 = vxor.u32 %v1943, 2147483648
          %v1945 = vmul.f32 %v1944, 1.442695
          %v1946 = vpow.pop %v1945
          %v1947 = vadd.f32 %v1946, 1.0
          %v1948 = vrcp.pop %v1947
          %v1949 = vmul.f32 1.0, %v1948
          %v1950 = vtanh.pop %v1943
          %v1951 = vmul.f32 %v1949, %v1838
          %1953 = vrot.lane.b32.xlu0 %v1950, 64
          %v1954 = vpop.permute.xlu0 %1953
          %v1956 = vmul.f32 %v1949, %v1954
          %1958 = vrot.lane.b32.xlu0 %v1956, 32
          %v1959 = vpop.permute.xlu0 %1958
          %v1961 = vadd.f32 %v1951, %v1959
          %v1962 = vtanh.pop %v1961
          %1964 = vrot.lane.b32.xlu0 %v1962, 64
          %v1965 = vpop.permute.xlu0 %1964
          %v1967 = vmul.f32 %v1949, %v1965
          %1969 = vrot.lane.b32.xlu0 %v1967, 32
          %v1970 = vpop.permute.xlu0 %1969
          %s1972 = scalar_lea.vmem %s403, 8
          %1973 = vst.msk [vmem:[%s1972] sm:$0x3] %vm1603, %v1970
          %s1974 = scalar_lea.vmem %s377, 3
          %v1975 = vld [vmem:[%s1974] sm:$0x1]
          %v1976 = vpack.c.bf16 %v1967, %v1967
          %1978 = vrot.lane.b32.xlu0 %v1976, 32
          %v1979 = vpop.permute.xlu0 %1978
          %v1981 = vsel %vm1475, %v1979, 0
          %1983 = vmatprep.subr.bf16.mxu0 0
          %1984 = vmatpush1.bf16.msra.mxu0 0
          %1985 = vmatprep.subr.bf16.mxu0 0
          %1986 = vmatpush1.bf16.msra.mxu0 0
          %1987 = vmatprep.subr.bf16.mxu0 0
          %1988 = vmatpush1.bf16.msra.mxu0 0
          %1989 = vmatprep.subr.bf16.mxu0 0
          %1990 = vmatpush1.bf16.msra.mxu0 0
          %1991 = vmatprep.subr.bf16.mxu0 0
          %1992 = vmatpush1.bf16.msra.mxu0 0
          %1993 = vmatprep.subr.bf16.mxu0 0
          %1994 = vmatpush1.bf16.msra.mxu0 0
          %1995 = vmatprep.subr.bf16.mxu0 0
          %1996 = vmatpush1.bf16.msra.mxu0 %v1472
          %1997 = vmatprep.subr.bf16.mxu0 0
          %1998 = vmatpush1.bf16.msra.mxu0 %v1471
          %1999 = vmatprep.subr.bf16.mxu0 0
          %2000 = vmatpush2.bf16.msra.mxu0 0
          %2001 = vmatprep.subr.bf16.mxu0 0
          %2002 = vmatpush2.bf16.msra.mxu0 0
          %2003 = vmatprep.subr.bf16.mxu0 0
          %2004 = vmatpush2.bf16.msra.mxu0 0
          %2005 = vmatprep.subr.bf16.mxu0 0
          %2006 = vmatpush2.bf16.msra.mxu0 0
          %2007 = vmatprep.subr.bf16.mxu0 0
          %2008 = vmatpush2.bf16.msra.mxu0 0
          %2009 = vmatprep.subr.bf16.mxu0 0
          %2010 = vmatpush2.bf16.msra.mxu0 0
          %2011 = vmatprep.subr.bf16.mxu0 0
          %2012 = vmatpush2.bf16.msra.mxu0 0
          %2013 = vmatprep.subr.bf16.mxu0 0
          %2014 = vmatpush2.bf16.msra.mxu0 0
          %2015 = vmatprep.mubr.bf16.mxu0 0
          %2016 = vmatmul.mubr.bf16.gmra.mxu0 %v1981
          %v2017 = vpop.f32.mrf.mxu0
          %v2018 = vadd.f32 0.0, %v2017
          %v2019 = vpop.f32.mrf.mxu0
          %v2020 = vpop.f32.mrf.mxu0
          %v2021 = vpop.f32.mrf.mxu0
          %2022 = vdwg.mxu0
          %v2024 = vsel %vm1525, %v1975, 0
          %2026 = vmatprep.subr.bf16.mxu0 0
          %2027 = vmatpush1.bf16.msra.mxu0 0
          %2028 = vmatprep.subr.bf16.mxu0 0
          %2029 = vmatpush1.bf16.msra.mxu0 0
          %2030 = vmatprep.subr.bf16.mxu0 0
          %2031 = vmatpush1.bf16.msra.mxu0 0
          %2032 = vmatprep.subr.bf16.mxu0 0
          %2033 = vmatpush1.bf16.msra.mxu0 0
          %2034 = vmatprep.subr.bf16.mxu0 0
          %2035 = vmatpush1.bf16.msra.mxu0 0
          %2036 = vmatprep.subr.bf16.mxu0 0
          %2037 = vmatpush1.bf16.msra.mxu0 0
          %2038 = vmatprep.subr.bf16.mxu0 0
          %2039 = vmatpush1.bf16.msra.mxu0 0
          %2040 = vmatprep.subr.bf16.mxu0 0
          %2041 = vmatpush1.bf16.msra.mxu0 %v1523
          %2042 = vmatprep.subr.bf16.mxu0 0
          %2043 = vmatpush2.bf16.msra.mxu0 0
          %2044 = vmatprep.subr.bf16.mxu0 0
          %2045 = vmatpush2.bf16.msra.mxu0 0
          %2046 = vmatprep.subr.bf16.mxu0 0
          %2047 = vmatpush2.bf16.msra.mxu0 0
          %2048 = vmatprep.subr.bf16.mxu0 0
          %2049 = vmatpush2.bf16.msra.mxu0 0
          %2050 = vmatprep.subr.bf16.mxu0 0
          %2051 = vmatpush2.bf16.msra.mxu0 0
          %2052 = vmatprep.subr.bf16.mxu0 0
          %2053 = vmatpush2.bf16.msra.mxu0 0
          %2054 = vmatprep.subr.bf16.mxu0 0
          %2055 = vmatpush2.bf16.msra.mxu0 0
          %2056 = vmatprep.subr.bf16.mxu0 0
          %2057 = vmatpush2.bf16.msra.mxu0 0
          %2058 = vmatprep.mubr.bf16.mxu0 0
          %2059 = vmatmul.mubr.bf16.gmra.mxu0 %v2024
          %v2060 = vpop.f32.mrf.mxu0
          %v2061 = vadd.f32 %v2018, %v2060
          %v2062 = vpop.f32.mrf.mxu0
          %v2063 = vpop.f32.mrf.mxu0
          %v2064 = vpop.f32.mrf.mxu0
          %2065 = vdwg.mxu0
          %v2066 = vadd.f32 %v2061, %v436
          %v2067 = vxor.u32 %v2066, 2147483648
          %v2068 = vmul.f32 %v2067, 1.442695
          %v2069 = vpow.pop %v2068
          %v2070 = vadd.f32 %v2069, 1.0
          %v2071 = vrcp.pop %v2070
          %v2072 = vmul.f32 1.0, %v2071
          %v2073 = vtanh.pop %v2066
          %v2074 = vmul.f32 %v2072, %v1961
          %2076 = vrot.lane.b32.xlu0 %v2073, 64
          %v2077 = vpop.permute.xlu0 %2076
          %v2079 = vmul.f32 %v2072, %v2077
          %2081 = vrot.lane.b32.xlu0 %v2079, 32
          %v2082 = vpop.permute.xlu0 %2081
          %v2084 = vadd.f32 %v2074, %v2082
          %v2085 = vtanh.pop %v2084
          %2087 = vrot.lane.b32.xlu0 %v2085, 64
          %v2088 = vpop.permute.xlu0 %2087
          %v2090 = vmul.f32 %v2072, %v2088
          %2092 = vrot.lane.b32.xlu0 %v2090, 32
          %v2093 = vpop.permute.xlu0 %2092
          %s2095 = scalar_lea.vmem %s403, 6
          %2096 = vst.msk [vmem:[%s2095] sm:$0x3] %vm1603, %v2093
          %s2097 = scalar_lea.vmem %s377, 2
          %v2098 = vld [vmem:[%s2097] sm:$0x1]
          %v2099 = vpack.c.bf16 %v2090, %v2090
          %2101 = vrot.lane.b32.xlu0 %v2099, 32
          %v2102 = vpop.permute.xlu0 %2101
          %v2104 = vsel %vm1475, %v2102, 0
          %2106 = vmatprep.subr.bf16.mxu0 0
          %2107 = vmatpush1.bf16.msra.mxu0 0
          %2108 = vmatprep.subr.bf16.mxu0 0
          %2109 = vmatpush1.bf16.msra.mxu0 0
          %2110 = vmatprep.subr.bf16.mxu0 0
          %2111 = vmatpush1.bf16.msra.mxu0 0
          %2112 = vmatprep.subr.bf16.mxu0 0
          %2113 = vmatpush1.bf16.msra.mxu0 0
          %2114 = vmatprep.subr.bf16.mxu0 0
          %2115 = vmatpush1.bf16.msra.mxu0 0
          %2116 = vmatprep.subr.bf16.mxu0 0
          %2117 = vmatpush1.bf16.msra.mxu0 0
          %2118 = vmatprep.subr.bf16.mxu0 0
          %2119 = vmatpush1.bf16.msra.mxu0 %v1472
          %2120 = vmatprep.subr.bf16.mxu0 0
          %2121 = vmatpush1.bf16.msra.mxu0 %v1471
          %2122 = vmatprep.subr.bf16.mxu0 0
          %2123 = vmatpush2.bf16.msra.mxu0 0
          %2124 = vmatprep.subr.bf16.mxu0 0
          %2125 = vmatpush2.bf16.msra.mxu0 0
          %2126 = vmatprep.subr.bf16.mxu0 0
          %2127 = vmatpush2.bf16.msra.mxu0 0
          %2128 = vmatprep.subr.bf16.mxu0 0
          %2129 = vmatpush2.bf16.msra.mxu0 0
          %2130 = vmatprep.subr.bf16.mxu0 0
          %2131 = vmatpush2.bf16.msra.mxu0 0
          %2132 = vmatprep.subr.bf16.mxu0 0
          %2133 = vmatpush2.bf16.msra.mxu0 0
          %2134 = vmatprep.subr.bf16.mxu0 0
          %2135 = vmatpush2.bf16.msra.mxu0 0
          %2136 = vmatprep.subr.bf16.mxu0 0
          %2137 = vmatpush2.bf16.msra.mxu0 0
          %2138 = vmatprep.mubr.bf16.mxu0 0
          %2139 = vmatmul.mubr.bf16.gmra.mxu0 %v2104
          %v2140 = vpop.f32.mrf.mxu0
          %v2141 = vadd.f32 0.0, %v2140
          %v2142 = vpop.f32.mrf.mxu0
          %v2143 = vpop.f32.mrf.mxu0
          %v2144 = vpop.f32.mrf.mxu0
          %2145 = vdwg.mxu0
          %v2147 = vsel %vm1525, %v2098, 0
          %2149 = vmatprep.subr.bf16.mxu0 0
          %2150 = vmatpush1.bf16.msra.mxu0 0
          %2151 = vmatprep.subr.bf16.mxu0 0
          %2152 = vmatpush1.bf16.msra.mxu0 0
          %2153 = vmatprep.subr.bf16.mxu0 0
          %2154 = vmatpush1.bf16.msra.mxu0 0
          %2155 = vmatprep.subr.bf16.mxu0 0
          %2156 = vmatpush1.bf16.msra.mxu0 0
          %2157 = vmatprep.subr.bf16.mxu0 0
          %2158 = vmatpush1.bf16.msra.mxu0 0
          %2159 = vmatprep.subr.bf16.mxu0 0
          %2160 = vmatpush1.bf16.msra.mxu0 0
          %2161 = vmatprep.subr.bf16.mxu0 0
          %2162 = vmatpush1.bf16.msra.mxu0 0
          %2163 = vmatprep.subr.bf16.mxu0 0
          %2164 = vmatpush1.bf16.msra.mxu0 %v1523
          %2165 = vmatprep.subr.bf16.mxu0 0
          %2166 = vmatpush2.bf16.msra.mxu0 0
          %2167 = vmatprep.subr.bf16.mxu0 0
          %2168 = vmatpush2.bf16.msra.mxu0 0
          %2169 = vmatprep.subr.bf16.mxu0 0
          %2170 = vmatpush2.bf16.msra.mxu0 0
          %2171 = vmatprep.subr.bf16.mxu0 0
          %2172 = vmatpush2.bf16.msra.mxu0 0
          %2173 = vmatprep.subr.bf16.mxu0 0
          %2174 = vmatpush2.bf16.msra.mxu0 0
          %2175 = vmatprep.subr.bf16.mxu0 0
          %2176 = vmatpush2.bf16.msra.mxu0 0
          %2177 = vmatprep.subr.bf16.mxu0 0
          %2178 = vmatpush2.bf16.msra.mxu0 0
          %2179 = vmatprep.subr.bf16.mxu0 0
          %2180 = vmatpush2.bf16.msra.mxu0 0
          %2181 = vmatprep.mubr.bf16.mxu0 0
          %2182 = vmatmul.mubr.bf16.gmra.mxu0 %v2147
          %v2183 = vpop.f32.mrf.mxu0
          %v2184 = vadd.f32 %v2141, %v2183
          %v2185 = vpop.f32.mrf.mxu0
          %v2186 = vpop.f32.mrf.mxu0
          %v2187 = vpop.f32.mrf.mxu0
          %2188 = vdwg.mxu0
          %v2189 = vadd.f32 %v2184, %v436
          %v2190 = vxor.u32 %v2189, 2147483648
          %v2191 = vmul.f32 %v2190, 1.442695
          %v2192 = vpow.pop %v2191
          %v2193 = vadd.f32 %v2192, 1.0
          %v2194 = vrcp.pop %v2193
          %v2195 = vmul.f32 1.0, %v2194
          %v2196 = vtanh.pop %v2189
          %v2197 = vmul.f32 %v2195, %v2084
          %2199 = vrot.lane.b32.xlu0 %v2196, 64
          %v2200 = vpop.permute.xlu0 %2199
          %v2202 = vmul.f32 %v2195, %v2200
          %2204 = vrot.lane.b32.xlu0 %v2202, 32
          %v2205 = vpop.permute.xlu0 %2204
          %v2207 = vadd.f32 %v2197, %v2205
          %v2208 = vtanh.pop %v2207
          %2210 = vrot.lane.b32.xlu0 %v2208, 64
          %v2211 = vpop.permute.xlu0 %2210
          %v2213 = vmul.f32 %v2195, %v2211
          %2215 = vrot.lane.b32.xlu0 %v2213, 32
          %v2216 = vpop.permute.xlu0 %2215
          %s2218 = scalar_lea.vmem %s403, 4
          %2219 = vst.msk [vmem:[%s2218] sm:$0x3] %vm1603, %v2216
          %s2220 = scalar_lea.vmem %s377, 1
          %v2221 = vld [vmem:[%s2220] sm:$0x1]
          %v2222 = vpack.c.bf16 %v2213, %v2213
          %2224 = vrot.lane.b32.xlu0 %v2222, 32
          %v2225 = vpop.permute.xlu0 %2224
          %v2227 = vsel %vm1475, %v2225, 0
          %2229 = vmatprep.subr.bf16.mxu0 0
          %2230 = vmatpush1.bf16.msra.mxu0 0
          %2231 = vmatprep.subr.bf16.mxu0 0
          %2232 = vmatpush1.bf16.msra.mxu0 0
          %2233 = vmatprep.subr.bf16.mxu0 0
          %2234 = vmatpush1.bf16.msra.mxu0 0
          %2235 = vmatprep.subr.bf16.mxu0 0
          %2236 = vmatpush1.bf16.msra.mxu0 0
          %2237 = vmatprep.subr.bf16.mxu0 0
          %2238 = vmatpush1.bf16.msra.mxu0 0
          %2239 = vmatprep.subr.bf16.mxu0 0
          %2240 = vmatpush1.bf16.msra.mxu0 0
          %2241 = vmatprep.subr.bf16.mxu0 0
          %2242 = vmatpush1.bf16.msra.mxu0 %v1472
          %2243 = vmatprep.subr.bf16.mxu0 0
          %2244 = vmatpush1.bf16.msra.mxu0 %v1471
          %2245 = vmatprep.subr.bf16.mxu0 0
          %2246 = vmatpush2.bf16.msra.mxu0 0
          %2247 = vmatprep.subr.bf16.mxu0 0
          %2248 = vmatpush2.bf16.msra.mxu0 0
          %2249 = vmatprep.subr.bf16.mxu0 0
          %2250 = vmatpush2.bf16.msra.mxu0 0
          %2251 = vmatprep.subr.bf16.mxu0 0
          %2252 = vmatpush2.bf16.msra.mxu0 0
          %2253 = vmatprep.subr.bf16.mxu0 0
          %2254 = vmatpush2.bf16.msra.mxu0 0
          %2255 = vmatprep.subr.bf16.mxu0 0
          %2256 = vmatpush2.bf16.msra.mxu0 0
          %2257 = vmatprep.subr.bf16.mxu0 0
          %2258 = vmatpush2.bf16.msra.mxu0 0
          %2259 = vmatprep.subr.bf16.mxu0 0
          %2260 = vmatpush2.bf16.msra.mxu0 0
          %2261 = vmatprep.mubr.bf16.mxu0 0
          %2262 = vmatmul.mubr.bf16.gmra.mxu0 %v2227
          %v2263 = vpop.f32.mrf.mxu0
          %v2264 = vadd.f32 0.0, %v2263
          %v2265 = vpop.f32.mrf.mxu0
          %v2266 = vpop.f32.mrf.mxu0
          %v2267 = vpop.f32.mrf.mxu0
          %2268 = vdwg.mxu0
          %v2270 = vsel %vm1525, %v2221, 0
          %2272 = vmatprep.subr.bf16.mxu0 0
          %2273 = vmatpush1.bf16.msra.mxu0 0
          %2274 = vmatprep.subr.bf16.mxu0 0
          %2275 = vmatpush1.bf16.msra.mxu0 0
          %2276 = vmatprep.subr.bf16.mxu0 0
          %2277 = vmatpush1.bf16.msra.mxu0 0
          %2278 = vmatprep.subr.bf16.mxu0 0
          %2279 = vmatpush1.bf16.msra.mxu0 0
          %2280 = vmatprep.subr.bf16.mxu0 0
          %2281 = vmatpush1.bf16.msra.mxu0 0
          %2282 = vmatprep.subr.bf16.mxu0 0
          %2283 = vmatpush1.bf16.msra.mxu0 0
          %2284 = vmatprep.subr.bf16.mxu0 0
          %2285 = vmatpush1.bf16.msra.mxu0 0
          %2286 = vmatprep.subr.bf16.mxu0 0
          %2287 = vmatpush1.bf16.msra.mxu0 %v1523
          %2288 = vmatprep.subr.bf16.mxu0 0
          %2289 = vmatpush2.bf16.msra.mxu0 0
          %2290 = vmatprep.subr.bf16.mxu0 0
          %2291 = vmatpush2.bf16.msra.mxu0 0
          %2292 = vmatprep.subr.bf16.mxu0 0
          %2293 = vmatpush2.bf16.msra.mxu0 0
          %2294 = vmatprep.subr.bf16.mxu0 0
          %2295 = vmatpush2.bf16.msra.mxu0 0
          %2296 = vmatprep.subr.bf16.mxu0 0
          %2297 = vmatpush2.bf16.msra.mxu0 0
          %2298 = vmatprep.subr.bf16.mxu0 0
          %2299 = vmatpush2.bf16.msra.mxu0 0
          %2300 = vmatprep.subr.bf16.mxu0 0
          %2301 = vmatpush2.bf16.msra.mxu0 0
          %2302 = vmatprep.subr.bf16.mxu0 0
          %2303 = vmatpush2.bf16.msra.mxu0 0
          %2304 = vmatprep.mubr.bf16.mxu0 0
          %2305 = vmatmul.mubr.bf16.gmra.mxu0 %v2270
          %v2306 = vpop.f32.mrf.mxu0
          %v2307 = vadd.f32 %v2264, %v2306
          %v2308 = vpop.f32.mrf.mxu0
          %v2309 = vpop.f32.mrf.mxu0
          %v2310 = vpop.f32.mrf.mxu0
          %2311 = vdwg.mxu0
          %v2312 = vadd.f32 %v2307, %v436
          %v2313 = vxor.u32 %v2312, 2147483648
          %v2314 = vmul.f32 %v2313, 1.442695
          %v2315 = vpow.pop %v2314
          %v2316 = vadd.f32 %v2315, 1.0
          %v2317 = vrcp.pop %v2316
          %v2318 = vmul.f32 1.0, %v2317
          %v2319 = vtanh.pop %v2312
          %v2320 = vmul.f32 %v2318, %v2207
          %2322 = vrot.lane.b32.xlu0 %v2319, 64
          %v2323 = vpop.permute.xlu0 %2322
          %v2325 = vmul.f32 %v2318, %v2323
          %2327 = vrot.lane.b32.xlu0 %v2325, 32
          %v2328 = vpop.permute.xlu0 %2327
          %v2330 = vadd.f32 %v2320, %v2328
          %v2331 = vtanh.pop %v2330
          %2333 = vrot.lane.b32.xlu0 %v2331, 64
          %v2334 = vpop.permute.xlu0 %2333
          %v2336 = vmul.f32 %v2318, %v2334
          %2338 = vrot.lane.b32.xlu0 %v2336, 32
          %v2339 = vpop.permute.xlu0 %2338
          %s2341 = scalar_lea.vmem %s403, 2
          %2342 = vst.msk [vmem:[%s2341] sm:$0x3] %vm1603, %v2339
          %v2343 = vld [vmem:[%s377] sm:$0x1]
          %v2344 = vpack.c.bf16 %v2336, %v2336
          %2346 = vrot.lane.b32.xlu0 %v2344, 32
          %v2347 = vpop.permute.xlu0 %2346
          %v2349 = vsel %vm1475, %v2347, 0
          %2351 = vmatprep.subr.bf16.mxu0 0
          %2352 = vmatpush1.bf16.msra.mxu0 0
          %2353 = vmatprep.subr.bf16.mxu0 0
          %2354 = vmatpush1.bf16.msra.mxu0 0
          %2355 = vmatprep.subr.bf16.mxu0 0
          %2356 = vmatpush1.bf16.msra.mxu0 0
          %2357 = vmatprep.subr.bf16.mxu0 0
          %2358 = vmatpush1.bf16.msra.mxu0 0
          %2359 = vmatprep.subr.bf16.mxu0 0
          %2360 = vmatpush1.bf16.msra.mxu0 0
          %2361 = vmatprep.subr.bf16.mxu0 0
          %2362 = vmatpush1.bf16.msra.mxu0 0
          %2363 = vmatprep.subr.bf16.mxu0 0
          %2364 = vmatpush1.bf16.msra.mxu0 %v1472
          %2365 = vmatprep.subr.bf16.mxu0 0
          %2366 = vmatpush1.bf16.msra.mxu0 %v1471
          %2367 = vmatprep.subr.bf16.mxu0 0
          %2368 = vmatpush2.bf16.msra.mxu0 0
          %2369 = vmatprep.subr.bf16.mxu0 0
          %2370 = vmatpush2.bf16.msra.mxu0 0
          %2371 = vmatprep.subr.bf16.mxu0 0
          %2372 = vmatpush2.bf16.msra.mxu0 0
          %2373 = vmatprep.subr.bf16.mxu0 0
          %2374 = vmatpush2.bf16.msra.mxu0 0
          %2375 = vmatprep.subr.bf16.mxu0 0
          %2376 = vmatpush2.bf16.msra.mxu0 0
          %2377 = vmatprep.subr.bf16.mxu0 0
          %2378 = vmatpush2.bf16.msra.mxu0 0
          %2379 = vmatprep.subr.bf16.mxu0 0
          %2380 = vmatpush2.bf16.msra.mxu0 0
          %2381 = vmatprep.subr.bf16.mxu0 0
          %2382 = vmatpush2.bf16.msra.mxu0 0
          %2383 = vmatprep.mubr.bf16.mxu0 0
          %2384 = vmatmul.mubr.bf16.gmra.mxu0 %v2349
          %v2385 = vpop.f32.mrf.mxu0
          %v2386 = vadd.f32 0.0, %v2385
          %v2387 = vpop.f32.mrf.mxu0
          %v2388 = vpop.f32.mrf.mxu0
          %v2389 = vpop.f32.mrf.mxu0
          %2390 = vdwg.mxu0
          %v2392 = vsel %vm1525, %v2343, 0
          %2394 = vmatprep.subr.bf16.mxu0 0
          %2395 = vmatpush1.bf16.msra.mxu0 0
          %2396 = vmatprep.subr.bf16.mxu0 0
          %2397 = vmatpush1.bf16.msra.mxu0 0
          %2398 = vmatprep.subr.bf16.mxu0 0
          %2399 = vmatpush1.bf16.msra.mxu0 0
          %2400 = vmatprep.subr.bf16.mxu0 0
          %2401 = vmatpush1.bf16.msra.mxu0 0
          %2402 = vmatprep.subr.bf16.mxu0 0
          %2403 = vmatpush1.bf16.msra.mxu0 0
          %2404 = vmatprep.subr.bf16.mxu0 0
          %2405 = vmatpush1.bf16.msra.mxu0 0
          %2406 = vmatprep.subr.bf16.mxu0 0
          %2407 = vmatpush1.bf16.msra.mxu0 0
          %2408 = vmatprep.subr.bf16.mxu0 0
          %2409 = vmatpush1.bf16.msra.mxu0 %v1523
          %2410 = vmatprep.subr.bf16.mxu0 0
          %2411 = vmatpush2.bf16.msra.mxu0 0
          %2412 = vmatprep.subr.bf16.mxu0 0
          %2413 = vmatpush2.bf16.msra.mxu0 0
          %2414 = vmatprep.subr.bf16.mxu0 0
          %2415 = vmatpush2.bf16.msra.mxu0 0
          %2416 = vmatprep.subr.bf16.mxu0 0
          %2417 = vmatpush2.bf16.msra.mxu0 0
          %2418 = vmatprep.subr.bf16.mxu0 0
          %2419 = vmatpush2.bf16.msra.mxu0 0
          %2420 = vmatprep.subr.bf16.mxu0 0
          %2421 = vmatpush2.bf16.msra.mxu0 0
          %2422 = vmatprep.subr.bf16.mxu0 0
          %2423 = vmatpush2.bf16.msra.mxu0 0
          %2424 = vmatprep.subr.bf16.mxu0 0
          %2425 = vmatpush2.bf16.msra.mxu0 0
          %2426 = vmatprep.mubr.bf16.mxu0 0
          %2427 = vmatmul.mubr.bf16.gmra.mxu0 %v2392
          %v2428 = vpop.f32.mrf.mxu0
          %v2429 = vadd.f32 %v2386, %v2428
          %v2430 = vpop.f32.mrf.mxu0
          %v2431 = vpop.f32.mrf.mxu0
          %v2432 = vpop.f32.mrf.mxu0
          %2433 = vdwg.mxu0
          %v2434 = vadd.f32 %v2429, %v436
          %v2435 = vxor.u32 %v2434, 2147483648
          %v2436 = vmul.f32 %v2435, 1.442695
          %v2437 = vpow.pop %v2436
          %v2438 = vadd.f32 %v2437, 1.0
          %v2439 = vrcp.pop %v2438
          %v2440 = vmul.f32 1.0, %v2439
          %v2441 = vtanh.pop %v2434
          %v2442 = vmul.f32 %v2440, %v2330
          %2444 = vrot.lane.b32.xlu0 %v2441, 64
          %v2445 = vpop.permute.xlu0 %2444
          %v2447 = vmul.f32 %v2440, %v2445
          %2449 = vrot.lane.b32.xlu0 %v2447, 32
          %v2450 = vpop.permute.xlu0 %2449
          %v2452 = vadd.f32 %v2442, %v2450
          %v2453 = vtanh.pop %v2452
          %2455 = vrot.lane.b32.xlu0 %v2453, 64
          %v2456 = vpop.permute.xlu0 %2455
          %v2458 = vmul.f32 %v2440, %v2456
          %2460 = vrot.lane.b32.xlu0 %v2458, 32
          %v2461 = vpop.permute.xlu0 %2460
          %2463 = vst.msk [vmem:[%s403] sm:$0x3] %vm1603, %v2461
          %2464 = vst.msk [vmem:[#allocation2] sm:$0x3] %vm1603, %v2461
          %2466 = vrot.lane.b32.xlu0 %v2452, 96
          %v2467 = vpop.permute.xlu0 %2466
          %2469 = vst.msk [vmem:[#allocation3] sm:$0x3] %vm1603, %v2467
        $region52: #{bidirectional_lstm.1} parent=35 // pred_fallthru
          _
        // Predicated region
        $region53: #{bidirectional_lstm.1} parent=35 // pred_check
          %p2470 = pneg %p418
        $region54: #{bidirectional_lstm.1} parent=35 // pred_check_branch
          %2472 = sbr.rel (%p2470) target = $region56
        $region55: #{bidirectional_lstm.1} parent=35 // pred_region
          %v2473 = vld [vmem:[#allocation2] sm:$0x3]
          %vm2474 = vcmask 254976
          %2475 = vst.msk [vmem:[%s412] sm:$0x3] %vm2474, %v2473
          %v2476 = vld [vmem:[#allocation3] sm:$0x3]
          %2477 = vst.msk [vmem:[%s416] sm:$0x3] %vm2474, %v2476
        $region56: #{bidirectional_lstm.1} parent=35 // pred_fallthru
          _
        %s2478 = smul.u32 %s26, 2
        %s2479 = ssub.s32 0, %s2478
        %s2480 = smul.u32 %s25, %s2479
        %s2481 = sadd.s32 %s26, %s2480
        %s2482 = smul.u32 8, %s2481
        %p2483 = scmp.lt.s32.totalorder %s25, 1
        %s2484 = scalar_select %p2483, %s25, 1
        %p2485 = scmp.lt.s32.totalorder %s2482, 7
        %s2486 = scalar_select %p2485, %s2482, 7
        %s2487 = smul.addr %s2484, 8
        %s2488 = sadd.s32 %s2486, %s2487
        %s2489 = smul.addr %s2488, 2
        %s2490 = scalar_lea.vmem %s4, %s2489
        %p2491 = scmp.lt.s32.totalorder %s25, 1
        %s2492 = scalar_select %p2491, %s25, 1
        %s2493 = smul.addr %s2492, 2
        %s2494 = scalar_lea.vmem %s5, %s2493
        %p2495 = scmp.lt.s32.totalorder %s25, 1
        %s2496 = scalar_select %p2495, %s25, 1
        %s2497 = smul.addr %s2496, 2
        %s2498 = scalar_lea.vmem %s6, %s2497
        // Predicated region
        $region57: #{bidirectional_lstm.1} parent=35 // pred_check
          %p2499 = pneg %p173
        $region58: #{bidirectional_lstm.1} parent=35 // pred_check_branch
          %2501 = sbr.rel (%p2499) target = $region60
        $region59: #{bidirectional_lstm.1} parent=35 // pred_region
          %s2502 = smul.u32 %s26, 2
          %s2503 = ssub.s32 0, %s2502
          %s2504 = smul.u32 %s25, %s2503
          %s2505 = sadd.s32 %s26, %s2504
          %s2506 = smul.u32 8, %s2505
        $region60: #{bidirectional_lstm.1} parent=35 // pred_fallthru
          _
        // Predicated region
        $region61: #{bidirectional_lstm.1} parent=35 // pred_check
          %p2507 = pneg %p199
        $region62: #{bidirectional_lstm.1} parent=35 // pred_check_branch
          %2509 = sbr.rel (%p2507) target = $region64
        $region63: #{bidirectional_lstm.1} parent=35 // pred_region
          _
        $region64: #{bidirectional_lstm.1} parent=35 // pred_fallthru
          _
        // Predicated region
        $region65: #{bidirectional_lstm.1} parent=35 // pred_check
          %p2510 = pneg %p225
        $region66: #{bidirectional_lstm.1} parent=35 // pred_check_branch
          %2512 = sbr.rel (%p2510) target = $region68
        $region67: #{bidirectional_lstm.1} parent=35 // pred_region
          _
        $region68: #{bidirectional_lstm.1} parent=35 // pred_fallthru
          _
      $region36: #{bidirectional_lstm.1} parent=5 // pred_fallthru
        _
      %p2513 = scmp.le.s32.totalorder 2, %s16
      // Predicated region
      $region69: #{bidirectional_lstm.1} parent=5 // pred_check
        %p2514 = pneg %p2513
      $region70: #{bidirectional_lstm.1} parent=5 // pred_check_branch
        %2516 = sbr.rel (%p2514) target = $region72
      $region71: #{bidirectional_lstm.1} parent=5 // pred_region
        %s2517 = ssub.s32 %s16, 2
        // Predicated region
        $region73: #{bidirectional_lstm.1} parent=71 // pred_check
          %p2518 = pneg %p179
        $region74: #{bidirectional_lstm.1} parent=71 // pred_check_branch
          %2520 = sbr.rel (%p2518) target = $region76
        $region75: #{bidirectional_lstm.1} parent=71 // pred_region
          %s2521 = smul.u32 %s28, 2
          %s2522 = ssub.s32 0, %s2521
          %s2523 = smul.u32 %s27, %s2522
          %s2524 = sadd.s32 %s28, %s2523
          %s2525 = smul.u32 8, %s2524
          %p2526 = scmp.lt.s32.totalorder %s27, 1
          %s2527 = scalar_select %p2526, %s27, 1
          %p2528 = scmp.lt.s32.totalorder %s2525, 7
          %s2529 = scalar_select %p2528, %s2525, 7
          %s2530 = smul.addr %s2527, 8
          %s2531 = sadd.s32 %s2529, %s2530
          %s2532 = smul.addr %s2531, 2
          %s2533 = scalar_lea.vmem %s4, %s2532
        $region76: #{bidirectional_lstm.1} parent=71 // pred_fallthru
          _
        // Predicated region
        $region77: #{bidirectional_lstm.1} parent=71 // pred_check
          %p2534 = pneg %p205
        $region78: #{bidirectional_lstm.1} parent=71 // pred_check_branch
          %2536 = sbr.rel (%p2534) target = $region80
        $region79: #{bidirectional_lstm.1} parent=71 // pred_region
          %p2537 = scmp.lt.s32.totalorder %s27, 1
          %s2538 = scalar_select %p2537, %s27, 1
          %s2539 = smul.addr %s2538, 2
          %s2540 = scalar_lea.vmem %s5, %s2539
        $region80: #{bidirectional_lstm.1} parent=71 // pred_fallthru
          _
        // Predicated region
        $region81: #{bidirectional_lstm.1} parent=71 // pred_check
          %p2541 = pneg %p231
        $region82: #{bidirectional_lstm.1} parent=71 // pred_check_branch
          %2543 = sbr.rel (%p2541) target = $region84
        $region83: #{bidirectional_lstm.1} parent=71 // pred_region
          %p2544 = scmp.lt.s32.totalorder %s27, 1
          %s2545 = scalar_select %p2544, %s27, 1
          %s2546 = smul.addr %s2545, 2
          %s2547 = scalar_lea.vmem %s6, %s2546
        $region84: #{bidirectional_lstm.1} parent=71 // pred_fallthru
          _
      $region72: #{bidirectional_lstm.1} parent=5 // pred_fallthru
        _
    $region6: #{bidirectional_lstm.1} parent=1 // loop_footer
      %s20 = sadd.s32 1, %s16
    $region7: #{bidirectional_lstm.1} parent=1 // loop_footer_branch
      %15 = sbr.rel target = $region3
    $region8: #{bidirectional_lstm.1} parent=1 // loop_exit
      _
    %2548 = vsyncpa [#allocation5], 1
    %s2549 = scalar_lea.sflag [#allocation5], 1
    %2550 = vsyncpa %s2549, 1

</llo_original>
